<compile_context>
chip_gen: v7x
topology: tpu7x:2x2x1
jax: 0.10.0
libtpu: 0.0.40
codegen_flags: <defaults>
</compile_context>

<pallas_src>
import jax
import jax.numpy as jnp
from jax.experimental import pallas as pl
from jax.experimental.pallas import tpu as pltpu  # noqa: F401  (TPU backend)


# -----------------------------------------------------------------------------
# Fused kernel: full ResSemanticGCN forward on a (N=B*J, F) activation slab.
# -----------------------------------------------------------------------------
def fused_res_semgcn_kernel(x_ref, dvec_ref, ablk_ref,
                            w_in_ref, b_in_ref, g_in_ref, be_in_ref,
                            w_blk_ref, b_blk_ref, g_blk_ref, be_blk_ref,
                            w_out_ref, b_out_ref,
                            o_ref):
    dvec = dvec_ref[...]                     # (N, 1)  diag(A), tiled over batch
    a_blk = ablk_ref[...]                    # (N, N)  kron(I_B, A * (1 - I))

    def semgcn(h, wcat, bias):
        # out = diag(A)[:,None] * (h @ W0) + A_off @ (h @ W1) + bias
        fout = wcat.shape[-1] // 2
        xw = jnp.dot(h, wcat, preferred_element_type=jnp.float32)   # (N, 2*fout)
        xw0 = xw[:, :fout]
        xw1 = xw[:, fout:]
        return (dvec * xw0
                + jnp.dot(a_blk, xw1, preferred_element_type=jnp.float32)
                + bias)

    def bn_act(h, gamma, beta, residual=None):
        # BatchNorm1d, training-mode batch statistics (biased var, eps=1e-5),
        # optional residual add, then LeakyReLU(0.01).
        mean = jnp.mean(h, axis=0, keepdims=True)
        d = h - mean
        var = jnp.mean(d * d, axis=0, keepdims=True)
        y = d * jax.lax.rsqrt(var + 1e-5) * gamma + beta
        if residual is not None:
            y = y + residual
        return jnp.where(y > 0.0, y, 0.01 * y)

    # in_conv -> BN -> LeakyReLU
    h = semgcn(x_ref[...], w_in_ref[...], b_in_ref[...])
    h = bn_act(h, g_in_ref[...], be_in_ref[...])

    # residual blocks (statically unrolled; everything stays in vregs/VMEM)
    num_blocks = w_blk_ref.shape[0] // 2
    for i in range(num_blocks):
        identity = h
        h = semgcn(h, w_blk_ref[2 * i], b_blk_ref[2 * i])
        h = bn_act(h, g_blk_ref[2 * i], be_blk_ref[2 * i])
        # dropout(p=0.0) is the identity
        h = semgcn(h, w_blk_ref[2 * i + 1], b_blk_ref[2 * i + 1])
        h = bn_act(h, g_blk_ref[2 * i + 1], be_blk_ref[2 * i + 1],
                   residual=identity)

    # out_conv (no norm / activation)
    o_ref[...] = semgcn(h, w_out_ref[...], b_out_ref[...])


# -----------------------------------------------------------------------------
# Parameter construction (deterministic, mirrors the module __init__ shapes)
# -----------------------------------------------------------------------------
def make_adj(J):
    """Simple skeleton-like adjacency: self loops + chain (deterministic)."""
    adj = jnp.eye(J, dtype=jnp.float32)
    idx = jnp.arange(J - 1)
    adj = adj.at[idx, idx + 1].set(1.0)
    adj = adj.at[idx + 1, idx].set(1.0)
    return adj


def adj_to_softmax_A(adj):
    # adj_sparse_weight is initialized to 1 everywhere -> logits are 1 at
    # nonzero entries, -9e15 elsewhere, then row-softmax (dim=1).
    logits = jnp.where(adj > 1e-8, 1.0, -9.0e15).astype(jnp.float32)
    return jax.nn.softmax(logits, axis=1)


def init_gcn(key, fin, fout):
    kw, kb = jax.random.split(key)
    gain = 1.414
    bound = gain * (6.0 / (fin + fout)) ** 0.5               # xavier_uniform-style bound
    w = jax.random.uniform(kw, (2, fin, fout), jnp.float32, -bound, bound)
    stdv = 1.0 / (fout ** 0.5)
    b = jax.random.uniform(kb, (fout,), jnp.float32, -stdv, stdv)
    return w, b


def init_params(key, in_f, hid_f, out_f, num_blocks):
    keys = jax.random.split(key, 2 + 2 * num_blocks)
    params = {}
    params["in_conv"] = init_gcn(keys[0], in_f, hid_f)
    params["in_norm"] = (jnp.ones((hid_f,), jnp.float32), jnp.zeros((hid_f,), jnp.float32))
    blocks = []
    for i in range(num_blocks):
        blk = {
            "gcn1": init_gcn(keys[2 + 2 * i], hid_f, hid_f),
            "norm1": (jnp.ones((hid_f,), jnp.float32), jnp.zeros((hid_f,), jnp.float32)),
            "gcn2": init_gcn(keys[3 + 2 * i], hid_f, hid_f),
            "norm2": (jnp.ones((hid_f,), jnp.float32), jnp.zeros((hid_f,), jnp.float32)),
        }
        blocks.append(blk)
    params["blocks"] = blocks
    params["out_conv"] = init_gcn(keys[1], hid_f, out_f)
    return params


# -----------------------------------------------------------------------------
# Forward pass: parameter packing in plain JAX, one fused pallas_call.
# -----------------------------------------------------------------------------
def _pack_gcn_weight(w):
    # (2, Fin, Fout) -> (Fin, 2*Fout) = [W0 | W1]
    return jnp.concatenate([w[0], w[1]], axis=-1)


@jax.jit
def res_semantic_gcn_forward(x, A, params):
    B, J, fin = x.shape
    N = B * J
    hid = params["in_conv"][0].shape[-1]
    fout = params["out_conv"][0].shape[-1]
    blocks = params["blocks"]

    # Graph operators: block-diagonal off-diagonal adjacency + diagonal vector.
    eye = jnp.eye(J, dtype=jnp.float32)
    a_off = A * (1.0 - eye)
    a_blk = jnp.kron(jnp.eye(B, dtype=jnp.float32), a_off)          # (N, N)
    dvec = jnp.tile(jnp.diagonal(A), B).reshape(N, 1)                # (N, 1)

    w_in, b_in = params["in_conv"]
    g_in, be_in = params["in_norm"]
    w_out, b_out = params["out_conv"]

    # Stack per-block parameters so the kernel takes a fixed small arg list.
    w_blk = jnp.stack([_pack_gcn_weight(blk[g][0])
                       for blk in blocks for g in ("gcn1", "gcn2")])            # (2Nb, hid, 2*hid)
    b_blk = jnp.stack([blk[g][1].reshape(1, hid)
                       for blk in blocks for g in ("gcn1", "gcn2")])            # (2Nb, 1, hid)
    g_blk = jnp.stack([blk[n][0].reshape(1, hid)
                       for blk in blocks for n in ("norm1", "norm2")])          # (2Nb, 1, hid)
    be_blk = jnp.stack([blk[n][1].reshape(1, hid)
                        for blk in blocks for n in ("norm1", "norm2")])         # (2Nb, 1, hid)

    out2d = pl.pallas_call(
        fused_res_semgcn_kernel,
        out_shape=jax.ShapeDtypeStruct((N, fout), jnp.float32),
    )(x.reshape(N, fin), dvec, a_blk,
      _pack_gcn_weight(w_in), b_in.reshape(1, hid),
      g_in.reshape(1, hid), be_in.reshape(1, hid),
      w_blk, b_blk, g_blk, be_blk,
      _pack_gcn_weight(w_out), b_out.reshape(1, fout))

    return out2d.reshape(B, J, fout)


if __name__ == "__main__":
    B, J = 2, 16                  # batch, number of graph nodes (joints)
    IN_F, HID_F, OUT_F = 4, 32, 4
    NUM_BLOCKS = 4

    key = jax.random.PRNGKey(0)
    kx, kp = jax.random.split(key)

    adj = make_adj(J)
    A = adj_to_softmax_A(adj)
    params = init_params(kp, IN_F, HID_F, OUT_F, NUM_BLOCKS)

    x = jax.random.normal(kx, (B, J, IN_F), dtype=jnp.float32)

    out = res_semantic_gcn_forward(x, A, params)
    out = jax.block_until_ready(out)
    assert out.shape == (B, J, OUT_F)
    assert bool(jnp.all(jnp.isfinite(out)))
    print("KERNEL_OK")
</pallas_src>

<mosaic_0001>
module attributes {stable_mosaic.version = 11 : i64} {
  func.func @fused_res_semgcn_kernel(%arg0: memref<32x4xf32, #tpu.memory_space<vmem>>, %arg1: memref<32x1xf32, #tpu.memory_space<vmem>>, %arg2: memref<32x32xf32, #tpu.memory_space<vmem>>, %arg3: memref<4x64xf32, #tpu.memory_space<vmem>>, %arg4: memref<1x32xf32, #tpu.memory_space<vmem>>, %arg5: memref<1x32xf32, #tpu.memory_space<vmem>>, %arg6: memref<1x32xf32, #tpu.memory_space<vmem>>, %arg7: memref<8x32x64xf32, #tpu.memory_space<vmem>>, %arg8: memref<8x1x32xf32, #tpu.memory_space<vmem>>, %arg9: memref<8x1x32xf32, #tpu.memory_space<vmem>>, %arg10: memref<8x1x32xf32, #tpu.memory_space<vmem>>, %arg11: memref<32x8xf32, #tpu.memory_space<vmem>>, %arg12: memref<1x4xf32, #tpu.memory_space<vmem>>, %arg13: memref<32x4xf32, #tpu.memory_space<vmem>>) attributes {dimension_semantics = [], scalar_prefetch = 0 : i64, scratch_operands = 0 : i64, tpu.core_type = #tpu.core_type<tc>} {
    %c0 = arith.constant 0 : index
    %c0_0 = arith.constant 0 : index
    %0 = vector.load %arg1[%c0, %c0_0] : memref<32x1xf32, #tpu.memory_space<vmem>>, vector<32x1xf32>
    %c0_1 = arith.constant 0 : index
    %c0_2 = arith.constant 0 : index
    %1 = vector.load %arg2[%c0_1, %c0_2] : memref<32x32xf32, #tpu.memory_space<vmem>>, vector<32x32xf32>
    %c0_3 = arith.constant 0 : index
    %c0_4 = arith.constant 0 : index
    %2 = vector.load %arg0[%c0_3, %c0_4] : memref<32x4xf32, #tpu.memory_space<vmem>>, vector<32x4xf32>
    %c0_5 = arith.constant 0 : index
    %c0_6 = arith.constant 0 : index
    %3 = vector.load %arg3[%c0_5, %c0_6] : memref<4x64xf32, #tpu.memory_space<vmem>>, vector<4x64xf32>
    %c0_7 = arith.constant 0 : index
    %c0_8 = arith.constant 0 : index
    %4 = vector.load %arg4[%c0_7, %c0_8] : memref<1x32xf32, #tpu.memory_space<vmem>>, vector<1x32xf32>
    %cst = arith.constant dense<0.000000e+00> : vector<32x64xf32>
    %5 = tpu.matmul %2, %3, %cst {dimension_numbers = #tpu.dot_dimension_numbers<[1], [0], [0], [1], [0, 0, 1, 1], [], []>} : vector<32x4xf32>, vector<4x64xf32>, vector<32x64xf32> -> vector<32x64xf32>
    %6 = vector.extract_strided_slice %5 {offsets = [0, 0], sizes = [32, 32], strides = [1, 1]} : vector<32x64xf32> to vector<32x32xf32>
    %7 = vector.extract_strided_slice %5 {offsets = [0, 32], sizes = [32, 32], strides = [1, 1]} : vector<32x64xf32> to vector<32x32xf32>
    %8 = vector.broadcast %0 : vector<32x1xf32> to vector<32x32xf32>
    %9 = arith.mulf %8, %6 : vector<32x32xf32>
    %cst_9 = arith.constant dense<0.000000e+00> : vector<32x32xf32>
    %10 = tpu.matmul %1, %7, %cst_9 {dimension_numbers = #tpu.dot_dimension_numbers<[1], [0], [0], [1], [0, 0, 1, 1], [], []>} : vector<32x32xf32>, vector<32x32xf32>, vector<32x32xf32> -> vector<32x32xf32>
    %11 = arith.addf %9, %10 : vector<32x32xf32>
    %12 = vector.broadcast %4 : vector<1x32xf32> to vector<32x32xf32>
    %13 = arith.addf %11, %12 : vector<32x32xf32>
    %c0_10 = arith.constant 0 : index
    %c0_11 = arith.constant 0 : index
    %14 = vector.load %arg5[%c0_10, %c0_11] : memref<1x32xf32, #tpu.memory_space<vmem>>, vector<1x32xf32>
    %c0_12 = arith.constant 0 : index
    %c0_13 = arith.constant 0 : index
    %15 = vector.load %arg6[%c0_12, %c0_13] : memref<1x32xf32, #tpu.memory_space<vmem>>, vector<1x32xf32>
    %cst_14 = arith.constant dense<0.000000e+00> : vector<32xf32>
    %16 = vector.multi_reduction <add>, %13, %cst_14 [0] : vector<32x32xf32> to vector<32xf32>
    %17 = vector.shape_cast %16 : vector<32xf32> to vector<1x32xf32>
    %cst_15 = arith.constant 3.200000e+01 : f32
    %18 = vector.broadcast %cst_15 : f32 to vector<1x32xf32>
    %19 = arith.divf %17, %18 : vector<1x32xf32>
    %20 = vector.broadcast %19 : vector<1x32xf32> to vector<32x32xf32>
    %21 = arith.subf %13, %20 : vector<32x32xf32>
    %22 = arith.mulf %21, %21 : vector<32x32xf32>
    %cst_16 = arith.constant dense<0.000000e+00> : vector<32xf32>
    %23 = vector.multi_reduction <add>, %22, %cst_16 [0] : vector<32x32xf32> to vector<32xf32>
    %24 = vector.shape_cast %23 : vector<32xf32> to vector<1x32xf32>
    %cst_17 = arith.constant 3.200000e+01 : f32
    %25 = vector.broadcast %cst_17 : f32 to vector<1x32xf32>
    %26 = arith.divf %24, %25 : vector<1x32xf32>
    %cst_18 = arith.constant 9.99999974E-6 : f32
    %27 = vector.broadcast %cst_18 : f32 to vector<1x32xf32>
    %28 = arith.addf %26, %27 : vector<1x32xf32>
    %29 = math.rsqrt %28 : vector<1x32xf32>
    %30 = vector.broadcast %29 : vector<1x32xf32> to vector<32x32xf32>
    %31 = arith.mulf %21, %30 : vector<32x32xf32>
    %32 = vector.broadcast %14 : vector<1x32xf32> to vector<32x32xf32>
    %33 = arith.mulf %31, %32 : vector<32x32xf32>
    %34 = vector.broadcast %15 : vector<1x32xf32> to vector<32x32xf32>
    %35 = arith.addf %33, %34 : vector<32x32xf32>
    %cst_19 = arith.constant 0.000000e+00 : f32
    %36 = vector.broadcast %cst_19 : f32 to vector<32x32xf32>
    %37 = arith.cmpf ogt, %35, %36 : vector<32x32xf32>
    %cst_20 = arith.constant 0.00999999977 : f32
    %38 = vector.broadcast %cst_20 : f32 to vector<32x32xf32>
    %39 = arith.mulf %38, %35 : vector<32x32xf32>
    %40 = arith.select %37, %35, %39 : vector<32x32xi1>, vector<32x32xf32>
    %c0_21 = arith.constant 0 : index
    %c0_22 = arith.constant 0 : index
    %c0_23 = arith.constant 0 : index
    %41 = vector.load %arg7[%c0_21, %c0_22, %c0_23] : memref<8x32x64xf32, #tpu.memory_space<vmem>>, vector<1x32x64xf32>
    %42 = vector.shape_cast %41 : vector<1x32x64xf32> to vector<32x64xf32>
    %c0_24 = arith.constant 0 : index
    %c0_25 = arith.constant 0 : index
    %c0_26 = arith.constant 0 : index
    %43 = vector.load %arg8[%c0_24, %c0_25, %c0_26] : memref<8x1x32xf32, #tpu.memory_space<vmem>>, vector<1x1x32xf32>
    %44 = vector.shape_cast %43 : vector<1x1x32xf32> to vector<1x32xf32>
    %cst_27 = arith.constant dense<0.000000e+00> : vector<32x64xf32>
    %45 = tpu.matmul %40, %42, %cst_27 {dimension_numbers = #tpu.dot_dimension_numbers<[1], [0], [0], [1], [0, 0, 1, 1], [], []>} : vector<32x32xf32>, vector<32x64xf32>, vector<32x64xf32> -> vector<32x64xf32>
    %46 = vector.extract_strided_slice %45 {offsets = [0, 0], sizes = [32, 32], strides = [1, 1]} : vector<32x64xf32> to vector<32x32xf32>
    %47 = vector.extract_strided_slice %45 {offsets = [0, 32], sizes = [32, 32], strides = [1, 1]} : vector<32x64xf32> to vector<32x32xf32>
    %48 = vector.broadcast %0 : vector<32x1xf32> to vector<32x32xf32>
    %49 = arith.mulf %48, %46 : vector<32x32xf32>
    %cst_28 = arith.constant dense<0.000000e+00> : vector<32x32xf32>
    %50 = tpu.matmul %1, %47, %cst_28 {dimension_numbers = #tpu.dot_dimension_numbers<[1], [0], [0], [1], [0, 0, 1, 1], [], []>} : vector<32x32xf32>, vector<32x32xf32>, vector<32x32xf32> -> vector<32x32xf32>
    %51 = arith.addf %49, %50 : vector<32x32xf32>
    %52 = vector.broadcast %44 : vector<1x32xf32> to vector<32x32xf32>
    %53 = arith.addf %51, %52 : vector<32x32xf32>
    %c0_29 = arith.constant 0 : index
    %c0_30 = arith.constant 0 : index
    %c0_31 = arith.constant 0 : index
    %54 = vector.load %arg9[%c0_29, %c0_30, %c0_31] : memref<8x1x32xf32, #tpu.memory_space<vmem>>, vector<1x1x32xf32>
    %55 = vector.shape_cast %54 : vector<1x1x32xf32> to vector<1x32xf32>
    %c0_32 = arith.constant 0 : index
    %c0_33 = arith.constant 0 : index
    %c0_34 = arith.constant 0 : index
    %56 = vector.load %arg10[%c0_32, %c0_33, %c0_34] : memref<8x1x32xf32, #tpu.memory_space<vmem>>, vector<1x1x32xf32>
    %57 = vector.shape_cast %56 : vector<1x1x32xf32> to vector<1x32xf32>
    %cst_35 = arith.constant dense<0.000000e+00> : vector<32xf32>
    %58 = vector.multi_reduction <add>, %53, %cst_35 [0] : vector<32x32xf32> to vector<32xf32>
    %59 = vector.shape_cast %58 : vector<32xf32> to vector<1x32xf32>
    %cst_36 = arith.constant 3.200000e+01 : f32
    %60 = vector.broadcast %cst_36 : f32 to vector<1x32xf32>
    %61 = arith.divf %59, %60 : vector<1x32xf32>
    %62 = vector.broadcast %61 : vector<1x32xf32> to vector<32x32xf32>
    %63 = arith.subf %53, %62 : vector<32x32xf32>
    %64 = arith.mulf %63, %63 : vector<32x32xf32>
    %cst_37 = arith.constant dense<0.000000e+00> : vector<32xf32>
    %65 = vector.multi_reduction <add>, %64, %cst_37 [0] : vector<32x32xf32> to vector<32xf32>
    %66 = vector.shape_cast %65 : vector<32xf32> to vector<1x32xf32>
    %cst_38 = arith.constant 3.200000e+01 : f32
    %67 = vector.broadcast %cst_38 : f32 to vector<1x32xf32>
    %68 = arith.divf %66, %67 : vector<1x32xf32>
    %cst_39 = arith.constant 9.99999974E-6 : f32
    %69 = vector.broadcast %cst_39 : f32 to vector<1x32xf32>
    %70 = arith.addf %68, %69 : vector<1x32xf32>
    %71 = math.rsqrt %70 : vector<1x32xf32>
    %72 = vector.broadcast %71 : vector<1x32xf32> to vector<32x32xf32>
    %73 = arith.mulf %63, %72 : vector<32x32xf32>
    %74 = vector.broadcast %55 : vector<1x32xf32> to vector<32x32xf32>
    %75 = arith.mulf %73, %74 : vector<32x32xf32>
    %76 = vector.broadcast %57 : vector<1x32xf32> to vector<32x32xf32>
    %77 = arith.addf %75, %76 : vector<32x32xf32>
    %cst_40 = arith.constant 0.000000e+00 : f32
    %78 = vector.broadcast %cst_40 : f32 to vector<32x32xf32>
    %79 = arith.cmpf ogt, %77, %78 : vector<32x32xf32>
    %cst_41 = arith.constant 0.00999999977 : f32
    %80 = vector.broadcast %cst_41 : f32 to vector<32x32xf32>
    %81 = arith.mulf %80, %77 : vector<32x32xf32>
    %82 = arith.select %79, %77, %81 : vector<32x32xi1>, vector<32x32xf32>
    %c1 = arith.constant 1 : index
    %c0_42 = arith.constant 0 : index
    %c0_43 = arith.constant 0 : index
    %83 = vector.load %arg7[%c1, %c0_42, %c0_43] : memref<8x32x64xf32, #tpu.memory_space<vmem>>, vector<1x32x64xf32>
    %84 = vector.shape_cast %83 : vector<1x32x64xf32> to vector<32x64xf32>
    %c1_44 = arith.constant 1 : index
    %c0_45 = arith.constant 0 : index
    %c0_46 = arith.constant 0 : index
    %85 = vector.load %arg8[%c1_44, %c0_45, %c0_46] : memref<8x1x32xf32, #tpu.memory_space<vmem>>, vector<1x1x32xf32>
    %86 = vector.shape_cast %85 : vector<1x1x32xf32> to vector<1x32xf32>
    %cst_47 = arith.constant dense<0.000000e+00> : vector<32x64xf32>
    %87 = tpu.matmul %82, %84, %cst_47 {dimension_numbers = #tpu.dot_dimension_numbers<[1], [0], [0], [1], [0, 0, 1, 1], [], []>} : vector<32x32xf32>, vector<32x64xf32>, vector<32x64xf32> -> vector<32x64xf32>
    %88 = vector.extract_strided_slice %87 {offsets = [0, 0], sizes = [32, 32], strides = [1, 1]} : vector<32x64xf32> to vector<32x32xf32>
    %89 = vector.extract_strided_slice %87 {offsets = [0, 32], sizes = [32, 32], strides = [1, 1]} : vector<32x64xf32> to vector<32x32xf32>
    %90 = vector.broadcast %0 : vector<32x1xf32> to vector<32x32xf32>
    %91 = arith.mulf %90, %88 : vector<32x32xf32>
    %cst_48 = arith.constant dense<0.000000e+00> : vector<32x32xf32>
    %92 = tpu.matmul %1, %89, %cst_48 {dimension_numbers = #tpu.dot_dimension_numbers<[1], [0], [0], [1], [0, 0, 1, 1], [], []>} : vector<32x32xf32>, vector<32x32xf32>, vector<32x32xf32> -> vector<32x32xf32>
    %93 = arith.addf %91, %92 : vector<32x32xf32>
    %94 = vector.broadcast %86 : vector<1x32xf32> to vector<32x32xf32>
    %95 = arith.addf %93, %94 : vector<32x32xf32>
    %c1_49 = arith.constant 1 : index
    %c0_50 = arith.constant 0 : index
    %c0_51 = arith.constant 0 : index
    %96 = vector.load %arg9[%c1_49, %c0_50, %c0_51] : memref<8x1x32xf32, #tpu.memory_space<vmem>>, vector<1x1x32xf32>
    %97 = vector.shape_cast %96 : vector<1x1x32xf32> to vector<1x32xf32>
    %c1_52 = arith.constant 1 : index
    %c0_53 = arith.constant 0 : index
    %c0_54 = arith.constant 0 : index
    %98 = vector.load %arg10[%c1_52, %c0_53, %c0_54] : memref<8x1x32xf32, #tpu.memory_space<vmem>>, vector<1x1x32xf32>
    %99 = vector.shape_cast %98 : vector<1x1x32xf32> to vector<1x32xf32>
    %cst_55 = arith.constant dense<0.000000e+00> : vector<32xf32>
    %100 = vector.multi_reduction <add>, %95, %cst_55 [0] : vector<32x32xf32> to vector<32xf32>
    %101 = vector.shape_cast %100 : vector<32xf32> to vector<1x32xf32>
    %cst_56 = arith.constant 3.200000e+01 : f32
    %102 = vector.broadcast %cst_56 : f32 to vector<1x32xf32>
    %103 = arith.divf %101, %102 : vector<1x32xf32>
    %104 = vector.broadcast %103 : vector<1x32xf32> to vector<32x32xf32>
    %105 = arith.subf %95, %104 : vector<32x32xf32>
    %106 = arith.mulf %105, %105 : vector<32x32xf32>
    %cst_57 = arith.constant dense<0.000000e+00> : vector<32xf32>
    %107 = vector.multi_reduction <add>, %106, %cst_57 [0] : vector<32x32xf32> to vector<32xf32>
    %108 = vector.shape_cast %107 : vector<32xf32> to vector<1x32xf32>
    %cst_58 = arith.constant 3.200000e+01 : f32
    %109 = vector.broadcast %cst_58 : f32 to vector<1x32xf32>
    %110 = arith.divf %108, %109 : vector<1x32xf32>
    %cst_59 = arith.constant 9.99999974E-6 : f32
    %111 = vector.broadcast %cst_59 : f32 to vector<1x32xf32>
    %112 = arith.addf %110, %111 : vector<1x32xf32>
    %113 = math.rsqrt %112 : vector<1x32xf32>
    %114 = vector.broadcast %113 : vector<1x32xf32> to vector<32x32xf32>
    %115 = arith.mulf %105, %114 : vector<32x32xf32>
    %116 = vector.broadcast %97 : vector<1x32xf32> to vector<32x32xf32>
    %117 = arith.mulf %115, %116 : vector<32x32xf32>
    %118 = vector.broadcast %99 : vector<1x32xf32> to vector<32x32xf32>
    %119 = arith.addf %117, %118 : vector<32x32xf32>
    %120 = arith.addf %119, %40 : vector<32x32xf32>
    %cst_60 = arith.constant 0.000000e+00 : f32
    %121 = vector.broadcast %cst_60 : f32 to vector<32x32xf32>
    %122 = arith.cmpf ogt, %120, %121 : vector<32x32xf32>
    %cst_61 = arith.constant 0.00999999977 : f32
    %123 = vector.broadcast %cst_61 : f32 to vector<32x32xf32>
    %124 = arith.mulf %123, %120 : vector<32x32xf32>
    %125 = arith.select %122, %120, %124 : vector<32x32xi1>, vector<32x32xf32>
    %c2 = arith.constant 2 : index
    %c0_62 = arith.constant 0 : index
    %c0_63 = arith.constant 0 : index
    %126 = vector.load %arg7[%c2, %c0_62, %c0_63] : memref<8x32x64xf32, #tpu.memory_space<vmem>>, vector<1x32x64xf32>
    %127 = vector.shape_cast %126 : vector<1x32x64xf32> to vector<32x64xf32>
    %c2_64 = arith.constant 2 : index
    %c0_65 = arith.constant 0 : index
    %c0_66 = arith.constant 0 : index
    %128 = vector.load %arg8[%c2_64, %c0_65, %c0_66] : memref<8x1x32xf32, #tpu.memory_space<vmem>>, vector<1x1x32xf32>
    %129 = vector.shape_cast %128 : vector<1x1x32xf32> to vector<1x32xf32>
    %cst_67 = arith.constant dense<0.000000e+00> : vector<32x64xf32>
    %130 = tpu.matmul %125, %127, %cst_67 {dimension_numbers = #tpu.dot_dimension_numbers<[1], [0], [0], [1], [0, 0, 1, 1], [], []>} : vector<32x32xf32>, vector<32x64xf32>, vector<32x64xf32> -> vector<32x64xf32>
    %131 = vector.extract_strided_slice %130 {offsets = [0, 0], sizes = [32, 32], strides = [1, 1]} : vector<32x64xf32> to vector<32x32xf32>
    %132 = vector.extract_strided_slice %130 {offsets = [0, 32], sizes = [32, 32], strides = [1, 1]} : vector<32x64xf32> to vector<32x32xf32>
    %133 = vector.broadcast %0 : vector<32x1xf32> to vector<32x32xf32>
    %134 = arith.mulf %133, %131 : vector<32x32xf32>
    %cst_68 = arith.constant dense<0.000000e+00> : vector<32x32xf32>
    %135 = tpu.matmul %1, %132, %cst_68 {dimension_numbers = #tpu.dot_dimension_numbers<[1], [0], [0], [1], [0, 0, 1, 1], [], []>} : vector<32x32xf32>, vector<32x32xf32>, vector<32x32xf32> -> vector<32x32xf32>
    %136 = arith.addf %134, %135 : vector<32x32xf32>
    %137 = vector.broadcast %129 : vector<1x32xf32> to vector<32x32xf32>
    %138 = arith.addf %136, %137 : vector<32x32xf32>
    %c2_69 = arith.constant 2 : index
    %c0_70 = arith.constant 0 : index
    %c0_71 = arith.constant 0 : index
    %139 = vector.load %arg9[%c2_69, %c0_70, %c0_71] : memref<8x1x32xf32, #tpu.memory_space<vmem>>, vector<1x1x32xf32>
    %140 = vector.shape_cast %139 : vector<1x1x32xf32> to vector<1x32xf32>
    %c2_72 = arith.constant 2 : index
    %c0_73 = arith.constant 0 : index
    %c0_74 = arith.constant 0 : index
    %141 = vector.load %arg10[%c2_72, %c0_73, %c0_74] : memref<8x1x32xf32, #tpu.memory_space<vmem>>, vector<1x1x32xf32>
    %142 = vector.shape_cast %141 : vector<1x1x32xf32> to vector<1x32xf32>
    %cst_75 = arith.constant dense<0.000000e+00> : vector<32xf32>
    %143 = vector.multi_reduction <add>, %138, %cst_75 [0] : vector<32x32xf32> to vector<32xf32>
    %144 = vector.shape_cast %143 : vector<32xf32> to vector<1x32xf32>
    %cst_76 = arith.constant 3.200000e+01 : f32
    %145 = vector.broadcast %cst_76 : f32 to vector<1x32xf32>
    %146 = arith.divf %144, %145 : vector<1x32xf32>
    %147 = vector.broadcast %146 : vector<1x32xf32> to vector<32x32xf32>
    %148 = arith.subf %138, %147 : vector<32x32xf32>
    %149 = arith.mulf %148, %148 : vector<32x32xf32>
    %cst_77 = arith.constant dense<0.000000e+00> : vector<32xf32>
    %150 = vector.multi_reduction <add>, %149, %cst_77 [0] : vector<32x32xf32> to vector<32xf32>
    %151 = vector.shape_cast %150 : vector<32xf32> to vector<1x32xf32>
    %cst_78 = arith.constant 3.200000e+01 : f32
    %152 = vector.broadcast %cst_78 : f32 to vector<1x32xf32>
    %153 = arith.divf %151, %152 : vector<1x32xf32>
    %cst_79 = arith.constant 9.99999974E-6 : f32
    %154 = vector.broadcast %cst_79 : f32 to vector<1x32xf32>
    %155 = arith.addf %153, %154 : vector<1x32xf32>
    %156 = math.rsqrt %155 : vector<1x32xf32>
    %157 = vector.broadcast %156 : vector<1x32xf32> to vector<32x32xf32>
    %158 = arith.mulf %148, %157 : vector<32x32xf32>
    %159 = vector.broadcast %140 : vector<1x32xf32> to vector<32x32xf32>
    %160 = arith.mulf %158, %159 : vector<32x32xf32>
    %161 = vector.broadcast %142 : vector<1x32xf32> to vector<32x32xf32>
    %162 = arith.addf %160, %161 : vector<32x32xf32>
    %cst_80 = arith.constant 0.000000e+00 : f32
    %163 = vector.broadcast %cst_80 : f32 to vector<32x32xf32>
    %164 = arith.cmpf ogt, %162, %163 : vector<32x32xf32>
    %cst_81 = arith.constant 0.00999999977 : f32
    %165 = vector.broadcast %cst_81 : f32 to vector<32x32xf32>
    %166 = arith.mulf %165, %162 : vector<32x32xf32>
    %167 = arith.select %164, %162, %166 : vector<32x32xi1>, vector<32x32xf32>
    %c3 = arith.constant 3 : index
    %c0_82 = arith.constant 0 : index
    %c0_83 = arith.constant 0 : index
    %168 = vector.load %arg7[%c3, %c0_82, %c0_83] : memref<8x32x64xf32, #tpu.memory_space<vmem>>, vector<1x32x64xf32>
    %169 = vector.shape_cast %168 : vector<1x32x64xf32> to vector<32x64xf32>
    %c3_84 = arith.constant 3 : index
    %c0_85 = arith.constant 0 : index
    %c0_86 = arith.constant 0 : index
    %170 = vector.load %arg8[%c3_84, %c0_85, %c0_86] : memref<8x1x32xf32, #tpu.memory_space<vmem>>, vector<1x1x32xf32>
    %171 = vector.shape_cast %170 : vector<1x1x32xf32> to vector<1x32xf32>
    %cst_87 = arith.constant dense<0.000000e+00> : vector<32x64xf32>
    %172 = tpu.matmul %167, %169, %cst_87 {dimension_numbers = #tpu.dot_dimension_numbers<[1], [0], [0], [1], [0, 0, 1, 1], [], []>} : vector<32x32xf32>, vector<32x64xf32>, vector<32x64xf32> -> vector<32x64xf32>
    %173 = vector.extract_strided_slice %172 {offsets = [0, 0], sizes = [32, 32], strides = [1, 1]} : vector<32x64xf32> to vector<32x32xf32>
    %174 = vector.extract_strided_slice %172 {offsets = [0, 32], sizes = [32, 32], strides = [1, 1]} : vector<32x64xf32> to vector<32x32xf32>
    %175 = vector.broadcast %0 : vector<32x1xf32> to vector<32x32xf32>
    %176 = arith.mulf %175, %173 : vector<32x32xf32>
    %cst_88 = arith.constant dense<0.000000e+00> : vector<32x32xf32>
    %177 = tpu.matmul %1, %174, %cst_88 {dimension_numbers = #tpu.dot_dimension_numbers<[1], [0], [0], [1], [0, 0, 1, 1], [], []>} : vector<32x32xf32>, vector<32x32xf32>, vector<32x32xf32> -> vector<32x32xf32>
    %178 = arith.addf %176, %177 : vector<32x32xf32>
    %179 = vector.broadcast %171 : vector<1x32xf32> to vector<32x32xf32>
    %180 = arith.addf %178, %179 : vector<32x32xf32>
    %c3_89 = arith.constant 3 : index
    %c0_90 = arith.constant 0 : index
    %c0_91 = arith.constant 0 : index
    %181 = vector.load %arg9[%c3_89, %c0_90, %c0_91] : memref<8x1x32xf32, #tpu.memory_space<vmem>>, vector<1x1x32xf32>
    %182 = vector.shape_cast %181 : vector<1x1x32xf32> to vector<1x32xf32>
    %c3_92 = arith.constant 3 : index
    %c0_93 = arith.constant 0 : index
    %c0_94 = arith.constant 0 : index
    %183 = vector.load %arg10[%c3_92, %c0_93, %c0_94] : memref<8x1x32xf32, #tpu.memory_space<vmem>>, vector<1x1x32xf32>
    %184 = vector.shape_cast %183 : vector<1x1x32xf32> to vector<1x32xf32>
    %cst_95 = arith.constant dense<0.000000e+00> : vector<32xf32>
    %185 = vector.multi_reduction <add>, %180, %cst_95 [0] : vector<32x32xf32> to vector<32xf32>
    %186 = vector.shape_cast %185 : vector<32xf32> to vector<1x32xf32>
    %cst_96 = arith.constant 3.200000e+01 : f32
    %187 = vector.broadcast %cst_96 : f32 to vector<1x32xf32>
    %188 = arith.divf %186, %187 : vector<1x32xf32>
    %189 = vector.broadcast %188 : vector<1x32xf32> to vector<32x32xf32>
    %190 = arith.subf %180, %189 : vector<32x32xf32>
    %191 = arith.mulf %190, %190 : vector<32x32xf32>
    %cst_97 = arith.constant dense<0.000000e+00> : vector<32xf32>
    %192 = vector.multi_reduction <add>, %191, %cst_97 [0] : vector<32x32xf32> to vector<32xf32>
    %193 = vector.shape_cast %192 : vector<32xf32> to vector<1x32xf32>
    %cst_98 = arith.constant 3.200000e+01 : f32
    %194 = vector.broadcast %cst_98 : f32 to vector<1x32xf32>
    %195 = arith.divf %193, %194 : vector<1x32xf32>
    %cst_99 = arith.constant 9.99999974E-6 : f32
    %196 = vector.broadcast %cst_99 : f32 to vector<1x32xf32>
    %197 = arith.addf %195, %196 : vector<1x32xf32>
    %198 = math.rsqrt %197 : vector<1x32xf32>
    %199 = vector.broadcast %198 : vector<1x32xf32> to vector<32x32xf32>
    %200 = arith.mulf %190, %199 : vector<32x32xf32>
    %201 = vector.broadcast %182 : vector<1x32xf32> to vector<32x32xf32>
    %202 = arith.mulf %200, %201 : vector<32x32xf32>
    %203 = vector.broadcast %184 : vector<1x32xf32> to vector<32x32xf32>
    %204 = arith.addf %202, %203 : vector<32x32xf32>
    %205 = arith.addf %204, %125 : vector<32x32xf32>
    %cst_100 = arith.constant 0.000000e+00 : f32
    %206 = vector.broadcast %cst_100 : f32 to vector<32x32xf32>
    %207 = arith.cmpf ogt, %205, %206 : vector<32x32xf32>
    %cst_101 = arith.constant 0.00999999977 : f32
    %208 = vector.broadcast %cst_101 : f32 to vector<32x32xf32>
    %209 = arith.mulf %208, %205 : vector<32x32xf32>
    %210 = arith.select %207, %205, %209 : vector<32x32xi1>, vector<32x32xf32>
    %c4 = arith.constant 4 : index
    %c0_102 = arith.constant 0 : index
    %c0_103 = arith.constant 0 : index
    %211 = vector.load %arg7[%c4, %c0_102, %c0_103] : memref<8x32x64xf32, #tpu.memory_space<vmem>>, vector<1x32x64xf32>
    %212 = vector.shape_cast %211 : vector<1x32x64xf32> to vector<32x64xf32>
    %c4_104 = arith.constant 4 : index
    %c0_105 = arith.constant 0 : index
    %c0_106 = arith.constant 0 : index
    %213 = vector.load %arg8[%c4_104, %c0_105, %c0_106] : memref<8x1x32xf32, #tpu.memory_space<vmem>>, vector<1x1x32xf32>
    %214 = vector.shape_cast %213 : vector<1x1x32xf32> to vector<1x32xf32>
    %cst_107 = arith.constant dense<0.000000e+00> : vector<32x64xf32>
    %215 = tpu.matmul %210, %212, %cst_107 {dimension_numbers = #tpu.dot_dimension_numbers<[1], [0], [0], [1], [0, 0, 1, 1], [], []>} : vector<32x32xf32>, vector<32x64xf32>, vector<32x64xf32> -> vector<32x64xf32>
    %216 = vector.extract_strided_slice %215 {offsets = [0, 0], sizes = [32, 32], strides = [1, 1]} : vector<32x64xf32> to vector<32x32xf32>
    %217 = vector.extract_strided_slice %215 {offsets = [0, 32], sizes = [32, 32], strides = [1, 1]} : vector<32x64xf32> to vector<32x32xf32>
    %218 = vector.broadcast %0 : vector<32x1xf32> to vector<32x32xf32>
    %219 = arith.mulf %218, %216 : vector<32x32xf32>
    %cst_108 = arith.constant dense<0.000000e+00> : vector<32x32xf32>
    %220 = tpu.matmul %1, %217, %cst_108 {dimension_numbers = #tpu.dot_dimension_numbers<[1], [0], [0], [1], [0, 0, 1, 1], [], []>} : vector<32x32xf32>, vector<32x32xf32>, vector<32x32xf32> -> vector<32x32xf32>
    %221 = arith.addf %219, %220 : vector<32x32xf32>
    %222 = vector.broadcast %214 : vector<1x32xf32> to vector<32x32xf32>
    %223 = arith.addf %221, %222 : vector<32x32xf32>
    %c4_109 = arith.constant 4 : index
    %c0_110 = arith.constant 0 : index
    %c0_111 = arith.constant 0 : index
    %224 = vector.load %arg9[%c4_109, %c0_110, %c0_111] : memref<8x1x32xf32, #tpu.memory_space<vmem>>, vector<1x1x32xf32>
    %225 = vector.shape_cast %224 : vector<1x1x32xf32> to vector<1x32xf32>
    %c4_112 = arith.constant 4 : index
    %c0_113 = arith.constant 0 : index
    %c0_114 = arith.constant 0 : index
    %226 = vector.load %arg10[%c4_112, %c0_113, %c0_114] : memref<8x1x32xf32, #tpu.memory_space<vmem>>, vector<1x1x32xf32>
    %227 = vector.shape_cast %226 : vector<1x1x32xf32> to vector<1x32xf32>
    %cst_115 = arith.constant dense<0.000000e+00> : vector<32xf32>
    %228 = vector.multi_reduction <add>, %223, %cst_115 [0] : vector<32x32xf32> to vector<32xf32>
    %229 = vector.shape_cast %228 : vector<32xf32> to vector<1x32xf32>
    %cst_116 = arith.constant 3.200000e+01 : f32
    %230 = vector.broadcast %cst_116 : f32 to vector<1x32xf32>
    %231 = arith.divf %229, %230 : vector<1x32xf32>
    %232 = vector.broadcast %231 : vector<1x32xf32> to vector<32x32xf32>
    %233 = arith.subf %223, %232 : vector<32x32xf32>
    %234 = arith.mulf %233, %233 : vector<32x32xf32>
    %cst_117 = arith.constant dense<0.000000e+00> : vector<32xf32>
    %235 = vector.multi_reduction <add>, %234, %cst_117 [0] : vector<32x32xf32> to vector<32xf32>
    %236 = vector.shape_cast %235 : vector<32xf32> to vector<1x32xf32>
    %cst_118 = arith.constant 3.200000e+01 : f32
    %237 = vector.broadcast %cst_118 : f32 to vector<1x32xf32>
    %238 = arith.divf %236, %237 : vector<1x32xf32>
    %cst_119 = arith.constant 9.99999974E-6 : f32
    %239 = vector.broadcast %cst_119 : f32 to vector<1x32xf32>
    %240 = arith.addf %238, %239 : vector<1x32xf32>
    %241 = math.rsqrt %240 : vector<1x32xf32>
    %242 = vector.broadcast %241 : vector<1x32xf32> to vector<32x32xf32>
    %243 = arith.mulf %233, %242 : vector<32x32xf32>
    %244 = vector.broadcast %225 : vector<1x32xf32> to vector<32x32xf32>
    %245 = arith.mulf %243, %244 : vector<32x32xf32>
    %246 = vector.broadcast %227 : vector<1x32xf32> to vector<32x32xf32>
    %247 = arith.addf %245, %246 : vector<32x32xf32>
    %cst_120 = arith.constant 0.000000e+00 : f32
    %248 = vector.broadcast %cst_120 : f32 to vector<32x32xf32>
    %249 = arith.cmpf ogt, %247, %248 : vector<32x32xf32>
    %cst_121 = arith.constant 0.00999999977 : f32
    %250 = vector.broadcast %cst_121 : f32 to vector<32x32xf32>
    %251 = arith.mulf %250, %247 : vector<32x32xf32>
    %252 = arith.select %249, %247, %251 : vector<32x32xi1>, vector<32x32xf32>
    %c5 = arith.constant 5 : index
    %c0_122 = arith.constant 0 : index
    %c0_123 = arith.constant 0 : index
    %253 = vector.load %arg7[%c5, %c0_122, %c0_123] : memref<8x32x64xf32, #tpu.memory_space<vmem>>, vector<1x32x64xf32>
    %254 = vector.shape_cast %253 : vector<1x32x64xf32> to vector<32x64xf32>
    %c5_124 = arith.constant 5 : index
    %c0_125 = arith.constant 0 : index
    %c0_126 = arith.constant 0 : index
    %255 = vector.load %arg8[%c5_124, %c0_125, %c0_126] : memref<8x1x32xf32, #tpu.memory_space<vmem>>, vector<1x1x32xf32>
    %256 = vector.shape_cast %255 : vector<1x1x32xf32> to vector<1x32xf32>
    %cst_127 = arith.constant dense<0.000000e+00> : vector<32x64xf32>
    %257 = tpu.matmul %252, %254, %cst_127 {dimension_numbers = #tpu.dot_dimension_numbers<[1], [0], [0], [1], [0, 0, 1, 1], [], []>} : vector<32x32xf32>, vector<32x64xf32>, vector<32x64xf32> -> vector<32x64xf32>
    %258 = vector.extract_strided_slice %257 {offsets = [0, 0], sizes = [32, 32], strides = [1, 1]} : vector<32x64xf32> to vector<32x32xf32>
    %259 = vector.extract_strided_slice %257 {offsets = [0, 32], sizes = [32, 32], strides = [1, 1]} : vector<32x64xf32> to vector<32x32xf32>
    %260 = vector.broadcast %0 : vector<32x1xf32> to vector<32x32xf32>
    %261 = arith.mulf %260, %258 : vector<32x32xf32>
    %cst_128 = arith.constant dense<0.000000e+00> : vector<32x32xf32>
    %262 = tpu.matmul %1, %259, %cst_128 {dimension_numbers = #tpu.dot_dimension_numbers<[1], [0], [0], [1], [0, 0, 1, 1], [], []>} : vector<32x32xf32>, vector<32x32xf32>, vector<32x32xf32> -> vector<32x32xf32>
    %263 = arith.addf %261, %262 : vector<32x32xf32>
    %264 = vector.broadcast %256 : vector<1x32xf32> to vector<32x32xf32>
    %265 = arith.addf %263, %264 : vector<32x32xf32>
    %c5_129 = arith.constant 5 : index
    %c0_130 = arith.constant 0 : index
    %c0_131 = arith.constant 0 : index
    %266 = vector.load %arg9[%c5_129, %c0_130, %c0_131] : memref<8x1x32xf32, #tpu.memory_space<vmem>>, vector<1x1x32xf32>
    %267 = vector.shape_cast %266 : vector<1x1x32xf32> to vector<1x32xf32>
    %c5_132 = arith.constant 5 : index
    %c0_133 = arith.constant 0 : index
    %c0_134 = arith.constant 0 : index
    %268 = vector.load %arg10[%c5_132, %c0_133, %c0_134] : memref<8x1x32xf32, #tpu.memory_space<vmem>>, vector<1x1x32xf32>
    %269 = vector.shape_cast %268 : vector<1x1x32xf32> to vector<1x32xf32>
    %cst_135 = arith.constant dense<0.000000e+00> : vector<32xf32>
    %270 = vector.multi_reduction <add>, %265, %cst_135 [0] : vector<32x32xf32> to vector<32xf32>
    %271 = vector.shape_cast %270 : vector<32xf32> to vector<1x32xf32>
    %cst_136 = arith.constant 3.200000e+01 : f32
    %272 = vector.broadcast %cst_136 : f32 to vector<1x32xf32>
    %273 = arith.divf %271, %272 : vector<1x32xf32>
    %274 = vector.broadcast %273 : vector<1x32xf32> to vector<32x32xf32>
    %275 = arith.subf %265, %274 : vector<32x32xf32>
    %276 = arith.mulf %275, %275 : vector<32x32xf32>
    %cst_137 = arith.constant dense<0.000000e+00> : vector<32xf32>
    %277 = vector.multi_reduction <add>, %276, %cst_137 [0] : vector<32x32xf32> to vector<32xf32>
    %278 = vector.shape_cast %277 : vector<32xf32> to vector<1x32xf32>
    %cst_138 = arith.constant 3.200000e+01 : f32
    %279 = vector.broadcast %cst_138 : f32 to vector<1x32xf32>
    %280 = arith.divf %278, %279 : vector<1x32xf32>
    %cst_139 = arith.constant 9.99999974E-6 : f32
    %281 = vector.broadcast %cst_139 : f32 to vector<1x32xf32>
    %282 = arith.addf %280, %281 : vector<1x32xf32>
    %283 = math.rsqrt %282 : vector<1x32xf32>
    %284 = vector.broadcast %283 : vector<1x32xf32> to vector<32x32xf32>
    %285 = arith.mulf %275, %284 : vector<32x32xf32>
    %286 = vector.broadcast %267 : vector<1x32xf32> to vector<32x32xf32>
    %287 = arith.mulf %285, %286 : vector<32x32xf32>
    %288 = vector.broadcast %269 : vector<1x32xf32> to vector<32x32xf32>
    %289 = arith.addf %287, %288 : vector<32x32xf32>
    %290 = arith.addf %289, %210 : vector<32x32xf32>
    %cst_140 = arith.constant 0.000000e+00 : f32
    %291 = vector.broadcast %cst_140 : f32 to vector<32x32xf32>
    %292 = arith.cmpf ogt, %290, %291 : vector<32x32xf32>
    %cst_141 = arith.constant 0.00999999977 : f32
    %293 = vector.broadcast %cst_141 : f32 to vector<32x32xf32>
    %294 = arith.mulf %293, %290 : vector<32x32xf32>
    %295 = arith.select %292, %290, %294 : vector<32x32xi1>, vector<32x32xf32>
    %c6 = arith.constant 6 : index
    %c0_142 = arith.constant 0 : index
    %c0_143 = arith.constant 0 : index
    %296 = vector.load %arg7[%c6, %c0_142, %c0_143] : memref<8x32x64xf32, #tpu.memory_space<vmem>>, vector<1x32x64xf32>
    %297 = vector.shape_cast %296 : vector<1x32x64xf32> to vector<32x64xf32>
    %c6_144 = arith.constant 6 : index
    %c0_145 = arith.constant 0 : index
    %c0_146 = arith.constant 0 : index
    %298 = vector.load %arg8[%c6_144, %c0_145, %c0_146] : memref<8x1x32xf32, #tpu.memory_space<vmem>>, vector<1x1x32xf32>
    %299 = vector.shape_cast %298 : vector<1x1x32xf32> to vector<1x32xf32>
    %cst_147 = arith.constant dense<0.000000e+00> : vector<32x64xf32>
    %300 = tpu.matmul %295, %297, %cst_147 {dimension_numbers = #tpu.dot_dimension_numbers<[1], [0], [0], [1], [0, 0, 1, 1], [], []>} : vector<32x32xf32>, vector<32x64xf32>, vector<32x64xf32> -> vector<32x64xf32>
    %301 = vector.extract_strided_slice %300 {offsets = [0, 0], sizes = [32, 32], strides = [1, 1]} : vector<32x64xf32> to vector<32x32xf32>
    %302 = vector.extract_strided_slice %300 {offsets = [0, 32], sizes = [32, 32], strides = [1, 1]} : vector<32x64xf32> to vector<32x32xf32>
    %303 = vector.broadcast %0 : vector<32x1xf32> to vector<32x32xf32>
    %304 = arith.mulf %303, %301 : vector<32x32xf32>
    %cst_148 = arith.constant dense<0.000000e+00> : vector<32x32xf32>
    %305 = tpu.matmul %1, %302, %cst_148 {dimension_numbers = #tpu.dot_dimension_numbers<[1], [0], [0], [1], [0, 0, 1, 1], [], []>} : vector<32x32xf32>, vector<32x32xf32>, vector<32x32xf32> -> vector<32x32xf32>
    %306 = arith.addf %304, %305 : vector<32x32xf32>
    %307 = vector.broadcast %299 : vector<1x32xf32> to vector<32x32xf32>
    %308 = arith.addf %306, %307 : vector<32x32xf32>
    %c6_149 = arith.constant 6 : index
    %c0_150 = arith.constant 0 : index
    %c0_151 = arith.constant 0 : index
    %309 = vector.load %arg9[%c6_149, %c0_150, %c0_151] : memref<8x1x32xf32, #tpu.memory_space<vmem>>, vector<1x1x32xf32>
    %310 = vector.shape_cast %309 : vector<1x1x32xf32> to vector<1x32xf32>
    %c6_152 = arith.constant 6 : index
    %c0_153 = arith.constant 0 : index
    %c0_154 = arith.constant 0 : index
    %311 = vector.load %arg10[%c6_152, %c0_153, %c0_154] : memref<8x1x32xf32, #tpu.memory_space<vmem>>, vector<1x1x32xf32>
    %312 = vector.shape_cast %311 : vector<1x1x32xf32> to vector<1x32xf32>
    %cst_155 = arith.constant dense<0.000000e+00> : vector<32xf32>
    %313 = vector.multi_reduction <add>, %308, %cst_155 [0] : vector<32x32xf32> to vector<32xf32>
    %314 = vector.shape_cast %313 : vector<32xf32> to vector<1x32xf32>
    %cst_156 = arith.constant 3.200000e+01 : f32
    %315 = vector.broadcast %cst_156 : f32 to vector<1x32xf32>
    %316 = arith.divf %314, %315 : vector<1x32xf32>
    %317 = vector.broadcast %316 : vector<1x32xf32> to vector<32x32xf32>
    %318 = arith.subf %308, %317 : vector<32x32xf32>
    %319 = arith.mulf %318, %318 : vector<32x32xf32>
    %cst_157 = arith.constant dense<0.000000e+00> : vector<32xf32>
    %320 = vector.multi_reduction <add>, %319, %cst_157 [0] : vector<32x32xf32> to vector<32xf32>
    %321 = vector.shape_cast %320 : vector<32xf32> to vector<1x32xf32>
    %cst_158 = arith.constant 3.200000e+01 : f32
    %322 = vector.broadcast %cst_158 : f32 to vector<1x32xf32>
    %323 = arith.divf %321, %322 : vector<1x32xf32>
    %cst_159 = arith.constant 9.99999974E-6 : f32
    %324 = vector.broadcast %cst_159 : f32 to vector<1x32xf32>
    %325 = arith.addf %323, %324 : vector<1x32xf32>
    %326 = math.rsqrt %325 : vector<1x32xf32>
    %327 = vector.broadcast %326 : vector<1x32xf32> to vector<32x32xf32>
    %328 = arith.mulf %318, %327 : vector<32x32xf32>
    %329 = vector.broadcast %310 : vector<1x32xf32> to vector<32x32xf32>
    %330 = arith.mulf %328, %329 : vector<32x32xf32>
    %331 = vector.broadcast %312 : vector<1x32xf32> to vector<32x32xf32>
    %332 = arith.addf %330, %331 : vector<32x32xf32>
    %cst_160 = arith.constant 0.000000e+00 : f32
    %333 = vector.broadcast %cst_160 : f32 to vector<32x32xf32>
    %334 = arith.cmpf ogt, %332, %333 : vector<32x32xf32>
    %cst_161 = arith.constant 0.00999999977 : f32
    %335 = vector.broadcast %cst_161 : f32 to vector<32x32xf32>
    %336 = arith.mulf %335, %332 : vector<32x32xf32>
    %337 = arith.select %334, %332, %336 : vector<32x32xi1>, vector<32x32xf32>
    %c7 = arith.constant 7 : index
    %c0_162 = arith.constant 0 : index
    %c0_163 = arith.constant 0 : index
    %338 = vector.load %arg7[%c7, %c0_162, %c0_163] : memref<8x32x64xf32, #tpu.memory_space<vmem>>, vector<1x32x64xf32>
    %339 = vector.shape_cast %338 : vector<1x32x64xf32> to vector<32x64xf32>
    %c7_164 = arith.constant 7 : index
    %c0_165 = arith.constant 0 : index
    %c0_166 = arith.constant 0 : index
    %340 = vector.load %arg8[%c7_164, %c0_165, %c0_166] : memref<8x1x32xf32, #tpu.memory_space<vmem>>, vector<1x1x32xf32>
    %341 = vector.shape_cast %340 : vector<1x1x32xf32> to vector<1x32xf32>
    %cst_167 = arith.constant dense<0.000000e+00> : vector<32x64xf32>
    %342 = tpu.matmul %337, %339, %cst_167 {dimension_numbers = #tpu.dot_dimension_numbers<[1], [0], [0], [1], [0, 0, 1, 1], [], []>} : vector<32x32xf32>, vector<32x64xf32>, vector<32x64xf32> -> vector<32x64xf32>
    %343 = vector.extract_strided_slice %342 {offsets = [0, 0], sizes = [32, 32], strides = [1, 1]} : vector<32x64xf32> to vector<32x32xf32>
    %344 = vector.extract_strided_slice %342 {offsets = [0, 32], sizes = [32, 32], strides = [1, 1]} : vector<32x64xf32> to vector<32x32xf32>
    %345 = vector.broadcast %0 : vector<32x1xf32> to vector<32x32xf32>
    %346 = arith.mulf %345, %343 : vector<32x32xf32>
    %cst_168 = arith.constant dense<0.000000e+00> : vector<32x32xf32>
    %347 = tpu.matmul %1, %344, %cst_168 {dimension_numbers = #tpu.dot_dimension_numbers<[1], [0], [0], [1], [0, 0, 1, 1], [], []>} : vector<32x32xf32>, vector<32x32xf32>, vector<32x32xf32> -> vector<32x32xf32>
    %348 = arith.addf %346, %347 : vector<32x32xf32>
    %349 = vector.broadcast %341 : vector<1x32xf32> to vector<32x32xf32>
    %350 = arith.addf %348, %349 : vector<32x32xf32>
    %c7_169 = arith.constant 7 : index
    %c0_170 = arith.constant 0 : index
    %c0_171 = arith.constant 0 : index
    %351 = vector.load %arg9[%c7_169, %c0_170, %c0_171] : memref<8x1x32xf32, #tpu.memory_space<vmem>>, vector<1x1x32xf32>
    %352 = vector.shape_cast %351 : vector<1x1x32xf32> to vector<1x32xf32>
    %c7_172 = arith.constant 7 : index
    %c0_173 = arith.constant 0 : index
    %c0_174 = arith.constant 0 : index
    %353 = vector.load %arg10[%c7_172, %c0_173, %c0_174] : memref<8x1x32xf32, #tpu.memory_space<vmem>>, vector<1x1x32xf32>
    %354 = vector.shape_cast %353 : vector<1x1x32xf32> to vector<1x32xf32>
    %cst_175 = arith.constant dense<0.000000e+00> : vector<32xf32>
    %355 = vector.multi_reduction <add>, %350, %cst_175 [0] : vector<32x32xf32> to vector<32xf32>
    %356 = vector.shape_cast %355 : vector<32xf32> to vector<1x32xf32>
    %cst_176 = arith.constant 3.200000e+01 : f32
    %357 = vector.broadcast %cst_176 : f32 to vector<1x32xf32>
    %358 = arith.divf %356, %357 : vector<1x32xf32>
    %359 = vector.broadcast %358 : vector<1x32xf32> to vector<32x32xf32>
    %360 = arith.subf %350, %359 : vector<32x32xf32>
    %361 = arith.mulf %360, %360 : vector<32x32xf32>
    %cst_177 = arith.constant dense<0.000000e+00> : vector<32xf32>
    %362 = vector.multi_reduction <add>, %361, %cst_177 [0] : vector<32x32xf32> to vector<32xf32>
    %363 = vector.shape_cast %362 : vector<32xf32> to vector<1x32xf32>
    %cst_178 = arith.constant 3.200000e+01 : f32
    %364 = vector.broadcast %cst_178 : f32 to vector<1x32xf32>
    %365 = arith.divf %363, %364 : vector<1x32xf32>
    %cst_179 = arith.constant 9.99999974E-6 : f32
    %366 = vector.broadcast %cst_179 : f32 to vector<1x32xf32>
    %367 = arith.addf %365, %366 : vector<1x32xf32>
    %368 = math.rsqrt %367 : vector<1x32xf32>
    %369 = vector.broadcast %368 : vector<1x32xf32> to vector<32x32xf32>
    %370 = arith.mulf %360, %369 : vector<32x32xf32>
    %371 = vector.broadcast %352 : vector<1x32xf32> to vector<32x32xf32>
    %372 = arith.mulf %370, %371 : vector<32x32xf32>
    %373 = vector.broadcast %354 : vector<1x32xf32> to vector<32x32xf32>
    %374 = arith.addf %372, %373 : vector<32x32xf32>
    %375 = arith.addf %374, %295 : vector<32x32xf32>
    %cst_180 = arith.constant 0.000000e+00 : f32
    %376 = vector.broadcast %cst_180 : f32 to vector<32x32xf32>
    %377 = arith.cmpf ogt, %375, %376 : vector<32x32xf32>
    %cst_181 = arith.constant 0.00999999977 : f32
    %378 = vector.broadcast %cst_181 : f32 to vector<32x32xf32>
    %379 = arith.mulf %378, %375 : vector<32x32xf32>
    %380 = arith.select %377, %375, %379 : vector<32x32xi1>, vector<32x32xf32>
    %c0_182 = arith.constant 0 : index
    %c0_183 = arith.constant 0 : index
    %381 = vector.load %arg11[%c0_182, %c0_183] : memref<32x8xf32, #tpu.memory_space<vmem>>, vector<32x8xf32>
    %c0_184 = arith.constant 0 : index
    %c0_185 = arith.constant 0 : index
    %382 = vector.load %arg12[%c0_184, %c0_185] : memref<1x4xf32, #tpu.memory_space<vmem>>, vector<1x4xf32>
    %cst_186 = arith.constant dense<0.000000e+00> : vector<32x8xf32>
    %383 = tpu.matmul %380, %381, %cst_186 {dimension_numbers = #tpu.dot_dimension_numbers<[1], [0], [0], [1], [0, 0, 1, 1], [], []>} : vector<32x32xf32>, vector<32x8xf32>, vector<32x8xf32> -> vector<32x8xf32>
    %384 = vector.extract_strided_slice %383 {offsets = [0, 0], sizes = [32, 4], strides = [1, 1]} : vector<32x8xf32> to vector<32x4xf32>
    %385 = vector.extract_strided_slice %383 {offsets = [0, 4], sizes = [32, 4], strides = [1, 1]} : vector<32x8xf32> to vector<32x4xf32>
    %386 = vector.broadcast %0 : vector<32x1xf32> to vector<32x4xf32>
    %387 = arith.mulf %386, %384 : vector<32x4xf32>
    %cst_187 = arith.constant dense<0.000000e+00> : vector<32x4xf32>
    %388 = tpu.matmul %1, %385, %cst_187 {dimension_numbers = #tpu.dot_dimension_numbers<[1], [0], [0], [1], [0, 0, 1, 1], [], []>} : vector<32x32xf32>, vector<32x4xf32>, vector<32x4xf32> -> vector<32x4xf32>
    %389 = arith.addf %387, %388 : vector<32x4xf32>
    %390 = vector.broadcast %382 : vector<1x4xf32> to vector<32x4xf32>
    %391 = arith.addf %389, %390 : vector<32x4xf32>
    %c0_188 = arith.constant 0 : index
    %c0_189 = arith.constant 0 : index
    %392 = vector.load %arg13[%c0_188, %c0_189] : memref<32x4xf32, #tpu.memory_space<vmem>>, vector<32x4xf32>
    tpu.vector_store %arg13[%c0_188, %c0_189], %391 {strides = array<i32>} : memref<32x4xf32, #tpu.memory_space<vmem>>, vector<32x4xf32>,
    return
  }
}

</mosaic_0001>

<llo_original>
// kernel: tile.8
$region0: #{tile.8}
  #allocation0 [shape = 's32[1]{0}', space=sflag, size = 0x4, scoped, tag = 'scoped memory for tile.8']
  %s0 = inlined_call_operand.vmem [shape: f32[16], index: 0, kind: input, shape index: {}]
  %s1 = inlined_call_operand.vmem [shape: f32[2,16], index: 1, kind: output, shape index: {}]
  // Predicated region
  $region2: #{tile.8} parent=0 // pred_check
    _
  $region3: #{tile.8} parent=0 // pred_check_branch
    %3 = sbr.rel (0) target = $region5
  $region4: #{tile.8} parent=0 // pred_region
    _
  $region5: #{tile.8} parent=0 // pred_fallthru
    _
  %v4 = vld [vmem:[%s0] ss:$0 sm:$0xff]
  %5 = vst [vmem:[%s1] sm:$0x3] %v4

// kernel: tile.0
$region0: #{tile.0}
  %s0 = inlined_call_operand.vmem [shape: f32[2,16], index: 0, kind: input, shape index: {}]
  %s1 = inlined_call_operand.vmem [shape: f32[32,1], index: 1, kind: output, shape index: {}]
  $region1: #{tile.0} parent=0
    #allocation0 [shape = 'u8[4096]{0}', space=vmem, size = 0x1000, scoped, tag = 'scoped mem for input reshape']
    %s3 = sshllo.u32 0, 2
    %v4 = vld [vmem:[%s0] sm:%s3]
    %5 = vst [vmem:[#allocation0] sm:%s3] %v4
    %v6 = vld [vmem:[#allocation0] sm:$0x3]
    %vm7 = vcmask 7168
    %8 = vst.msk [vmem:[%s1] ss:$16 sm:$0x3] %vm7, %v6
    %v9 = vld [vmem:[#allocation0] sm:$0x3]
    %10 = vrot.lane.b32.xlu0 %v9, 127
    %v11 = vpop.permute.xlu0 %10
    %vm12 = vcmask 7168
    %s13 = scalar_lea.vmem %s1, 1
    %14 = vst.msk [vmem:[%s13] ss:$16 sm:$0x3] %vm12, %v11
    %v15 = vld [vmem:[#allocation0] sm:$0x3]
    %16 = vrot.lane.b32.xlu0 %v15, 126
    %v17 = vpop.permute.xlu0 %16
    %vm18 = vcmask 7168
    %s19 = scalar_lea.vmem %s1, 2
    %20 = vst.msk [vmem:[%s19] ss:$16 sm:$0x3] %vm18, %v17
    %v21 = vld [vmem:[#allocation0] sm:$0x3]
    %22 = vrot.lane.b32.xlu0 %v21, 125
    %v23 = vpop.permute.xlu0 %22
    %vm24 = vcmask 7168
    %s25 = scalar_lea.vmem %s1, 3
    %26 = vst.msk [vmem:[%s25] ss:$16 sm:$0x3] %vm24, %v23
    %v27 = vld [vmem:[#allocation0] sm:$0x3]
    %28 = vrot.lane.b32.xlu0 %v27, 124
    %v29 = vpop.permute.xlu0 %28
    %vm30 = vcmask 7168
    %s31 = scalar_lea.vmem %s1, 4
    %32 = vst.msk [vmem:[%s31] ss:$16 sm:$0x3] %vm30, %v29
    %v33 = vld [vmem:[#allocation0] sm:$0x3]
    %34 = vrot.lane.b32.xlu0 %v33, 123
    %v35 = vpop.permute.xlu0 %34
    %vm36 = vcmask 7168
    %s37 = scalar_lea.vmem %s1, 5
    %38 = vst.msk [vmem:[%s37] ss:$16 sm:$0x3] %vm36, %v35
    %v39 = vld [vmem:[#allocation0] sm:$0x3]
    %40 = vrot.lane.b32.xlu0 %v39, 122
    %v41 = vpop.permute.xlu0 %40
    %vm42 = vcmask 7168
    %s43 = scalar_lea.vmem %s1, 6
    %44 = vst.msk [vmem:[%s43] ss:$16 sm:$0x3] %vm42, %v41
    %v45 = vld [vmem:[#allocation0] sm:$0x3]
    %46 = vrot.lane.b32.xlu0 %v45, 121
    %v47 = vpop.permute.xlu0 %46
    %vm48 = vcmask 7168
    %s49 = scalar_lea.vmem %s1, 7
    %50 = vst.msk [vmem:[%s49] ss:$16 sm:$0x3] %vm48, %v47
    %v51 = vld [vmem:[#allocation0] sm:$0x3]
    %52 = vrot.lane.b32.xlu0 %v51, 120
    %v53 = vpop.permute.xlu0 %52
    %vm54 = vcmask 7168
    %s55 = scalar_lea.vmem %s1, 8
    %56 = vst.msk [vmem:[%s55] ss:$16 sm:$0x3] %vm54, %v53
    %v57 = vld [vmem:[#allocation0] sm:$0x3]
    %58 = vrot.lane.b32.xlu0 %v57, 119
    %v59 = vpop.permute.xlu0 %58
    %vm60 = vcmask 7168
    %s61 = scalar_lea.vmem %s1, 9
    %62 = vst.msk [vmem:[%s61] ss:$16 sm:$0x3] %vm60, %v59
    %v63 = vld [vmem:[#allocation0] sm:$0x3]
    %64 = vrot.lane.b32.xlu0 %v63, 118
    %v65 = vpop.permute.xlu0 %64
    %vm66 = vcmask 7168
    %s67 = scalar_lea.vmem %s1, 10
    %68 = vst.msk [vmem:[%s67] ss:$16 sm:$0x3] %vm66, %v65
    %v69 = vld [vmem:[#allocation0] sm:$0x3]
    %70 = vrot.lane.b32.xlu0 %v69, 117
    %v71 = vpop.permute.xlu0 %70
    %vm72 = vcmask 7168
    %s73 = scalar_lea.vmem %s1, 11
    %74 = vst.msk [vmem:[%s73] ss:$16 sm:$0x3] %vm72, %v71
    %v75 = vld [vmem:[#allocation0] sm:$0x3]
    %76 = vrot.lane.b32.xlu0 %v75, 116
    %v77 = vpop.permute.xlu0 %76
    %vm78 = vcmask 7168
    %s79 = scalar_lea.vmem %s1, 12
    %80 = vst.msk [vmem:[%s79] ss:$16 sm:$0x3] %vm78, %v77
    %v81 = vld [vmem:[#allocation0] sm:$0x3]
    %82 = vrot.lane.b32.xlu0 %v81, 115
    %v83 = vpop.permute.xlu0 %82
    %vm84 = vcmask 7168
    %s85 = scalar_lea.vmem %s1, 13
    %86 = vst.msk [vmem:[%s85] ss:$16 sm:$0x3] %vm84, %v83
    %v87 = vld [vmem:[#allocation0] sm:$0x3]
    %88 = vrot.lane.b32.xlu0 %v87, 114
    %v89 = vpop.permute.xlu0 %88
    %vm90 = vcmask 7168
    %s91 = scalar_lea.vmem %s1, 14
    %92 = vst.msk [vmem:[%s91] ss:$16 sm:$0x3] %vm90, %v89
    %v93 = vld [vmem:[#allocation0] sm:$0x3]
    %94 = vrot.lane.b32.xlu0 %v93, 113
    %v95 = vpop.permute.xlu0 %94
    %vm96 = vcmask 7168
    %s97 = scalar_lea.vmem %s1, 15
    %98 = vst.msk [vmem:[%s97] ss:$16 sm:$0x3] %vm96, %v95

// kernel: res_semantic_gcn_forward.1
$region0: #{res_semantic_gcn_forward.1}
  #allocation0 [shape = 'u32[]', space=smem, size = 0x4, offset = 0x4, fixed_abs, tag = 'smem constant byte address 0x4 - core index']
  #allocation1 [shape = 'u32[144,128]{1,0:T(1,128)}', space=vmem, size = 0x12000, scoped, tag = 'internal scratch']
  %s0 = inlined_call_operand.vmem [shape: f32[32,4], index: 0, kind: input, shape index: {}]
  %s1 = inlined_call_operand.vmem [shape: f32[32,1], index: 1, kind: input, shape index: {}]
  %s2 = inlined_call_operand.vmem [shape: f32[32,32], index: 2, kind: input, shape index: {}]
  %s3 = inlined_call_operand.vmem [shape: f32[4,64], index: 3, kind: input, shape index: {}]
  %s4 = inlined_call_operand.vmem [shape: f32[1,32], index: 4, kind: input, shape index: {}]
  %s5 = inlined_call_operand.vmem [shape: f32[1,32], index: 5, kind: input, shape index: {}]
  %s6 = inlined_call_operand.vmem [shape: f32[1,32], index: 6, kind: input, shape index: {}]
  %s7 = inlined_call_operand.vmem [shape: f32[8,32,64], index: 7, kind: input, shape index: {}]
  %s8 = inlined_call_operand.vmem [shape: f32[8,1,32], index: 8, kind: input, shape index: {}]
  %s9 = inlined_call_operand.vmem [shape: f32[8,1,32], index: 9, kind: input, shape index: {}]
  %s10 = inlined_call_operand.vmem [shape: f32[8,1,32], index: 10, kind: input, shape index: {}]
  %s11 = inlined_call_operand.vmem [shape: f32[32,8], index: 11, kind: input, shape index: {}]
  %s12 = inlined_call_operand.vmem [shape: f32[1,4], index: 12, kind: input, shape index: {}]
  %s13 = inlined_call_operand.vmem [shape: f32[32,4], index: 13, kind: output, shape index: {}]
  %s14 = sld [smem:[#allocation0]]
  $region62: #{res_semantic_gcn_forward.1} parent=0
    _
  %s16 = ssub.s32 1, %s14
  %s17 = scalar_select 0, %s16, %s14
  // Predicated region
  $region2: #{res_semantic_gcn_forward.1} parent=0 // pred_check
    _
  $region3: #{res_semantic_gcn_forward.1} parent=0 // pred_check_branch
    %19 = sbr.rel (0) target = $region5
  $region4: #{res_semantic_gcn_forward.1} parent=0 // pred_region
    _
  $region5: #{res_semantic_gcn_forward.1} parent=0 // pred_fallthru
    _
  // Predicated region
  $region6: #{res_semantic_gcn_forward.1} parent=0 // pred_check
    _
  $region7: #{res_semantic_gcn_forward.1} parent=0 // pred_check_branch
    %21 = sbr.rel (0) target = $region9
  $region8: #{res_semantic_gcn_forward.1} parent=0 // pred_region
    _
  $region9: #{res_semantic_gcn_forward.1} parent=0 // pred_fallthru
    _
  // Predicated region
  $region10: #{res_semantic_gcn_forward.1} parent=0 // pred_check
    _
  $region11: #{res_semantic_gcn_forward.1} parent=0 // pred_check_branch
    %23 = sbr.rel (0) target = $region13
  $region12: #{res_semantic_gcn_forward.1} parent=0 // pred_region
    _
  $region13: #{res_semantic_gcn_forward.1} parent=0 // pred_fallthru
    _
  // Predicated region
  $region14: #{res_semantic_gcn_forward.1} parent=0 // pred_check
    _
  $region15: #{res_semantic_gcn_forward.1} parent=0 // pred_check_branch
    %25 = sbr.rel (0) target = $region17
  $region16: #{res_semantic_gcn_forward.1} parent=0 // pred_region
    _
  $region17: #{res_semantic_gcn_forward.1} parent=0 // pred_fallthru
    _
  // Predicated region
  $region18: #{res_semantic_gcn_forward.1} parent=0 // pred_check
    _
  $region19: #{res_semantic_gcn_forward.1} parent=0 // pred_check_branch
    %27 = sbr.rel (0) target = $region21
  $region20: #{res_semantic_gcn_forward.1} parent=0 // pred_region
    _
  $region21: #{res_semantic_gcn_forward.1} parent=0 // pred_fallthru
    _
  // Predicated region
  $region22: #{res_semantic_gcn_forward.1} parent=0 // pred_check
    _
  $region23: #{res_semantic_gcn_forward.1} parent=0 // pred_check_branch
    %29 = sbr.rel (0) target = $region25
  $region24: #{res_semantic_gcn_forward.1} parent=0 // pred_region
    _
  $region25: #{res_semantic_gcn_forward.1} parent=0 // pred_fallthru
    _
  // Predicated region
  $region26: #{res_semantic_gcn_forward.1} parent=0 // pred_check
    _
  $region27: #{res_semantic_gcn_forward.1} parent=0 // pred_check_branch
    %31 = sbr.rel (0) target = $region29
  $region28: #{res_semantic_gcn_forward.1} parent=0 // pred_region
    _
  $region29: #{res_semantic_gcn_forward.1} parent=0 // pred_fallthru
    _
  // Predicated region
  $region30: #{res_semantic_gcn_forward.1} parent=0 // pred_check
    _
  $region31: #{res_semantic_gcn_forward.1} parent=0 // pred_check_branch
    %33 = sbr.rel (0) target = $region33
  $region32: #{res_semantic_gcn_forward.1} parent=0 // pred_region
    _
  $region33: #{res_semantic_gcn_forward.1} parent=0 // pred_fallthru
    _
  // Predicated region
  $region34: #{res_semantic_gcn_forward.1} parent=0 // pred_check
    _
  $region35: #{res_semantic_gcn_forward.1} parent=0 // pred_check_branch
    %35 = sbr.rel (0) target = $region37
  $region36: #{res_semantic_gcn_forward.1} parent=0 // pred_region
    _
  $region37: #{res_semantic_gcn_forward.1} parent=0 // pred_fallthru
    _
  // Predicated region
  $region38: #{res_semantic_gcn_forward.1} parent=0 // pred_check
    _
  $region39: #{res_semantic_gcn_forward.1} parent=0 // pred_check_branch
    %37 = sbr.rel (0) target = $region41
  $region40: #{res_semantic_gcn_forward.1} parent=0 // pred_region
    _
  $region41: #{res_semantic_gcn_forward.1} parent=0 // pred_fallthru
    _
  // Predicated region
  $region42: #{res_semantic_gcn_forward.1} parent=0 // pred_check
    _
  $region43: #{res_semantic_gcn_forward.1} parent=0 // pred_check_branch
    %39 = sbr.rel (0) target = $region45
  $region44: #{res_semantic_gcn_forward.1} parent=0 // pred_region
    _
  $region45: #{res_semantic_gcn_forward.1} parent=0 // pred_fallthru
    _
  // Predicated region
  $region46: #{res_semantic_gcn_forward.1} parent=0 // pred_check
    _
  $region47: #{res_semantic_gcn_forward.1} parent=0 // pred_check_branch
    %41 = sbr.rel (0) target = $region49
  $region48: #{res_semantic_gcn_forward.1} parent=0 // pred_region
    _
  $region49: #{res_semantic_gcn_forward.1} parent=0 // pred_fallthru
    _
  // Predicated region
  $region50: #{res_semantic_gcn_forward.1} parent=0 // pred_check
    _
  $region51: #{res_semantic_gcn_forward.1} parent=0 // pred_check_branch
    %43 = sbr.rel (0) target = $region53
  $region52: #{res_semantic_gcn_forward.1} parent=0 // pred_region
    _
  $region53: #{res_semantic_gcn_forward.1} parent=0 // pred_fallthru
    _
  %v44 = vld [vmem:[%s1] sm:$0xff]
  %v45 = vld [vmem:[%s1 + $0x8] sm:$0xff]
  %v46 = vld [vmem:[%s1 + $0x10] sm:$0xff]
  %v47 = vld [vmem:[%s1 + $0x18] sm:$0xff]
  %v48 = vld [vmem:[%s2] sm:$0xff]
  %v49 = vld [vmem:[%s2 + $0x8] sm:$0xff]
  %v50 = vld [vmem:[%s2 + $0x10] sm:$0xff]
  %v51 = vld [vmem:[%s2 + $0x18] sm:$0xff]
  %v52 = vld [vmem:[%s0] sm:$0xff]
  %v53 = vld [vmem:[%s0 + $0x8] sm:$0xff]
  %v54 = vld [vmem:[%s0 + $0x10] sm:$0xff]
  %v55 = vld [vmem:[%s0 + $0x18] sm:$0xff]
  %v56 = vld [vmem:[%s3] sm:$0xf]
  %v57 = vld [vmem:[%s4] sm:$0x1]
  %vm58 = vcmask 31744
  %v60 = vsel %vm58, %v52, 0
  %v63 = vsel %vm58, %v53, 0
  %v66 = vsel %vm58, %v54, 0
  %v69 = vsel %vm58, %v55, 0
  %vm71 = vcmask 1043456
  %v73 = vsel %vm71, %v56, 0
  %75 = vmatprep.subr.mxu0 0.0
  %76 = vmatpush1.msra.mxu0 %v73
  %77 = vmatprep.subr.mxu0 0.0
  %78 = vmatpush1.msra.mxu0 0.0
  %79 = vmatprep.subr.mxu0 0.0
  %80 = vmatpush1.msra.mxu0 0.0
  %81 = vmatprep.subr.mxu0 0.0
  %82 = vmatpush1.msra.mxu0 0.0
  %83 = vmatprep.subr.mxu0 0.0
  %84 = vmatpush1.msra.mxu0 0.0
  %85 = vmatprep.subr.mxu0 0.0
  %86 = vmatpush1.msra.mxu0 0.0
  %87 = vmatprep.subr.mxu0 0.0
  %88 = vmatpush1.msra.mxu0 0.0
  %89 = vmatprep.subr.mxu0 0.0
  %90 = vmatpush1.msra.mxu0 0.0
  %91 = vmatprep.subr.mxu0 0.0
  %92 = vmatpush1.msra.mxu0 0.0
  %93 = vmatprep.subr.mxu0 0.0
  %94 = vmatpush1.msra.mxu0 0.0
  %95 = vmatprep.subr.mxu0 0.0
  %96 = vmatpush1.msra.mxu0 0.0
  %97 = vmatprep.subr.mxu0 0.0
  %98 = vmatpush1.msra.mxu0 0.0
  %99 = vmatprep.subr.mxu0 0.0
  %100 = vmatpush1.msra.mxu0 0.0
  %101 = vmatprep.subr.mxu0 0.0
  %102 = vmatpush1.msra.mxu0 0.0
  %103 = vmatprep.subr.mxu0 0.0
  %104 = vmatpush1.msra.mxu0 0.0
  %105 = vmatprep.subr.mxu0 0.0
  %106 = vmatpush1.msra.mxu0 0.0
  %107 = vmatprep.subr.mxu0 0.0
  %108 = vmatpush1.msra.mxu0 0.0
  %109 = vmatprep.subr.mxu0 0.0
  %110 = vmatpush1.msra.mxu0 0.0
  %111 = vmatprep.subr.mxu0 0.0
  %112 = vmatpush1.msra.mxu0 0.0
  %113 = vmatprep.subr.mxu0 0.0
  %114 = vmatpush1.msra.mxu0 0.0
  %115 = vmatprep.subr.mxu0 0.0
  %116 = vmatpush1.msra.mxu0 0.0
  %117 = vmatprep.subr.mxu0 0.0
  %118 = vmatpush1.msra.mxu0 0.0
  %119 = vmatprep.subr.mxu0 0.0
  %120 = vmatpush1.msra.mxu0 0.0
  %121 = vmatprep.subr.mxu0 0.0
  %122 = vmatpush1.msra.mxu0 0.0
  %123 = vmatprep.subr.mxu0 0.0
  %124 = vmatpush1.msra.mxu0 0.0
  %125 = vmatprep.subr.mxu0 0.0
  %126 = vmatpush1.msra.mxu0 0.0
  %127 = vmatprep.subr.mxu0 0.0
  %128 = vmatpush1.msra.mxu0 0.0
  %129 = vmatprep.subr.mxu0 0.0
  %130 = vmatpush1.msra.mxu0 0.0
  %131 = vmatprep.subr.mxu0 0.0
  %132 = vmatpush1.msra.mxu0 0.0
  %133 = vmatprep.subr.mxu0 0.0
  %134 = vmatpush1.msra.mxu0 0.0
  %135 = vmatprep.subr.mxu0 0.0
  %136 = vmatpush1.msra.mxu0 0.0
  %137 = vmatprep.subr.mxu0 0.0
  %138 = vmatpush1.msra.mxu0 0.0
  %139 = vmatprep.mubr.f32.mxu0 0.0
  %140 = vmatmul.mubr.f32.gmra.mrb[0].mxu0 %v60
  %v141 = vpop.f32.mrb[0].mxu0
  %v142 = vadd.f32 0.0, %v141
  %v143 = vpop.f32.mrb[0].mxu0
  %144 = vmatprep.mubr.f32.mxu0 0.0
  %145 = vmatmul.mubr.f32.gmra.mrb[0].mxu0 %v63
  %v146 = vpop.f32.mrb[0].mxu0
  %v147 = vadd.f32 0.0, %v146
  %v148 = vpop.f32.mrb[0].mxu0
  %149 = vmatprep.mubr.f32.mxu0 0.0
  %150 = vmatmul.mubr.f32.gmra.mrb[0].mxu0 %v66
  %v151 = vpop.f32.mrb[0].mxu0
  %v152 = vadd.f32 0.0, %v151
  %v153 = vpop.f32.mrb[0].mxu0
  %154 = vmatprep.mubr.f32.mxu0 0.0
  %155 = vmatmul.mubr.f32.gmra.mrb[0].mxu0 %v69
  %v156 = vpop.f32.mrb[0].mxu0
  %v157 = vadd.f32 0.0, %v156
  %v158 = vpop.f32.mrb[0].mxu0
  %159 = vdwg.mxu0
  %161 = vset.pattern.permute.xlu0 0
  %162 = vperm.xlu0 %161, %v44
  %v163 = vpop.permute.xlu0 %162
  %166 = vset.pattern.permute.xlu0 0
  %167 = vperm.xlu0 %166, %v45
  %v168 = vpop.permute.xlu0 %167
  %171 = vset.pattern.permute.xlu0 0
  %172 = vperm.xlu0 %171, %v46
  %v173 = vpop.permute.xlu0 %172
  %176 = vset.pattern.permute.xlu0 0
  %177 = vperm.xlu0 %176, %v47
  %v178 = vpop.permute.xlu0 %177
  %v180 = vmul.f32 %v163, %v142
  %v181 = vmul.f32 %v168, %v147
  %v182 = vmul.f32 %v173, %v152
  %v183 = vmul.f32 %v178, %v157
  %188 = vrot.lane.b32.xlu0 %v142, 96
  %v189 = vpop.permute.xlu0 %188
  %190 = vrot.lane.b32.xlu0 %v147, 96
  %v191 = vpop.permute.xlu0 %190
  %192 = vrot.lane.b32.xlu0 %v152, 96
  %v193 = vpop.permute.xlu0 %192
  %194 = vrot.lane.b32.xlu0 %v157, 96
  %v195 = vpop.permute.xlu0 %194
  %vm200 = vcmask 261120
  %v202 = vsel %vm200, %v48, 0
  %v205 = vsel %vm200, %v49, 0
  %v208 = vsel %vm200, %v50, 0
  %v211 = vsel %vm200, %v51, 0
  %213 = vmatprep.subr.mxu0 0.0
  %214 = vmatpush1.msra.mxu0 %v189
  %215 = vmatprep.subr.mxu0 0.0
  %216 = vmatpush1.msra.mxu0 %v191
  %217 = vmatprep.subr.mxu0 0.0
  %218 = vmatpush1.msra.mxu0 %v193
  %219 = vmatprep.subr.mxu0 0.0
  %220 = vmatpush1.msra.mxu0 %v195
  %221 = vmatprep.subr.mxu0 0.0
  %222 = vmatpush1.msra.mxu0 0.0
  %223 = vmatprep.subr.mxu0 0.0
  %224 = vmatpush1.msra.mxu0 0.0
  %225 = vmatprep.subr.mxu0 0.0
  %226 = vmatpush1.msra.mxu0 0.0
  %227 = vmatprep.subr.mxu0 0.0
  %228 = vmatpush1.msra.mxu0 0.0
  %229 = vmatprep.subr.mxu0 0.0
  %230 = vmatpush1.msra.mxu0 0.0
  %231 = vmatprep.subr.mxu0 0.0
  %232 = vmatpush1.msra.mxu0 0.0
  %233 = vmatprep.subr.mxu0 0.0
  %234 = vmatpush1.msra.mxu0 0.0
  %235 = vmatprep.subr.mxu0 0.0
  %236 = vmatpush1.msra.mxu0 0.0
  %237 = vmatprep.subr.mxu0 0.0
  %238 = vmatpush1.msra.mxu0 0.0
  %239 = vmatprep.subr.mxu0 0.0
  %240 = vmatpush1.msra.mxu0 0.0
  %241 = vmatprep.subr.mxu0 0.0
  %242 = vmatpush1.msra.mxu0 0.0
  %243 = vmatprep.subr.mxu0 0.0
  %244 = vmatpush1.msra.mxu0 0.0
  %245 = vmatprep.subr.mxu0 0.0
  %246 = vmatpush1.msra.mxu0 0.0
  %247 = vmatprep.subr.mxu0 0.0
  %248 = vmatpush1.msra.mxu0 0.0
  %249 = vmatprep.subr.mxu0 0.0
  %250 = vmatpush1.msra.mxu0 0.0
  %251 = vmatprep.subr.mxu0 0.0
  %252 = vmatpush1.msra.mxu0 0.0
  %253 = vmatprep.subr.mxu0 0.0
  %254 = vmatpush1.msra.mxu0 0.0
  %255 = vmatprep.subr.mxu0 0.0
  %256 = vmatpush1.msra.mxu0 0.0
  %257 = vmatprep.subr.mxu0 0.0
  %258 = vmatpush1.msra.mxu0 0.0
  %259 = vmatprep.subr.mxu0 0.0
  %260 = vmatpush1.msra.mxu0 0.0
  %261 = vmatprep.subr.mxu0 0.0
  %262 = vmatpush1.msra.mxu0 0.0
  %263 = vmatprep.subr.mxu0 0.0
  %264 = vmatpush1.msra.mxu0 0.0
  %265 = vmatprep.subr.mxu0 0.0
  %266 = vmatpush1.msra.mxu0 0.0
  %267 = vmatprep.subr.mxu0 0.0
  %268 = vmatpush1.msra.mxu0 0.0
  %269 = vmatprep.subr.mxu0 0.0
  %270 = vmatpush1.msra.mxu0 0.0
  %271 = vmatprep.subr.mxu0 0.0
  %272 = vmatpush1.msra.mxu0 0.0
  %273 = vmatprep.subr.mxu0 0.0
  %274 = vmatpush1.msra.mxu0 0.0
  %275 = vmatprep.subr.mxu0 0.0
  %276 = vmatpush1.msra.mxu0 0.0
  %277 = vmatprep.mubr.f32.mxu0 0.0
  %278 = vmatmul.mubr.f32.gmra.mrb[0].mxu0 %v202
  %v279 = vpop.f32.mrb[0].mxu0
  %v280 = vadd.f32 0.0, %v279
  %v281 = vpop.f32.mrb[0].mxu0
  %282 = vmatprep.mubr.f32.mxu0 0.0
  %283 = vmatmul.mubr.f32.gmra.mrb[0].mxu0 %v205
  %v284 = vpop.f32.mrb[0].mxu0
  %v285 = vadd.f32 0.0, %v284
  %v286 = vpop.f32.mrb[0].mxu0
  %287 = vmatprep.mubr.f32.mxu0 0.0
  %288 = vmatmul.mubr.f32.gmra.mrb[0].mxu0 %v208
  %v289 = vpop.f32.mrb[0].mxu0
  %v290 = vadd.f32 0.0, %v289
  %v291 = vpop.f32.mrb[0].mxu0
  %292 = vmatprep.mubr.f32.mxu0 0.0
  %293 = vmatmul.mubr.f32.gmra.mrb[0].mxu0 %v211
  %v294 = vpop.f32.mrb[0].mxu0
  %v295 = vadd.f32 0.0, %v294
  %v296 = vpop.f32.mrb[0].mxu0
  %297 = vdwg.mxu0
  %v298 = vadd.f32 %v180, %v280
  %v299 = vadd.f32 %v181, %v285
  %v300 = vadd.f32 %v182, %v290
  %v301 = vadd.f32 %v183, %v295
  %v303 = vlaneseq
  %v304 = vshrl.u32 %v303, 7
  %v305 = vsub.s32 0, %v304
  %v306 = vrot.slane %v57, %v305
  %v308 = vadd.f32 %v298, %v306
  %v309 = vadd.f32 %v299, %v306
  %v310 = vadd.f32 %v300, %v306
  %v311 = vadd.f32 %v301, %v306
  %v312 = vld [vmem:[%s5] sm:$0x1]
  %v313 = vld [vmem:[%s6] sm:$0x1]
  %v314 = vsel %vm200, %v308, 0.0
  %v315 = vsel %vm200, %v309, 0.0
  %v316 = vadd.f32 %v314, %v315
  %v317 = vsel %vm200, %v310, 0.0
  %v318 = vadd.f32 %v316, %v317
  %v319 = vsel %vm200, %v311, 0.0
  %v320 = vadd.f32 %v318, %v319
  %v321 = vrot.slane %v320, 4
  %v322 = vadd.f32 %v320, %v321
  %v323 = vrot.slane %v322, 2
  %v324 = vadd.f32 %v322, %v323
  %v325 = vrot.slane %v324, 1
  %v326 = vadd.f32 %v324, %v325
  %v327 = vrcp.pop 32.0
  %v328 = vmul.f32 %v326, %v327
  %v329 = vsub.f32 %v308, %v328
  %v330 = vsub.f32 %v309, %v328
  %v331 = vsub.f32 %v310, %v328
  %v332 = vsub.f32 %v311, %v328
  %v333 = vmul.f32 %v329, %v329
  %v334 = vmul.f32 %v330, %v330
  %v335 = vmul.f32 %v331, %v331
  %v336 = vmul.f32 %v332, %v332
  %v337 = vsel %vm200, %v333, 0.0
  %v338 = vsel %vm200, %v334, 0.0
  %v339 = vadd.f32 %v337, %v338
  %v340 = vsel %vm200, %v335, 0.0
  %v341 = vadd.f32 %v339, %v340
  %v342 = vsel %vm200, %v336, 0.0
  %v343 = vadd.f32 %v341, %v342
  %v344 = vrot.slane %v343, 4
  %v345 = vadd.f32 %v343, %v344
  %v346 = vrot.slane %v345, 2
  %v347 = vadd.f32 %v345, %v346
  %v348 = vrot.slane %v347, 1
  %v349 = vadd.f32 %v347, %v348
  %v350 = vmul.f32 %v349, %v327
  %v351 = vadd.f32 %v350, 1e-05
  %v352 = vrsqrt.pop %v351
  %v353 = vmul.f32 %v329, %v352
  %v354 = vmul.f32 %v330, %v352
  %v355 = vmul.f32 %v331, %v352
  %v356 = vmul.f32 %v332, %v352
  %v358 = vlaneseq
  %v359 = vshrl.u32 %v358, 7
  %v360 = vsub.s32 0, %v359
  %v361 = vrot.slane %v312, %v360
  %v363 = vmul.f32 %v353, %v361
  %v364 = vmul.f32 %v354, %v361
  %v365 = vmul.f32 %v355, %v361
  %v366 = vmul.f32 %v356, %v361
  %v368 = vlaneseq
  %v369 = vshrl.u32 %v368, 7
  %v370 = vsub.s32 0, %v369
  %v371 = vrot.slane %v313, %v370
  %v373 = vadd.f32 %v363, %v371
  %v374 = vadd.f32 %v364, %v371
  %v375 = vadd.f32 %v365, %v371
  %v376 = vadd.f32 %v366, %v371
  %vm377 = vcmp.gt.f32.partialorder %v373, 0.0
  %vm378 = vcmp.gt.f32.partialorder %v374, 0.0
  %vm379 = vcmp.gt.f32.partialorder %v375, 0.0
  %vm380 = vcmp.gt.f32.partialorder %v376, 0.0
  %v381 = vmul.f32 %v373, 0.01
  %v382 = vmul.f32 %v374, 0.01
  %v383 = vmul.f32 %v375, 0.01
  %v384 = vmul.f32 %v376, 0.01
  %v385 = vsel %vm377, %v373, %v381
  %v386 = vsel %vm378, %v374, %v382
  %v387 = vsel %vm379, %v375, %v383
  %v388 = vsel %vm380, %v376, %v384
  %v389 = vld [vmem:[%s7] sm:$0xff]
  %v390 = vld [vmem:[%s7 + $0x8] sm:$0xff]
  %v391 = vld [vmem:[%s7 + $0x10] sm:$0xff]
  %v392 = vld [vmem:[%s7 + $0x18] sm:$0xff]
  %v393 = vld [vmem:[%s8] sm:$0x1]
  %v395 = vsel %vm200, %v385, 0
  %v398 = vsel %vm200, %v386, 0
  %v401 = vsel %vm200, %v387, 0
  %v404 = vsel %vm200, %v388, 0
  %406 = vmatprep.subr.mxu0 0.0
  %407 = vmatpush1.msra.mxu0 %v389
  %408 = vmatprep.subr.mxu0 0.0
  %409 = vmatpush1.msra.mxu0 %v390
  %410 = vmatprep.subr.mxu0 0.0
  %411 = vmatpush1.msra.mxu0 %v391
  %412 = vmatprep.subr.mxu0 0.0
  %413 = vmatpush1.msra.mxu0 %v392
  %414 = vmatprep.subr.mxu0 0.0
  %415 = vmatpush1.msra.mxu0 0.0
  %416 = vmatprep.subr.mxu0 0.0
  %417 = vmatpush1.msra.mxu0 0.0
  %418 = vmatprep.subr.mxu0 0.0
  %419 = vmatpush1.msra.mxu0 0.0
  %420 = vmatprep.subr.mxu0 0.0
  %421 = vmatpush1.msra.mxu0 0.0
  %422 = vmatprep.subr.mxu0 0.0
  %423 = vmatpush1.msra.mxu0 0.0
  %424 = vmatprep.subr.mxu0 0.0
  %425 = vmatpush1.msra.mxu0 0.0
  %426 = vmatprep.subr.mxu0 0.0
  %427 = vmatpush1.msra.mxu0 0.0
  %428 = vmatprep.subr.mxu0 0.0
  %429 = vmatpush1.msra.mxu0 0.0
  %430 = vmatprep.subr.mxu0 0.0
  %431 = vmatpush1.msra.mxu0 0.0
  %432 = vmatprep.subr.mxu0 0.0
  %433 = vmatpush1.msra.mxu0 0.0
  %434 = vmatprep.subr.mxu0 0.0
  %435 = vmatpush1.msra.mxu0 0.0
  %436 = vmatprep.subr.mxu0 0.0
  %437 = vmatpush1.msra.mxu0 0.0
  %438 = vmatprep.subr.mxu0 0.0
  %439 = vmatpush1.msra.mxu0 0.0
  %440 = vmatprep.subr.mxu0 0.0
  %441 = vmatpush1.msra.mxu0 0.0
  %442 = vmatprep.subr.mxu0 0.0
  %443 = vmatpush1.msra.mxu0 0.0
  %444 = vmatprep.subr.mxu0 0.0
  %445 = vmatpush1.msra.mxu0 0.0
  %446 = vmatprep.subr.mxu0 0.0
  %447 = vmatpush1.msra.mxu0 0.0
  %448 = vmatprep.subr.mxu0 0.0
  %449 = vmatpush1.msra.mxu0 0.0
  %450 = vmatprep.subr.mxu0 0.0
  %451 = vmatpush1.msra.mxu0 0.0
  %452 = vmatprep.subr.mxu0 0.0
  %453 = vmatpush1.msra.mxu0 0.0
  %454 = vmatprep.subr.mxu0 0.0
  %455 = vmatpush1.msra.mxu0 0.0
  %456 = vmatprep.subr.mxu0 0.0
  %457 = vmatpush1.msra.mxu0 0.0
  %458 = vmatprep.subr.mxu0 0.0
  %459 = vmatpush1.msra.mxu0 0.0
  %460 = vmatprep.subr.mxu0 0.0
  %461 = vmatpush1.msra.mxu0 0.0
  %462 = vmatprep.subr.mxu0 0.0
  %463 = vmatpush1.msra.mxu0 0.0
  %464 = vmatprep.subr.mxu0 0.0
  %465 = vmatpush1.msra.mxu0 0.0
  %466 = vmatprep.subr.mxu0 0.0
  %467 = vmatpush1.msra.mxu0 0.0
  %468 = vmatprep.subr.mxu0 0.0
  %469 = vmatpush1.msra.mxu0 0.0
  %470 = vmatprep.mubr.f32.mxu0 0.0
  %471 = vmatmul.mubr.f32.gmra.mrb[0].mxu0 %v395
  %v472 = vpop.f32.mrb[0].mxu0
  %v473 = vadd.f32 0.0, %v472
  %v474 = vpop.f32.mrb[0].mxu0
  %475 = vmatprep.mubr.f32.mxu0 0.0
  %476 = vmatmul.mubr.f32.gmra.mrb[0].mxu0 %v398
  %v477 = vpop.f32.mrb[0].mxu0
  %v478 = vadd.f32 0.0, %v477
  %v479 = vpop.f32.mrb[0].mxu0
  %480 = vmatprep.mubr.f32.mxu0 0.0
  %481 = vmatmul.mubr.f32.gmra.mrb[0].mxu0 %v401
  %v482 = vpop.f32.mrb[0].mxu0
  %v483 = vadd.f32 0.0, %v482
  %v484 = vpop.f32.mrb[0].mxu0
  %485 = vmatprep.mubr.f32.mxu0 0.0
  %486 = vmatmul.mubr.f32.gmra.mrb[0].mxu0 %v404
  %v487 = vpop.f32.mrb[0].mxu0
  %v488 = vadd.f32 0.0, %v487
  %v489 = vpop.f32.mrb[0].mxu0
  %490 = vdwg.mxu0
  %v491 = vmul.f32 %v163, %v473
  %v492 = vmul.f32 %v168, %v478
  %v493 = vmul.f32 %v173, %v483
  %v494 = vmul.f32 %v178, %v488
  %499 = vrot.lane.b32.xlu0 %v473, 96
  %v500 = vpop.permute.xlu0 %499
  %501 = vrot.lane.b32.xlu0 %v478, 96
  %v502 = vpop.permute.xlu0 %501
  %503 = vrot.lane.b32.xlu0 %v483, 96
  %v504 = vpop.permute.xlu0 %503
  %505 = vrot.lane.b32.xlu0 %v488, 96
  %v506 = vpop.permute.xlu0 %505
  %511 = vmatprep.subr.mxu0 0.0
  %512 = vmatpush1.msra.mxu0 %v500
  %513 = vmatprep.subr.mxu0 0.0
  %514 = vmatpush1.msra.mxu0 %v502
  %515 = vmatprep.subr.mxu0 0.0
  %516 = vmatpush1.msra.mxu0 %v504
  %517 = vmatprep.subr.mxu0 0.0
  %518 = vmatpush1.msra.mxu0 %v506
  %519 = vmatprep.subr.mxu0 0.0
  %520 = vmatpush1.msra.mxu0 0.0
  %521 = vmatprep.subr.mxu0 0.0
  %522 = vmatpush1.msra.mxu0 0.0
  %523 = vmatprep.subr.mxu0 0.0
  %524 = vmatpush1.msra.mxu0 0.0
  %525 = vmatprep.subr.mxu0 0.0
  %526 = vmatpush1.msra.mxu0 0.0
  %527 = vmatprep.subr.mxu0 0.0
  %528 = vmatpush1.msra.mxu0 0.0
  %529 = vmatprep.subr.mxu0 0.0
  %530 = vmatpush1.msra.mxu0 0.0
  %531 = vmatprep.subr.mxu0 0.0
  %532 = vmatpush1.msra.mxu0 0.0
  %533 = vmatprep.subr.mxu0 0.0
  %534 = vmatpush1.msra.mxu0 0.0
  %535 = vmatprep.subr.mxu0 0.0
  %536 = vmatpush1.msra.mxu0 0.0
  %537 = vmatprep.subr.mxu0 0.0
  %538 = vmatpush1.msra.mxu0 0.0
  %539 = vmatprep.subr.mxu0 0.0
  %540 = vmatpush1.msra.mxu0 0.0
  %541 = vmatprep.subr.mxu0 0.0
  %542 = vmatpush1.msra.mxu0 0.0
  %543 = vmatprep.subr.mxu0 0.0
  %544 = vmatpush1.msra.mxu0 0.0
  %545 = vmatprep.subr.mxu0 0.0
  %546 = vmatpush1.msra.mxu0 0.0
  %547 = vmatprep.subr.mxu0 0.0
  %548 = vmatpush1.msra.mxu0 0.0
  %549 = vmatprep.subr.mxu0 0.0
  %550 = vmatpush1.msra.mxu0 0.0
  %551 = vmatprep.subr.mxu0 0.0
  %552 = vmatpush1.msra.mxu0 0.0
  %553 = vmatprep.subr.mxu0 0.0
  %554 = vmatpush1.msra.mxu0 0.0
  %555 = vmatprep.subr.mxu0 0.0
  %556 = vmatpush1.msra.mxu0 0.0
  %557 = vmatprep.subr.mxu0 0.0
  %558 = vmatpush1.msra.mxu0 0.0
  %559 = vmatprep.subr.mxu0 0.0
  %560 = vmatpush1.msra.mxu0 0.0
  %561 = vmatprep.subr.mxu0 0.0
  %562 = vmatpush1.msra.mxu0 0.0
  %563 = vmatprep.subr.mxu0 0.0
  %564 = vmatpush1.msra.mxu0 0.0
  %565 = vmatprep.subr.mxu0 0.0
  %566 = vmatpush1.msra.mxu0 0.0
  %567 = vmatprep.subr.mxu0 0.0
  %568 = vmatpush1.msra.mxu0 0.0
  %569 = vmatprep.subr.mxu0 0.0
  %570 = vmatpush1.msra.mxu0 0.0
  %571 = vmatprep.subr.mxu0 0.0
  %572 = vmatpush1.msra.mxu0 0.0
  %573 = vmatprep.subr.mxu0 0.0
  %574 = vmatpush1.msra.mxu0 0.0
  %575 = vmatprep.mubr.f32.mxu0 0.0
  %576 = vmatmul.mubr.f32.gmra.mrb[0].mxu0 %v202
  %v577 = vpop.f32.mrb[0].mxu0
  %v578 = vadd.f32 0.0, %v577
  %v579 = vpop.f32.mrb[0].mxu0
  %580 = vmatprep.mubr.f32.mxu0 0.0
  %581 = vmatmul.mubr.f32.gmra.mrb[0].mxu0 %v205
  %v582 = vpop.f32.mrb[0].mxu0
  %v583 = vadd.f32 0.0, %v582
  %v584 = vpop.f32.mrb[0].mxu0
  %585 = vmatprep.mubr.f32.mxu0 0.0
  %586 = vmatmul.mubr.f32.gmra.mrb[0].mxu0 %v208
  %v587 = vpop.f32.mrb[0].mxu0
  %v588 = vadd.f32 0.0, %v587
  %v589 = vpop.f32.mrb[0].mxu0
  %590 = vmatprep.mubr.f32.mxu0 0.0
  %591 = vmatmul.mubr.f32.gmra.mrb[0].mxu0 %v211
  %v592 = vpop.f32.mrb[0].mxu0
  %v593 = vadd.f32 0.0, %v592
  %v594 = vpop.f32.mrb[0].mxu0
  %595 = vdwg.mxu0
  %v596 = vadd.f32 %v491, %v578
  %v597 = vadd.f32 %v492, %v583
  %v598 = vadd.f32 %v493, %v588
  %v599 = vadd.f32 %v494, %v593
  %v601 = vlaneseq
  %v602 = vshrl.u32 %v601, 7
  %v603 = vsub.s32 0, %v602
  %v604 = vrot.slane %v393, %v603
  %v606 = vadd.f32 %v596, %v604
  %v607 = vadd.f32 %v597, %v604
  %v608 = vadd.f32 %v598, %v604
  %v609 = vadd.f32 %v599, %v604
  %v610 = vld [vmem:[%s9] sm:$0x1]
  %v611 = vld [vmem:[%s10] sm:$0x1]
  %v612 = vsel %vm200, %v606, 0.0
  %v613 = vsel %vm200, %v607, 0.0
  %v614 = vadd.f32 %v612, %v613
  %v615 = vsel %vm200, %v608, 0.0
  %v616 = vadd.f32 %v614, %v615
  %v617 = vsel %vm200, %v609, 0.0
  %v618 = vadd.f32 %v616, %v617
  %v619 = vrot.slane %v618, 4
  %v620 = vadd.f32 %v618, %v619
  %v621 = vrot.slane %v620, 2
  %v622 = vadd.f32 %v620, %v621
  %v623 = vrot.slane %v622, 1
  %v624 = vadd.f32 %v622, %v623
  %v625 = vmul.f32 %v624, %v327
  %v626 = vsub.f32 %v606, %v625
  %v627 = vsub.f32 %v607, %v625
  %v628 = vsub.f32 %v608, %v625
  %v629 = vsub.f32 %v609, %v625
  %v630 = vmul.f32 %v626, %v626
  %v631 = vmul.f32 %v627, %v627
  %v632 = vmul.f32 %v628, %v628
  %v633 = vmul.f32 %v629, %v629
  %v634 = vsel %vm200, %v630, 0.0
  %v635 = vsel %vm200, %v631, 0.0
  %v636 = vadd.f32 %v634, %v635
  %v637 = vsel %vm200, %v632, 0.0
  %v638 = vadd.f32 %v636, %v637
  %v639 = vsel %vm200, %v633, 0.0
  %v640 = vadd.f32 %v638, %v639
  %v641 = vrot.slane %v640, 4
  %v642 = vadd.f32 %v640, %v641
  %v643 = vrot.slane %v642, 2
  %v644 = vadd.f32 %v642, %v643
  %v645 = vrot.slane %v644, 1
  %v646 = vadd.f32 %v644, %v645
  %v647 = vmul.f32 %v646, %v327
  %v648 = vadd.f32 %v647, 1e-05
  %v649 = vrsqrt.pop %v648
  %v650 = vmul.f32 %v626, %v649
  %v651 = vmul.f32 %v627, %v649
  %v652 = vmul.f32 %v628, %v649
  %v653 = vmul.f32 %v629, %v649
  %v655 = vlaneseq
  %v656 = vshrl.u32 %v655, 7
  %v657 = vsub.s32 0, %v656
  %v658 = vrot.slane %v610, %v657
  %v660 = vmul.f32 %v650, %v658
  %v661 = vmul.f32 %v651, %v658
  %v662 = vmul.f32 %v652, %v658
  %v663 = vmul.f32 %v653, %v658
  %v665 = vlaneseq
  %v666 = vshrl.u32 %v665, 7
  %v667 = vsub.s32 0, %v666
  %v668 = vrot.slane %v611, %v667
  %v670 = vadd.f32 %v660, %v668
  %v671 = vadd.f32 %v661, %v668
  %v672 = vadd.f32 %v662, %v668
  %v673 = vadd.f32 %v663, %v668
  %vm674 = vcmp.gt.f32.partialorder %v670, 0.0
  %vm675 = vcmp.gt.f32.partialorder %v671, 0.0
  %vm676 = vcmp.gt.f32.partialorder %v672, 0.0
  %vm677 = vcmp.gt.f32.partialorder %v673, 0.0
  %v678 = vmul.f32 %v670, 0.01
  %v679 = vmul.f32 %v671, 0.01
  %v680 = vmul.f32 %v672, 0.01
  %v681 = vmul.f32 %v673, 0.01
  %v682 = vsel %vm674, %v670, %v678
  %v683 = vsel %vm675, %v671, %v679
  %v684 = vsel %vm676, %v672, %v680
  %v685 = vsel %vm677, %v673, %v681
  %s686 = scalar_lea.vmem %s7, 32
  %v687 = vld [vmem:[%s686] sm:$0xff]
  %v688 = vld [vmem:[%s686 + $0x8] sm:$0xff]
  %v689 = vld [vmem:[%s686 + $0x10] sm:$0xff]
  %v690 = vld [vmem:[%s686 + $0x18] sm:$0xff]
  %s691 = scalar_lea.vmem %s8, 1
  %v692 = vld [vmem:[%s691] sm:$0x1]
  %v694 = vsel %vm200, %v682, 0
  %v697 = vsel %vm200, %v683, 0
  %v700 = vsel %vm200, %v684, 0
  %v703 = vsel %vm200, %v685, 0
  %705 = vmatprep.subr.mxu0 0.0
  %706 = vmatpush1.msra.mxu0 %v687
  %707 = vmatprep.subr.mxu0 0.0
  %708 = vmatpush1.msra.mxu0 %v688
  %709 = vmatprep.subr.mxu0 0.0
  %710 = vmatpush1.msra.mxu0 %v689
  %711 = vmatprep.subr.mxu0 0.0
  %712 = vmatpush1.msra.mxu0 %v690
  %713 = vmatprep.subr.mxu0 0.0
  %714 = vmatpush1.msra.mxu0 0.0
  %715 = vmatprep.subr.mxu0 0.0
  %716 = vmatpush1.msra.mxu0 0.0
  %717 = vmatprep.subr.mxu0 0.0
  %718 = vmatpush1.msra.mxu0 0.0
  %719 = vmatprep.subr.mxu0 0.0
  %720 = vmatpush1.msra.mxu0 0.0
  %721 = vmatprep.subr.mxu0 0.0
  %722 = vmatpush1.msra.mxu0 0.0
  %723 = vmatprep.subr.mxu0 0.0
  %724 = vmatpush1.msra.mxu0 0.0
  %725 = vmatprep.subr.mxu0 0.0
  %726 = vmatpush1.msra.mxu0 0.0
  %727 = vmatprep.subr.mxu0 0.0
  %728 = vmatpush1.msra.mxu0 0.0
  %729 = vmatprep.subr.mxu0 0.0
  %730 = vmatpush1.msra.mxu0 0.0
  %731 = vmatprep.subr.mxu0 0.0
  %732 = vmatpush1.msra.mxu0 0.0
  %733 = vmatprep.subr.mxu0 0.0
  %734 = vmatpush1.msra.mxu0 0.0
  %735 = vmatprep.subr.mxu0 0.0
  %736 = vmatpush1.msra.mxu0 0.0
  %737 = vmatprep.subr.mxu0 0.0
  %738 = vmatpush1.msra.mxu0 0.0
  %739 = vmatprep.subr.mxu0 0.0
  %740 = vmatpush1.msra.mxu0 0.0
  %741 = vmatprep.subr.mxu0 0.0
  %742 = vmatpush1.msra.mxu0 0.0
  %743 = vmatprep.subr.mxu0 0.0
  %744 = vmatpush1.msra.mxu0 0.0
  %745 = vmatprep.subr.mxu0 0.0
  %746 = vmatpush1.msra.mxu0 0.0
  %747 = vmatprep.subr.mxu0 0.0
  %748 = vmatpush1.msra.mxu0 0.0
  %749 = vmatprep.subr.mxu0 0.0
  %750 = vmatpush1.msra.mxu0 0.0
  %751 = vmatprep.subr.mxu0 0.0
  %752 = vmatpush1.msra.mxu0 0.0
  %753 = vmatprep.subr.mxu0 0.0
  %754 = vmatpush1.msra.mxu0 0.0
  %755 = vmatprep.subr.mxu0 0.0
  %756 = vmatpush1.msra.mxu0 0.0
  %757 = vmatprep.subr.mxu0 0.0
  %758 = vmatpush1.msra.mxu0 0.0
  %759 = vmatprep.subr.mxu0 0.0
  %760 = vmatpush1.msra.mxu0 0.0
  %761 = vmatprep.subr.mxu0 0.0
  %762 = vmatpush1.msra.mxu0 0.0
  %763 = vmatprep.subr.mxu0 0.0
  %764 = vmatpush1.msra.mxu0 0.0
  %765 = vmatprep.subr.mxu0 0.0
  %766 = vmatpush1.msra.mxu0 0.0
  %767 = vmatprep.subr.mxu0 0.0
  %768 = vmatpush1.msra.mxu0 0.0
  %769 = vmatprep.mubr.f32.mxu0 0.0
  %770 = vmatmul.mubr.f32.gmra.mrb[0].mxu0 %v694
  %v771 = vpop.f32.mrb[0].mxu0
  %v772 = vadd.f32 0.0, %v771
  %v773 = vpop.f32.mrb[0].mxu0
  %774 = vmatprep.mubr.f32.mxu0 0.0
  %775 = vmatmul.mubr.f32.gmra.mrb[0].mxu0 %v697
  %v776 = vpop.f32.mrb[0].mxu0
  %v777 = vadd.f32 0.0, %v776
  %v778 = vpop.f32.mrb[0].mxu0
  %779 = vmatprep.mubr.f32.mxu0 0.0
  %780 = vmatmul.mubr.f32.gmra.mrb[0].mxu0 %v700
  %v781 = vpop.f32.mrb[0].mxu0
  %v782 = vadd.f32 0.0, %v781
  %v783 = vpop.f32.mrb[0].mxu0
  %784 = vmatprep.mubr.f32.mxu0 0.0
  %785 = vmatmul.mubr.f32.gmra.mrb[0].mxu0 %v703
  %v786 = vpop.f32.mrb[0].mxu0
  %v787 = vadd.f32 0.0, %v786
  %v788 = vpop.f32.mrb[0].mxu0
  %789 = vdwg.mxu0
  %v790 = vmul.f32 %v163, %v772
  %v791 = vmul.f32 %v168, %v777
  %v792 = vmul.f32 %v173, %v782
  %v793 = vmul.f32 %v178, %v787
  %798 = vrot.lane.b32.xlu0 %v772, 96
  %v799 = vpop.permute.xlu0 %798
  %800 = vrot.lane.b32.xlu0 %v777, 96
  %v801 = vpop.permute.xlu0 %800
  %802 = vrot.lane.b32.xlu0 %v782, 96
  %v803 = vpop.permute.xlu0 %802
  %804 = vrot.lane.b32.xlu0 %v787, 96
  %v805 = vpop.permute.xlu0 %804
  %810 = vmatprep.subr.mxu0 0.0
  %811 = vmatpush1.msra.mxu0 %v799
  %812 = vmatprep.subr.mxu0 0.0
  %813 = vmatpush1.msra.mxu0 %v801
  %814 = vmatprep.subr.mxu0 0.0
  %815 = vmatpush1.msra.mxu0 %v803
  %816 = vmatprep.subr.mxu0 0.0
  %817 = vmatpush1.msra.mxu0 %v805
  %818 = vmatprep.subr.mxu0 0.0
  %819 = vmatpush1.msra.mxu0 0.0
  %820 = vmatprep.subr.mxu0 0.0
  %821 = vmatpush1.msra.mxu0 0.0
  %822 = vmatprep.subr.mxu0 0.0
  %823 = vmatpush1.msra.mxu0 0.0
  %824 = vmatprep.subr.mxu0 0.0
  %825 = vmatpush1.msra.mxu0 0.0
  %826 = vmatprep.subr.mxu0 0.0
  %827 = vmatpush1.msra.mxu0 0.0
  %828 = vmatprep.subr.mxu0 0.0
  %829 = vmatpush1.msra.mxu0 0.0
  %830 = vmatprep.subr.mxu0 0.0
  %831 = vmatpush1.msra.mxu0 0.0
  %832 = vmatprep.subr.mxu0 0.0
  %833 = vmatpush1.msra.mxu0 0.0
  %834 = vmatprep.subr.mxu0 0.0
  %835 = vmatpush1.msra.mxu0 0.0
  %836 = vmatprep.subr.mxu0 0.0
  %837 = vmatpush1.msra.mxu0 0.0
  %838 = vmatprep.subr.mxu0 0.0
  %839 = vmatpush1.msra.mxu0 0.0
  %840 = vmatprep.subr.mxu0 0.0
  %841 = vmatpush1.msra.mxu0 0.0
  %842 = vmatprep.subr.mxu0 0.0
  %843 = vmatpush1.msra.mxu0 0.0
  %844 = vmatprep.subr.mxu0 0.0
  %845 = vmatpush1.msra.mxu0 0.0
  %846 = vmatprep.subr.mxu0 0.0
  %847 = vmatpush1.msra.mxu0 0.0
  %848 = vmatprep.subr.mxu0 0.0
  %849 = vmatpush1.msra.mxu0 0.0
  %850 = vmatprep.subr.mxu0 0.0
  %851 = vmatpush1.msra.mxu0 0.0
  %852 = vmatprep.subr.mxu0 0.0
  %853 = vmatpush1.msra.mxu0 0.0
  %854 = vmatprep.subr.mxu0 0.0
  %855 = vmatpush1.msra.mxu0 0.0
  %856 = vmatprep.subr.mxu0 0.0
  %857 = vmatpush1.msra.mxu0 0.0
  %858 = vmatprep.subr.mxu0 0.0
  %859 = vmatpush1.msra.mxu0 0.0
  %860 = vmatprep.subr.mxu0 0.0
  %861 = vmatpush1.msra.mxu0 0.0
  %862 = vmatprep.subr.mxu0 0.0
  %863 = vmatpush1.msra.mxu0 0.0
  %864 = vmatprep.subr.mxu0 0.0
  %865 = vmatpush1.msra.mxu0 0.0
  %866 = vmatprep.subr.mxu0 0.0
  %867 = vmatpush1.msra.mxu0 0.0
  %868 = vmatprep.subr.mxu0 0.0
  %869 = vmatpush1.msra.mxu0 0.0
  %870 = vmatprep.subr.mxu0 0.0
  %871 = vmatpush1.msra.mxu0 0.0
  %872 = vmatprep.subr.mxu0 0.0
  %873 = vmatpush1.msra.mxu0 0.0
  %874 = vmatprep.mubr.f32.mxu0 0.0
  %875 = vmatmul.mubr.f32.gmra.mrb[0].mxu0 %v202
  %v876 = vpop.f32.mrb[0].mxu0
  %v877 = vadd.f32 0.0, %v876
  %v878 = vpop.f32.mrb[0].mxu0
  %879 = vmatprep.mubr.f32.mxu0 0.0
  %880 = vmatmul.mubr.f32.gmra.mrb[0].mxu0 %v205
  %v881 = vpop.f32.mrb[0].mxu0
  %v882 = vadd.f32 0.0, %v881
  %v883 = vpop.f32.mrb[0].mxu0
  %884 = vmatprep.mubr.f32.mxu0 0.0
  %885 = vmatmul.mubr.f32.gmra.mrb[0].mxu0 %v208
  %v886 = vpop.f32.mrb[0].mxu0
  %v887 = vadd.f32 0.0, %v886
  %v888 = vpop.f32.mrb[0].mxu0
  %889 = vmatprep.mubr.f32.mxu0 0.0
  %890 = vmatmul.mubr.f32.gmra.mrb[0].mxu0 %v211
  %v891 = vpop.f32.mrb[0].mxu0
  %v892 = vadd.f32 0.0, %v891
  %v893 = vpop.f32.mrb[0].mxu0
  %894 = vdwg.mxu0
  %v895 = vadd.f32 %v790, %v877
  %v896 = vadd.f32 %v791, %v882
  %v897 = vadd.f32 %v792, %v887
  %v898 = vadd.f32 %v793, %v892
  %v900 = vlaneseq
  %v901 = vshrl.u32 %v900, 7
  %v902 = vsub.s32 0, %v901
  %v903 = vrot.slane %v692, %v902
  %v905 = vadd.f32 %v895, %v903
  %v906 = vadd.f32 %v896, %v903
  %v907 = vadd.f32 %v897, %v903
  %v908 = vadd.f32 %v898, %v903
  %s909 = scalar_lea.vmem %s9, 1
  %v910 = vld [vmem:[%s909] sm:$0x1]
  %s911 = scalar_lea.vmem %s10, 1
  %v912 = vld [vmem:[%s911] sm:$0x1]
  %v913 = vsel %vm200, %v905, 0.0
  %v914 = vsel %vm200, %v906, 0.0
  %v915 = vadd.f32 %v913, %v914
  %v916 = vsel %vm200, %v907, 0.0
  %v917 = vadd.f32 %v915, %v916
  %v918 = vsel %vm200, %v908, 0.0
  %v919 = vadd.f32 %v917, %v918
  %v920 = vrot.slane %v919, 4
  %v921 = vadd.f32 %v919, %v920
  %v922 = vrot.slane %v921, 2
  %v923 = vadd.f32 %v921, %v922
  %v924 = vrot.slane %v923, 1
  %v925 = vadd.f32 %v923, %v924
  %v926 = vmul.f32 %v925, %v327
  %v927 = vsub.f32 %v905, %v926
  %v928 = vsub.f32 %v906, %v926
  %v929 = vsub.f32 %v907, %v926
  %v930 = vsub.f32 %v908, %v926
  %v931 = vmul.f32 %v927, %v927
  %v932 = vmul.f32 %v928, %v928
  %v933 = vmul.f32 %v929, %v929
  %v934 = vmul.f32 %v930, %v930
  %v935 = vsel %vm200, %v931, 0.0
  %v936 = vsel %vm200, %v932, 0.0
  %v937 = vadd.f32 %v935, %v936
  %v938 = vsel %vm200, %v933, 0.0
  %v939 = vadd.f32 %v937, %v938
  %v940 = vsel %vm200, %v934, 0.0
  %v941 = vadd.f32 %v939, %v940
  %v942 = vrot.slane %v941, 4
  %v943 = vadd.f32 %v941, %v942
  %v944 = vrot.slane %v943, 2
  %v945 = vadd.f32 %v943, %v944
  %v946 = vrot.slane %v945, 1
  %v947 = vadd.f32 %v945, %v946
  %v948 = vmul.f32 %v947, %v327
  %v949 = vadd.f32 %v948, 1e-05
  %v950 = vrsqrt.pop %v949
  %v951 = vmul.f32 %v927, %v950
  %v952 = vmul.f32 %v928, %v950
  %v953 = vmul.f32 %v929, %v950
  %v954 = vmul.f32 %v930, %v950
  %v956 = vlaneseq
  %v957 = vshrl.u32 %v956, 7
  %v958 = vsub.s32 0, %v957
  %v959 = vrot.slane %v910, %v958
  %v961 = vmul.f32 %v951, %v959
  %v962 = vmul.f32 %v952, %v959
  %v963 = vmul.f32 %v953, %v959
  %v964 = vmul.f32 %v954, %v959
  %v966 = vlaneseq
  %v967 = vshrl.u32 %v966, 7
  %v968 = vsub.s32 0, %v967
  %v969 = vrot.slane %v912, %v968
  %v971 = vadd.f32 %v961, %v969
  %v972 = vadd.f32 %v962, %v969
  %v973 = vadd.f32 %v963, %v969
  %v974 = vadd.f32 %v964, %v969
  %v975 = vadd.f32 %v971, %v385
  %v976 = vadd.f32 %v972, %v386
  %v977 = vadd.f32 %v973, %v387
  %v978 = vadd.f32 %v974, %v388
  %vm979 = vcmp.gt.f32.partialorder %v975, 0.0
  %vm980 = vcmp.gt.f32.partialorder %v976, 0.0
  %vm981 = vcmp.gt.f32.partialorder %v977, 0.0
  %vm982 = vcmp.gt.f32.partialorder %v978, 0.0
  %v983 = vmul.f32 %v975, 0.01
  %v984 = vmul.f32 %v976, 0.01
  %v985 = vmul.f32 %v977, 0.01
  %v986 = vmul.f32 %v978, 0.01
  %v987 = vsel %vm979, %v975, %v983
  %v988 = vsel %vm980, %v976, %v984
  %v989 = vsel %vm981, %v977, %v985
  %v990 = vsel %vm982, %v978, %v986
  %s991 = scalar_lea.vmem %s7, 64
  %v992 = vld [vmem:[%s991] sm:$0xff]
  %v993 = vld [vmem:[%s991 + $0x8] sm:$0xff]
  %v994 = vld [vmem:[%s991 + $0x10] sm:$0xff]
  %v995 = vld [vmem:[%s991 + $0x18] sm:$0xff]
  %s996 = scalar_lea.vmem %s8, 2
  %v997 = vld [vmem:[%s996] sm:$0x1]
  %v999 = vsel %vm200, %v987, 0
  %v1002 = vsel %vm200, %v988, 0
  %v1005 = vsel %vm200, %v989, 0
  %v1008 = vsel %vm200, %v990, 0
  %1010 = vmatprep.subr.mxu0 0.0
  %1011 = vmatpush1.msra.mxu0 %v992
  %1012 = vmatprep.subr.mxu0 0.0
  %1013 = vmatpush1.msra.mxu0 %v993
  %1014 = vmatprep.subr.mxu0 0.0
  %1015 = vmatpush1.msra.mxu0 %v994
  %1016 = vmatprep.subr.mxu0 0.0
  %1017 = vmatpush1.msra.mxu0 %v995
  %1018 = vmatprep.subr.mxu0 0.0
  %1019 = vmatpush1.msra.mxu0 0.0
  %1020 = vmatprep.subr.mxu0 0.0
  %1021 = vmatpush1.msra.mxu0 0.0
  %1022 = vmatprep.subr.mxu0 0.0
  %1023 = vmatpush1.msra.mxu0 0.0
  %1024 = vmatprep.subr.mxu0 0.0
  %1025 = vmatpush1.msra.mxu0 0.0
  %1026 = vmatprep.subr.mxu0 0.0
  %1027 = vmatpush1.msra.mxu0 0.0
  %1028 = vmatprep.subr.mxu0 0.0
  %1029 = vmatpush1.msra.mxu0 0.0
  %1030 = vmatprep.subr.mxu0 0.0
  %1031 = vmatpush1.msra.mxu0 0.0
  %1032 = vmatprep.subr.mxu0 0.0
  %1033 = vmatpush1.msra.mxu0 0.0
  %1034 = vmatprep.subr.mxu0 0.0
  %1035 = vmatpush1.msra.mxu0 0.0
  %1036 = vmatprep.subr.mxu0 0.0
  %1037 = vmatpush1.msra.mxu0 0.0
  %1038 = vmatprep.subr.mxu0 0.0
  %1039 = vmatpush1.msra.mxu0 0.0
  %1040 = vmatprep.subr.mxu0 0.0
  %1041 = vmatpush1.msra.mxu0 0.0
  %1042 = vmatprep.subr.mxu0 0.0
  %1043 = vmatpush1.msra.mxu0 0.0
  %1044 = vmatprep.subr.mxu0 0.0
  %1045 = vmatpush1.msra.mxu0 0.0
  %1046 = vmatprep.subr.mxu0 0.0
  %1047 = vmatpush1.msra.mxu0 0.0
  %1048 = vmatprep.subr.mxu0 0.0
  %1049 = vmatpush1.msra.mxu0 0.0
  %1050 = vmatprep.subr.mxu0 0.0
  %1051 = vmatpush1.msra.mxu0 0.0
  %1052 = vmatprep.subr.mxu0 0.0
  %1053 = vmatpush1.msra.mxu0 0.0
  %1054 = vmatprep.subr.mxu0 0.0
  %1055 = vmatpush1.msra.mxu0 0.0
  %1056 = vmatprep.subr.mxu0 0.0
  %1057 = vmatpush1.msra.mxu0 0.0
  %1058 = vmatprep.subr.mxu0 0.0
  %1059 = vmatpush1.msra.mxu0 0.0
  %1060 = vmatprep.subr.mxu0 0.0
  %1061 = vmatpush1.msra.mxu0 0.0
  %1062 = vmatprep.subr.mxu0 0.0
  %1063 = vmatpush1.msra.mxu0 0.0
  %1064 = vmatprep.subr.mxu0 0.0
  %1065 = vmatpush1.msra.mxu0 0.0
  %1066 = vmatprep.subr.mxu0 0.0
  %1067 = vmatpush1.msra.mxu0 0.0
  %1068 = vmatprep.subr.mxu0 0.0
  %1069 = vmatpush1.msra.mxu0 0.0
  %1070 = vmatprep.subr.mxu0 0.0
  %1071 = vmatpush1.msra.mxu0 0.0
  %1072 = vmatprep.subr.mxu0 0.0
  %1073 = vmatpush1.msra.mxu0 0.0
  %1074 = vmatprep.mubr.f32.mxu0 0.0
  %1075 = vmatmul.mubr.f32.gmra.mrb[0].mxu0 %v999
  %v1076 = vpop.f32.mrb[0].mxu0
  %v1077 = vadd.f32 0.0, %v1076
  %v1078 = vpop.f32.mrb[0].mxu0
  %1079 = vmatprep.mubr.f32.mxu0 0.0
  %1080 = vmatmul.mubr.f32.gmra.mrb[0].mxu0 %v1002
  %v1081 = vpop.f32.mrb[0].mxu0
  %v1082 = vadd.f32 0.0, %v1081
  %v1083 = vpop.f32.mrb[0].mxu0
  %1084 = vmatprep.mubr.f32.mxu0 0.0
  %1085 = vmatmul.mubr.f32.gmra.mrb[0].mxu0 %v1005
  %v1086 = vpop.f32.mrb[0].mxu0
  %v1087 = vadd.f32 0.0, %v1086
  %v1088 = vpop.f32.mrb[0].mxu0
  %1089 = vmatprep.mubr.f32.mxu0 0.0
  %1090 = vmatmul.mubr.f32.gmra.mrb[0].mxu0 %v1008
  %v1091 = vpop.f32.mrb[0].mxu0
  %v1092 = vadd.f32 0.0, %v1091
  %v1093 = vpop.f32.mrb[0].mxu0
  %1094 = vdwg.mxu0
  %v1095 = vmul.f32 %v163, %v1077
  %v1096 = vmul.f32 %v168, %v1082
  %v1097 = vmul.f32 %v173, %v1087
  %v1098 = vmul.f32 %v178, %v1092
  %1103 = vrot.lane.b32.xlu0 %v1077, 96
  %v1104 = vpop.permute.xlu0 %1103
  %1105 = vrot.lane.b32.xlu0 %v1082, 96
  %v1106 = vpop.permute.xlu0 %1105
  %1107 = vrot.lane.b32.xlu0 %v1087, 96
  %v1108 = vpop.permute.xlu0 %1107
  %1109 = vrot.lane.b32.xlu0 %v1092, 96
  %v1110 = vpop.permute.xlu0 %1109
  %1115 = vmatprep.subr.mxu0 0.0
  %1116 = vmatpush1.msra.mxu0 %v1104
  %1117 = vmatprep.subr.mxu0 0.0
  %1118 = vmatpush1.msra.mxu0 %v1106
  %1119 = vmatprep.subr.mxu0 0.0
  %1120 = vmatpush1.msra.mxu0 %v1108
  %1121 = vmatprep.subr.mxu0 0.0
  %1122 = vmatpush1.msra.mxu0 %v1110
  %1123 = vmatprep.subr.mxu0 0.0
  %1124 = vmatpush1.msra.mxu0 0.0
  %1125 = vmatprep.subr.mxu0 0.0
  %1126 = vmatpush1.msra.mxu0 0.0
  %1127 = vmatprep.subr.mxu0 0.0
  %1128 = vmatpush1.msra.mxu0 0.0
  %1129 = vmatprep.subr.mxu0 0.0
  %1130 = vmatpush1.msra.mxu0 0.0
  %1131 = vmatprep.subr.mxu0 0.0
  %1132 = vmatpush1.msra.mxu0 0.0
  %1133 = vmatprep.subr.mxu0 0.0
  %1134 = vmatpush1.msra.mxu0 0.0
  %1135 = vmatprep.subr.mxu0 0.0
  %1136 = vmatpush1.msra.mxu0 0.0
  %1137 = vmatprep.subr.mxu0 0.0
  %1138 = vmatpush1.msra.mxu0 0.0
  %1139 = vmatprep.subr.mxu0 0.0
  %1140 = vmatpush1.msra.mxu0 0.0
  %1141 = vmatprep.subr.mxu0 0.0
  %1142 = vmatpush1.msra.mxu0 0.0
  %1143 = vmatprep.subr.mxu0 0.0
  %1144 = vmatpush1.msra.mxu0 0.0
  %1145 = vmatprep.subr.mxu0 0.0
  %1146 = vmatpush1.msra.mxu0 0.0
  %1147 = vmatprep.subr.mxu0 0.0
  %1148 = vmatpush1.msra.mxu0 0.0
  %1149 = vmatprep.subr.mxu0 0.0
  %1150 = vmatpush1.msra.mxu0 0.0
  %1151 = vmatprep.subr.mxu0 0.0
  %1152 = vmatpush1.msra.mxu0 0.0
  %1153 = vmatprep.subr.mxu0 0.0
  %1154 = vmatpush1.msra.mxu0 0.0
  %1155 = vmatprep.subr.mxu0 0.0
  %1156 = vmatpush1.msra.mxu0 0.0
  %1157 = vmatprep.subr.mxu0 0.0
  %1158 = vmatpush1.msra.mxu0 0.0
  %1159 = vmatprep.subr.mxu0 0.0
  %1160 = vmatpush1.msra.mxu0 0.0
  %1161 = vmatprep.subr.mxu0 0.0
  %1162 = vmatpush1.msra.mxu0 0.0
  %1163 = vmatprep.subr.mxu0 0.0
  %1164 = vmatpush1.msra.mxu0 0.0
  %1165 = vmatprep.subr.mxu0 0.0
  %1166 = vmatpush1.msra.mxu0 0.0
  %1167 = vmatprep.subr.mxu0 0.0
  %1168 = vmatpush1.msra.mxu0 0.0
  %1169 = vmatprep.subr.mxu0 0.0
  %1170 = vmatpush1.msra.mxu0 0.0
  %1171 = vmatprep.subr.mxu0 0.0
  %1172 = vmatpush1.msra.mxu0 0.0
  %1173 = vmatprep.subr.mxu0 0.0
  %1174 = vmatpush1.msra.mxu0 0.0
  %1175 = vmatprep.subr.mxu0 0.0
  %1176 = vmatpush1.msra.mxu0 0.0
  %1177 = vmatprep.subr.mxu0 0.0
  %1178 = vmatpush1.msra.mxu0 0.0
  %1179 = vmatprep.mubr.f32.mxu0 0.0
  %1180 = vmatmul.mubr.f32.gmra.mrb[0].mxu0 %v202
  %v1181 = vpop.f32.mrb[0].mxu0
  %v1182 = vadd.f32 0.0, %v1181
  %v1183 = vpop.f32.mrb[0].mxu0
  %1184 = vmatprep.mubr.f32.mxu0 0.0
  %1185 = vmatmul.mubr.f32.gmra.mrb[0].mxu0 %v205
  %v1186 = vpop.f32.mrb[0].mxu0
  %v1187 = vadd.f32 0.0, %v1186
  %v1188 = vpop.f32.mrb[0].mxu0
  %1189 = vmatprep.mubr.f32.mxu0 0.0
  %1190 = vmatmul.mubr.f32.gmra.mrb[0].mxu0 %v208
  %v1191 = vpop.f32.mrb[0].mxu0
  %v1192 = vadd.f32 0.0, %v1191
  %v1193 = vpop.f32.mrb[0].mxu0
  %1194 = vmatprep.mubr.f32.mxu0 0.0
  %1195 = vmatmul.mubr.f32.gmra.mrb[0].mxu0 %v211
  %v1196 = vpop.f32.mrb[0].mxu0
  %v1197 = vadd.f32 0.0, %v1196
  %v1198 = vpop.f32.mrb[0].mxu0
  %1199 = vdwg.mxu0
  %v1200 = vadd.f32 %v1095, %v1182
  %v1201 = vadd.f32 %v1096, %v1187
  %v1202 = vadd.f32 %v1097, %v1192
  %v1203 = vadd.f32 %v1098, %v1197
  %v1205 = vlaneseq
  %v1206 = vshrl.u32 %v1205, 7
  %v1207 = vsub.s32 0, %v1206
  %v1208 = vrot.slane %v997, %v1207
  %v1210 = vadd.f32 %v1200, %v1208
  %v1211 = vadd.f32 %v1201, %v1208
  %v1212 = vadd.f32 %v1202, %v1208
  %v1213 = vadd.f32 %v1203, %v1208
  %s1214 = scalar_lea.vmem %s9, 2
  %v1215 = vld [vmem:[%s1214] sm:$0x1]
  %s1216 = scalar_lea.vmem %s10, 2
  %v1217 = vld [vmem:[%s1216] sm:$0x1]
  %v1218 = vsel %vm200, %v1210, 0.0
  %v1219 = vsel %vm200, %v1211, 0.0
  %v1220 = vadd.f32 %v1218, %v1219
  %v1221 = vsel %vm200, %v1212, 0.0
  %v1222 = vadd.f32 %v1220, %v1221
  %v1223 = vsel %vm200, %v1213, 0.0
  %v1224 = vadd.f32 %v1222, %v1223
  %v1225 = vrot.slane %v1224, 4
  %v1226 = vadd.f32 %v1224, %v1225
  %v1227 = vrot.slane %v1226, 2
  %v1228 = vadd.f32 %v1226, %v1227
  %v1229 = vrot.slane %v1228, 1
  %v1230 = vadd.f32 %v1228, %v1229
  %v1231 = vmul.f32 %v1230, %v327
  %v1232 = vsub.f32 %v1210, %v1231
  %v1233 = vsub.f32 %v1211, %v1231
  %v1234 = vsub.f32 %v1212, %v1231
  %v1235 = vsub.f32 %v1213, %v1231
  %v1236 = vmul.f32 %v1232, %v1232
  %v1237 = vmul.f32 %v1233, %v1233
  %v1238 = vmul.f32 %v1234, %v1234
  %v1239 = vmul.f32 %v1235, %v1235
  %v1240 = vsel %vm200, %v1236, 0.0
  %v1241 = vsel %vm200, %v1237, 0.0
  %v1242 = vadd.f32 %v1240, %v1241
  %v1243 = vsel %vm200, %v1238, 0.0
  %v1244 = vadd.f32 %v1242, %v1243
  %v1245 = vsel %vm200, %v1239, 0.0
  %v1246 = vadd.f32 %v1244, %v1245
  %v1247 = vrot.slane %v1246, 4
  %v1248 = vadd.f32 %v1246, %v1247
  %v1249 = vrot.slane %v1248, 2
  %v1250 = vadd.f32 %v1248, %v1249
  %v1251 = vrot.slane %v1250, 1
  %v1252 = vadd.f32 %v1250, %v1251
  %v1253 = vmul.f32 %v1252, %v327
  %v1254 = vadd.f32 %v1253, 1e-05
  %v1255 = vrsqrt.pop %v1254
  %v1256 = vmul.f32 %v1232, %v1255
  %v1257 = vmul.f32 %v1233, %v1255
  %v1258 = vmul.f32 %v1234, %v1255
  %v1259 = vmul.f32 %v1235, %v1255
  %v1261 = vlaneseq
  %v1262 = vshrl.u32 %v1261, 7
  %v1263 = vsub.s32 0, %v1262
  %v1264 = vrot.slane %v1215, %v1263
  %v1266 = vmul.f32 %v1256, %v1264
  %v1267 = vmul.f32 %v1257, %v1264
  %v1268 = vmul.f32 %v1258, %v1264
  %v1269 = vmul.f32 %v1259, %v1264
  %v1271 = vlaneseq
  %v1272 = vshrl.u32 %v1271, 7
  %v1273 = vsub.s32 0, %v1272
  %v1274 = vrot.slane %v1217, %v1273
  %v1276 = vadd.f32 %v1266, %v1274
  %v1277 = vadd.f32 %v1267, %v1274
  %v1278 = vadd.f32 %v1268, %v1274
  %v1279 = vadd.f32 %v1269, %v1274
  %vm1280 = vcmp.gt.f32.partialorder %v1276, 0.0
  %vm1281 = vcmp.gt.f32.partialorder %v1277, 0.0
  %vm1282 = vcmp.gt.f32.partialorder %v1278, 0.0
  %vm1283 = vcmp.gt.f32.partialorder %v1279, 0.0
  %v1284 = vmul.f32 %v1276, 0.01
  %v1285 = vmul.f32 %v1277, 0.01
  %v1286 = vmul.f32 %v1278, 0.01
  %v1287 = vmul.f32 %v1279, 0.01
  %v1288 = vsel %vm1280, %v1276, %v1284
  %v1289 = vsel %vm1281, %v1277, %v1285
  %v1290 = vsel %vm1282, %v1278, %v1286
  %v1291 = vsel %vm1283, %v1279, %v1287
  %s1292 = scalar_lea.vmem %s7, 96
  %v1293 = vld [vmem:[%s1292] sm:$0xff]
  %v1294 = vld [vmem:[%s1292 + $0x8] sm:$0xff]
  %v1295 = vld [vmem:[%s1292 + $0x10] sm:$0xff]
  %v1296 = vld [vmem:[%s1292 + $0x18] sm:$0xff]
  %s1297 = scalar_lea.vmem %s8, 3
  %v1298 = vld [vmem:[%s1297] sm:$0x1]
  %v1300 = vsel %vm200, %v1288, 0
  %v1303 = vsel %vm200, %v1289, 0
  %v1306 = vsel %vm200, %v1290, 0
  %v1309 = vsel %vm200, %v1291, 0
  %1311 = vmatprep.subr.mxu0 0.0
  %1312 = vmatpush1.msra.mxu0 %v1293
  %1313 = vmatprep.subr.mxu0 0.0
  %1314 = vmatpush1.msra.mxu0 %v1294
  %1315 = vmatprep.subr.mxu0 0.0
  %1316 = vmatpush1.msra.mxu0 %v1295
  %1317 = vmatprep.subr.mxu0 0.0
  %1318 = vmatpush1.msra.mxu0 %v1296
  %1319 = vmatprep.subr.mxu0 0.0
  %1320 = vmatpush1.msra.mxu0 0.0
  %1321 = vmatprep.subr.mxu0 0.0
  %1322 = vmatpush1.msra.mxu0 0.0
  %1323 = vmatprep.subr.mxu0 0.0
  %1324 = vmatpush1.msra.mxu0 0.0
  %1325 = vmatprep.subr.mxu0 0.0
  %1326 = vmatpush1.msra.mxu0 0.0
  %1327 = vmatprep.subr.mxu0 0.0
  %1328 = vmatpush1.msra.mxu0 0.0
  %1329 = vmatprep.subr.mxu0 0.0
  %1330 = vmatpush1.msra.mxu0 0.0
  %1331 = vmatprep.subr.mxu0 0.0
  %1332 = vmatpush1.msra.mxu0 0.0
  %1333 = vmatprep.subr.mxu0 0.0
  %1334 = vmatpush1.msra.mxu0 0.0
  %1335 = vmatprep.subr.mxu0 0.0
  %1336 = vmatpush1.msra.mxu0 0.0
  %1337 = vmatprep.subr.mxu0 0.0
  %1338 = vmatpush1.msra.mxu0 0.0
  %1339 = vmatprep.subr.mxu0 0.0
  %1340 = vmatpush1.msra.mxu0 0.0
  %1341 = vmatprep.subr.mxu0 0.0
  %1342 = vmatpush1.msra.mxu0 0.0
  %1343 = vmatprep.subr.mxu0 0.0
  %1344 = vmatpush1.msra.mxu0 0.0
  %1345 = vmatprep.subr.mxu0 0.0
  %1346 = vmatpush1.msra.mxu0 0.0
  %1347 = vmatprep.subr.mxu0 0.0
  %1348 = vmatpush1.msra.mxu0 0.0
  %1349 = vmatprep.subr.mxu0 0.0
  %1350 = vmatpush1.msra.mxu0 0.0
  %1351 = vmatprep.subr.mxu0 0.0
  %1352 = vmatpush1.msra.mxu0 0.0
  %1353 = vmatprep.subr.mxu0 0.0
  %1354 = vmatpush1.msra.mxu0 0.0
  %1355 = vmatprep.subr.mxu0 0.0
  %1356 = vmatpush1.msra.mxu0 0.0
  %1357 = vmatprep.subr.mxu0 0.0
  %1358 = vmatpush1.msra.mxu0 0.0
  %1359 = vmatprep.subr.mxu0 0.0
  %1360 = vmatpush1.msra.mxu0 0.0
  %1361 = vmatprep.subr.mxu0 0.0
  %1362 = vmatpush1.msra.mxu0 0.0
  %1363 = vmatprep.subr.mxu0 0.0
  %1364 = vmatpush1.msra.mxu0 0.0
  %1365 = vmatprep.subr.mxu0 0.0
  %1366 = vmatpush1.msra.mxu0 0.0
  %1367 = vmatprep.subr.mxu0 0.0
  %1368 = vmatpush1.msra.mxu0 0.0
  %1369 = vmatprep.subr.mxu0 0.0
  %1370 = vmatpush1.msra.mxu0 0.0
  %1371 = vmatprep.subr.mxu0 0.0
  %1372 = vmatpush1.msra.mxu0 0.0
  %1373 = vmatprep.subr.mxu0 0.0
  %1374 = vmatpush1.msra.mxu0 0.0
  %1375 = vmatprep.mubr.f32.mxu0 0.0
  %1376 = vmatmul.mubr.f32.gmra.mrb[0].mxu0 %v1300
  %v1377 = vpop.f32.mrb[0].mxu0
  %v1378 = vadd.f32 0.0, %v1377
  %v1379 = vpop.f32.mrb[0].mxu0
  %1380 = vmatprep.mubr.f32.mxu0 0.0
  %1381 = vmatmul.mubr.f32.gmra.mrb[0].mxu0 %v1303
  %v1382 = vpop.f32.mrb[0].mxu0
  %v1383 = vadd.f32 0.0, %v1382
  %v1384 = vpop.f32.mrb[0].mxu0
  %1385 = vmatprep.mubr.f32.mxu0 0.0
  %1386 = vmatmul.mubr.f32.gmra.mrb[0].mxu0 %v1306
  %v1387 = vpop.f32.mrb[0].mxu0
  %v1388 = vadd.f32 0.0, %v1387
  %v1389 = vpop.f32.mrb[0].mxu0
  %1390 = vmatprep.mubr.f32.mxu0 0.0
  %1391 = vmatmul.mubr.f32.gmra.mrb[0].mxu0 %v1309
  %v1392 = vpop.f32.mrb[0].mxu0
  %v1393 = vadd.f32 0.0, %v1392
  %v1394 = vpop.f32.mrb[0].mxu0
  %1395 = vdwg.mxu0
  %v1396 = vmul.f32 %v163, %v1378
  %v1397 = vmul.f32 %v168, %v1383
  %v1398 = vmul.f32 %v173, %v1388
  %v1399 = vmul.f32 %v178, %v1393
  %1404 = vrot.lane.b32.xlu0 %v1378, 96
  %v1405 = vpop.permute.xlu0 %1404
  %1406 = vrot.lane.b32.xlu0 %v1383, 96
  %v1407 = vpop.permute.xlu0 %1406
  %1408 = vrot.lane.b32.xlu0 %v1388, 96
  %v1409 = vpop.permute.xlu0 %1408
  %1410 = vrot.lane.b32.xlu0 %v1393, 96
  %v1411 = vpop.permute.xlu0 %1410
  %1416 = vmatprep.subr.mxu0 0.0
  %1417 = vmatpush1.msra.mxu0 %v1405
  %1418 = vmatprep.subr.mxu0 0.0
  %1419 = vmatpush1.msra.mxu0 %v1407
  %1420 = vmatprep.subr.mxu0 0.0
  %1421 = vmatpush1.msra.mxu0 %v1409
  %1422 = vmatprep.subr.mxu0 0.0
  %1423 = vmatpush1.msra.mxu0 %v1411
  %1424 = vmatprep.subr.mxu0 0.0
  %1425 = vmatpush1.msra.mxu0 0.0
  %1426 = vmatprep.subr.mxu0 0.0
  %1427 = vmatpush1.msra.mxu0 0.0
  %1428 = vmatprep.subr.mxu0 0.0
  %1429 = vmatpush1.msra.mxu0 0.0
  %1430 = vmatprep.subr.mxu0 0.0
  %1431 = vmatpush1.msra.mxu0 0.0
  %1432 = vmatprep.subr.mxu0 0.0
  %1433 = vmatpush1.msra.mxu0 0.0
  %1434 = vmatprep.subr.mxu0 0.0
  %1435 = vmatpush1.msra.mxu0 0.0
  %1436 = vmatprep.subr.mxu0 0.0
  %1437 = vmatpush1.msra.mxu0 0.0
  %1438 = vmatprep.subr.mxu0 0.0
  %1439 = vmatpush1.msra.mxu0 0.0
  %1440 = vmatprep.subr.mxu0 0.0
  %1441 = vmatpush1.msra.mxu0 0.0
  %1442 = vmatprep.subr.mxu0 0.0
  %1443 = vmatpush1.msra.mxu0 0.0
  %1444 = vmatprep.subr.mxu0 0.0
  %1445 = vmatpush1.msra.mxu0 0.0
  %1446 = vmatprep.subr.mxu0 0.0
  %1447 = vmatpush1.msra.mxu0 0.0
  %1448 = vmatprep.subr.mxu0 0.0
  %1449 = vmatpush1.msra.mxu0 0.0
  %1450 = vmatprep.subr.mxu0 0.0
  %1451 = vmatpush1.msra.mxu0 0.0
  %1452 = vmatprep.subr.mxu0 0.0
  %1453 = vmatpush1.msra.mxu0 0.0
  %1454 = vmatprep.subr.mxu0 0.0
  %1455 = vmatpush1.msra.mxu0 0.0
  %1456 = vmatprep.subr.mxu0 0.0
  %1457 = vmatpush1.msra.mxu0 0.0
  %1458 = vmatprep.subr.mxu0 0.0
  %1459 = vmatpush1.msra.mxu0 0.0
  %1460 = vmatprep.subr.mxu0 0.0
  %1461 = vmatpush1.msra.mxu0 0.0
  %1462 = vmatprep.subr.mxu0 0.0
  %1463 = vmatpush1.msra.mxu0 0.0
  %1464 = vmatprep.subr.mxu0 0.0
  %1465 = vmatpush1.msra.mxu0 0.0
  %1466 = vmatprep.subr.mxu0 0.0
  %1467 = vmatpush1.msra.mxu0 0.0
  %1468 = vmatprep.subr.mxu0 0.0
  %1469 = vmatpush1.msra.mxu0 0.0
  %1470 = vmatprep.subr.mxu0 0.0
  %1471 = vmatpush1.msra.mxu0 0.0
  %1472 = vmatprep.subr.mxu0 0.0
  %1473 = vmatpush1.msra.mxu0 0.0
  %1474 = vmatprep.subr.mxu0 0.0
  %1475 = vmatpush1.msra.mxu0 0.0
  %1476 = vmatprep.subr.mxu0 0.0
  %1477 = vmatpush1.msra.mxu0 0.0
  %1478 = vmatprep.subr.mxu0 0.0
  %1479 = vmatpush1.msra.mxu0 0.0
  %1480 = vmatprep.mubr.f32.mxu0 0.0
  %1481 = vmatmul.mubr.f32.gmra.mrb[0].mxu0 %v202
  %v1482 = vpop.f32.mrb[0].mxu0
  %v1483 = vadd.f32 0.0, %v1482
  %v1484 = vpop.f32.mrb[0].mxu0
  %1485 = vmatprep.mubr.f32.mxu0 0.0
  %1486 = vmatmul.mubr.f32.gmra.mrb[0].mxu0 %v205
  %v1487 = vpop.f32.mrb[0].mxu0
  %v1488 = vadd.f32 0.0, %v1487
  %v1489 = vpop.f32.mrb[0].mxu0
  %1490 = vmatprep.mubr.f32.mxu0 0.0
  %1491 = vmatmul.mubr.f32.gmra.mrb[0].mxu0 %v208
  %v1492 = vpop.f32.mrb[0].mxu0
  %v1493 = vadd.f32 0.0, %v1492
  %v1494 = vpop.f32.mrb[0].mxu0
  %1495 = vmatprep.mubr.f32.mxu0 0.0
  %1496 = vmatmul.mubr.f32.gmra.mrb[0].mxu0 %v211
  %v1497 = vpop.f32.mrb[0].mxu0
  %v1498 = vadd.f32 0.0, %v1497
  %v1499 = vpop.f32.mrb[0].mxu0
  %1500 = vdwg.mxu0
  %v1501 = vadd.f32 %v1396, %v1483
  %v1502 = vadd.f32 %v1397, %v1488
  %v1503 = vadd.f32 %v1398, %v1493
  %v1504 = vadd.f32 %v1399, %v1498
  %v1506 = vlaneseq
  %v1507 = vshrl.u32 %v1506, 7
  %v1508 = vsub.s32 0, %v1507
  %v1509 = vrot.slane %v1298, %v1508
  %v1511 = vadd.f32 %v1501, %v1509
  %v1512 = vadd.f32 %v1502, %v1509
  %v1513 = vadd.f32 %v1503, %v1509
  %v1514 = vadd.f32 %v1504, %v1509
  %s1515 = scalar_lea.vmem %s9, 3
  %v1516 = vld [vmem:[%s1515] sm:$0x1]
  %s1517 = scalar_lea.vmem %s10, 3
  %v1518 = vld [vmem:[%s1517] sm:$0x1]
  %v1519 = vsel %vm200, %v1511, 0.0
  %v1520 = vsel %vm200, %v1512, 0.0
  %v1521 = vadd.f32 %v1519, %v1520
  %v1522 = vsel %vm200, %v1513, 0.0
  %v1523 = vadd.f32 %v1521, %v1522
  %v1524 = vsel %vm200, %v1514, 0.0
  %v1525 = vadd.f32 %v1523, %v1524
  %v1526 = vrot.slane %v1525, 4
  %v1527 = vadd.f32 %v1525, %v1526
  %v1528 = vrot.slane %v1527, 2
  %v1529 = vadd.f32 %v1527, %v1528
  %v1530 = vrot.slane %v1529, 1
  %v1531 = vadd.f32 %v1529, %v1530
  %v1532 = vmul.f32 %v1531, %v327
  %v1533 = vsub.f32 %v1511, %v1532
  %v1534 = vsub.f32 %v1512, %v1532
  %v1535 = vsub.f32 %v1513, %v1532
  %v1536 = vsub.f32 %v1514, %v1532
  %v1537 = vmul.f32 %v1533, %v1533
  %v1538 = vmul.f32 %v1534, %v1534
  %v1539 = vmul.f32 %v1535, %v1535
  %v1540 = vmul.f32 %v1536, %v1536
  %v1541 = vsel %vm200, %v1537, 0.0
  %v1542 = vsel %vm200, %v1538, 0.0
  %v1543 = vadd.f32 %v1541, %v1542
  %v1544 = vsel %vm200, %v1539, 0.0
  %v1545 = vadd.f32 %v1543, %v1544
  %v1546 = vsel %vm200, %v1540, 0.0
  %v1547 = vadd.f32 %v1545, %v1546
  %v1548 = vrot.slane %v1547, 4
  %v1549 = vadd.f32 %v1547, %v1548
  %v1550 = vrot.slane %v1549, 2
  %v1551 = vadd.f32 %v1549, %v1550
  %v1552 = vrot.slane %v1551, 1
  %v1553 = vadd.f32 %v1551, %v1552
  %v1554 = vmul.f32 %v1553, %v327
  %v1555 = vadd.f32 %v1554, 1e-05
  %v1556 = vrsqrt.pop %v1555
  %v1557 = vmul.f32 %v1533, %v1556
  %v1558 = vmul.f32 %v1534, %v1556
  %v1559 = vmul.f32 %v1535, %v1556
  %v1560 = vmul.f32 %v1536, %v1556
  %v1562 = vlaneseq
  %v1563 = vshrl.u32 %v1562, 7
  %v1564 = vsub.s32 0, %v1563
  %v1565 = vrot.slane %v1516, %v1564
  %v1567 = vmul.f32 %v1557, %v1565
  %v1568 = vmul.f32 %v1558, %v1565
  %v1569 = vmul.f32 %v1559, %v1565
  %v1570 = vmul.f32 %v1560, %v1565
  %v1572 = vlaneseq
  %v1573 = vshrl.u32 %v1572, 7
  %v1574 = vsub.s32 0, %v1573
  %v1575 = vrot.slane %v1518, %v1574
  %v1577 = vadd.f32 %v1567, %v1575
  %v1578 = vadd.f32 %v1568, %v1575
  %v1579 = vadd.f32 %v1569, %v1575
  %v1580 = vadd.f32 %v1570, %v1575
  %v1581 = vadd.f32 %v1577, %v987
  %v1582 = vadd.f32 %v1578, %v988
  %v1583 = vadd.f32 %v1579, %v989
  %v1584 = vadd.f32 %v1580, %v990
  %vm1585 = vcmp.gt.f32.partialorder %v1581, 0.0
  %vm1586 = vcmp.gt.f32.partialorder %v1582, 0.0
  %vm1587 = vcmp.gt.f32.partialorder %v1583, 0.0
  %vm1588 = vcmp.gt.f32.partialorder %v1584, 0.0
  %v1589 = vmul.f32 %v1581, 0.01
  %v1590 = vmul.f32 %v1582, 0.01
  %v1591 = vmul.f32 %v1583, 0.01
  %v1592 = vmul.f32 %v1584, 0.01
  %v1593 = vsel %vm1585, %v1581, %v1589
  %v1594 = vsel %vm1586, %v1582, %v1590
  %v1595 = vsel %vm1587, %v1583, %v1591
  %v1596 = vsel %vm1588, %v1584, %v1592
  %s1597 = scalar_lea.vmem %s7, 128
  %v1598 = vld [vmem:[%s1597] sm:$0xff]
  %v1599 = vld [vmem:[%s1597 + $0x8] sm:$0xff]
  %v1600 = vld [vmem:[%s1597 + $0x10] sm:$0xff]
  %v1601 = vld [vmem:[%s1597 + $0x18] sm:$0xff]
  %s1602 = scalar_lea.vmem %s8, 4
  %v1603 = vld [vmem:[%s1602] sm:$0x1]
  %v1605 = vsel %vm200, %v1593, 0
  %v1608 = vsel %vm200, %v1594, 0
  %v1611 = vsel %vm200, %v1595, 0
  %v1614 = vsel %vm200, %v1596, 0
  %1616 = vmatprep.subr.mxu0 0.0
  %1617 = vmatpush1.msra.mxu0 %v1598
  %1618 = vmatprep.subr.mxu0 0.0
  %1619 = vmatpush1.msra.mxu0 %v1599
  %1620 = vmatprep.subr.mxu0 0.0
  %1621 = vmatpush1.msra.mxu0 %v1600
  %1622 = vmatprep.subr.mxu0 0.0
  %1623 = vmatpush1.msra.mxu0 %v1601
  %1624 = vmatprep.subr.mxu0 0.0
  %1625 = vmatpush1.msra.mxu0 0.0
  %1626 = vmatprep.subr.mxu0 0.0
  %1627 = vmatpush1.msra.mxu0 0.0
  %1628 = vmatprep.subr.mxu0 0.0
  %1629 = vmatpush1.msra.mxu0 0.0
  %1630 = vmatprep.subr.mxu0 0.0
  %1631 = vmatpush1.msra.mxu0 0.0
  %1632 = vmatprep.subr.mxu0 0.0
  %1633 = vmatpush1.msra.mxu0 0.0
  %1634 = vmatprep.subr.mxu0 0.0
  %1635 = vmatpush1.msra.mxu0 0.0
  %1636 = vmatprep.subr.mxu0 0.0
  %1637 = vmatpush1.msra.mxu0 0.0
  %1638 = vmatprep.subr.mxu0 0.0
  %1639 = vmatpush1.msra.mxu0 0.0
  %1640 = vmatprep.subr.mxu0 0.0
  %1641 = vmatpush1.msra.mxu0 0.0
  %1642 = vmatprep.subr.mxu0 0.0
  %1643 = vmatpush1.msra.mxu0 0.0
  %1644 = vmatprep.subr.mxu0 0.0
  %1645 = vmatpush1.msra.mxu0 0.0
  %1646 = vmatprep.subr.mxu0 0.0
  %1647 = vmatpush1.msra.mxu0 0.0
  %1648 = vmatprep.subr.mxu0 0.0
  %1649 = vmatpush1.msra.mxu0 0.0
  %1650 = vmatprep.subr.mxu0 0.0
  %1651 = vmatpush1.msra.mxu0 0.0
  %1652 = vmatprep.subr.mxu0 0.0
  %1653 = vmatpush1.msra.mxu0 0.0
  %1654 = vmatprep.subr.mxu0 0.0
  %1655 = vmatpush1.msra.mxu0 0.0
  %1656 = vmatprep.subr.mxu0 0.0
  %1657 = vmatpush1.msra.mxu0 0.0
  %1658 = vmatprep.subr.mxu0 0.0
  %1659 = vmatpush1.msra.mxu0 0.0
  %1660 = vmatprep.subr.mxu0 0.0
  %1661 = vmatpush1.msra.mxu0 0.0
  %1662 = vmatprep.subr.mxu0 0.0
  %1663 = vmatpush1.msra.mxu0 0.0
  %1664 = vmatprep.subr.mxu0 0.0
  %1665 = vmatpush1.msra.mxu0 0.0
  %1666 = vmatprep.subr.mxu0 0.0
  %1667 = vmatpush1.msra.mxu0 0.0
  %1668 = vmatprep.subr.mxu0 0.0
  %1669 = vmatpush1.msra.mxu0 0.0
  %1670 = vmatprep.subr.mxu0 0.0
  %1671 = vmatpush1.msra.mxu0 0.0
  %1672 = vmatprep.subr.mxu0 0.0
  %1673 = vmatpush1.msra.mxu0 0.0
  %1674 = vmatprep.subr.mxu0 0.0
  %1675 = vmatpush1.msra.mxu0 0.0
  %1676 = vmatprep.subr.mxu0 0.0
  %1677 = vmatpush1.msra.mxu0 0.0
  %1678 = vmatprep.subr.mxu0 0.0
  %1679 = vmatpush1.msra.mxu0 0.0
  %1680 = vmatprep.mubr.f32.mxu0 0.0
  %1681 = vmatmul.mubr.f32.gmra.mrb[0].mxu0 %v1605
  %v1682 = vpop.f32.mrb[0].mxu0
  %v1683 = vadd.f32 0.0, %v1682
  %v1684 = vpop.f32.mrb[0].mxu0
  %1685 = vmatprep.mubr.f32.mxu0 0.0
  %1686 = vmatmul.mubr.f32.gmra.mrb[0].mxu0 %v1608
  %v1687 = vpop.f32.mrb[0].mxu0
  %v1688 = vadd.f32 0.0, %v1687
  %v1689 = vpop.f32.mrb[0].mxu0
  %1690 = vmatprep.mubr.f32.mxu0 0.0
  %1691 = vmatmul.mubr.f32.gmra.mrb[0].mxu0 %v1611
  %v1692 = vpop.f32.mrb[0].mxu0
  %v1693 = vadd.f32 0.0, %v1692
  %v1694 = vpop.f32.mrb[0].mxu0
  %1695 = vmatprep.mubr.f32.mxu0 0.0
  %1696 = vmatmul.mubr.f32.gmra.mrb[0].mxu0 %v1614
  %v1697 = vpop.f32.mrb[0].mxu0
  %v1698 = vadd.f32 0.0, %v1697
  %v1699 = vpop.f32.mrb[0].mxu0
  %1700 = vdwg.mxu0
  %v1701 = vmul.f32 %v163, %v1683
  %v1702 = vmul.f32 %v168, %v1688
  %v1703 = vmul.f32 %v173, %v1693
  %v1704 = vmul.f32 %v178, %v1698
  %1709 = vrot.lane.b32.xlu0 %v1683, 96
  %v1710 = vpop.permute.xlu0 %1709
  %1711 = vrot.lane.b32.xlu0 %v1688, 96
  %v1712 = vpop.permute.xlu0 %1711
  %1713 = vrot.lane.b32.xlu0 %v1693, 96
  %v1714 = vpop.permute.xlu0 %1713
  %1715 = vrot.lane.b32.xlu0 %v1698, 96
  %v1716 = vpop.permute.xlu0 %1715
  %1721 = vmatprep.subr.mxu0 0.0
  %1722 = vmatpush1.msra.mxu0 %v1710
  %1723 = vmatprep.subr.mxu0 0.0
  %1724 = vmatpush1.msra.mxu0 %v1712
  %1725 = vmatprep.subr.mxu0 0.0
  %1726 = vmatpush1.msra.mxu0 %v1714
  %1727 = vmatprep.subr.mxu0 0.0
  %1728 = vmatpush1.msra.mxu0 %v1716
  %1729 = vmatprep.subr.mxu0 0.0
  %1730 = vmatpush1.msra.mxu0 0.0
  %1731 = vmatprep.subr.mxu0 0.0
  %1732 = vmatpush1.msra.mxu0 0.0
  %1733 = vmatprep.subr.mxu0 0.0
  %1734 = vmatpush1.msra.mxu0 0.0
  %1735 = vmatprep.subr.mxu0 0.0
  %1736 = vmatpush1.msra.mxu0 0.0
  %1737 = vmatprep.subr.mxu0 0.0
  %1738 = vmatpush1.msra.mxu0 0.0
  %1739 = vmatprep.subr.mxu0 0.0
  %1740 = vmatpush1.msra.mxu0 0.0
  %1741 = vmatprep.subr.mxu0 0.0
  %1742 = vmatpush1.msra.mxu0 0.0
  %1743 = vmatprep.subr.mxu0 0.0
  %1744 = vmatpush1.msra.mxu0 0.0
  %1745 = vmatprep.subr.mxu0 0.0
  %1746 = vmatpush1.msra.mxu0 0.0
  %1747 = vmatprep.subr.mxu0 0.0
  %1748 = vmatpush1.msra.mxu0 0.0
  %1749 = vmatprep.subr.mxu0 0.0
  %1750 = vmatpush1.msra.mxu0 0.0
  %1751 = vmatprep.subr.mxu0 0.0
  %1752 = vmatpush1.msra.mxu0 0.0
  %1753 = vmatprep.subr.mxu0 0.0
  %1754 = vmatpush1.msra.mxu0 0.0
  %1755 = vmatprep.subr.mxu0 0.0
  %1756 = vmatpush1.msra.mxu0 0.0
  %1757 = vmatprep.subr.mxu0 0.0
  %1758 = vmatpush1.msra.mxu0 0.0
  %1759 = vmatprep.subr.mxu0 0.0
  %1760 = vmatpush1.msra.mxu0 0.0
  %1761 = vmatprep.subr.mxu0 0.0
  %1762 = vmatpush1.msra.mxu0 0.0
  %1763 = vmatprep.subr.mxu0 0.0
  %1764 = vmatpush1.msra.mxu0 0.0
  %1765 = vmatprep.subr.mxu0 0.0
  %1766 = vmatpush1.msra.mxu0 0.0
  %1767 = vmatprep.subr.mxu0 0.0
  %1768 = vmatpush1.msra.mxu0 0.0
  %1769 = vmatprep.subr.mxu0 0.0
  %1770 = vmatpush1.msra.mxu0 0.0
  %1771 = vmatprep.subr.mxu0 0.0
  %1772 = vmatpush1.msra.mxu0 0.0
  %1773 = vmatprep.subr.mxu0 0.0
  %1774 = vmatpush1.msra.mxu0 0.0
  %1775 = vmatprep.subr.mxu0 0.0
  %1776 = vmatpush1.msra.mxu0 0.0
  %1777 = vmatprep.subr.mxu0 0.0
  %1778 = vmatpush1.msra.mxu0 0.0
  %1779 = vmatprep.subr.mxu0 0.0
  %1780 = vmatpush1.msra.mxu0 0.0
  %1781 = vmatprep.subr.mxu0 0.0
  %1782 = vmatpush1.msra.mxu0 0.0
  %1783 = vmatprep.subr.mxu0 0.0
  %1784 = vmatpush1.msra.mxu0 0.0
  %1785 = vmatprep.mubr.f32.mxu0 0.0
  %1786 = vmatmul.mubr.f32.gmra.mrb[0].mxu0 %v202
  %v1787 = vpop.f32.mrb[0].mxu0
  %v1788 = vadd.f32 0.0, %v1787
  %v1789 = vpop.f32.mrb[0].mxu0
  %1790 = vmatprep.mubr.f32.mxu0 0.0
  %1791 = vmatmul.mubr.f32.gmra.mrb[0].mxu0 %v205
  %v1792 = vpop.f32.mrb[0].mxu0
  %v1793 = vadd.f32 0.0, %v1792
  %v1794 = vpop.f32.mrb[0].mxu0
  %1795 = vmatprep.mubr.f32.mxu0 0.0
  %1796 = vmatmul.mubr.f32.gmra.mrb[0].mxu0 %v208
  %v1797 = vpop.f32.mrb[0].mxu0
  %v1798 = vadd.f32 0.0, %v1797
  %v1799 = vpop.f32.mrb[0].mxu0
  %1800 = vmatprep.mubr.f32.mxu0 0.0
  %1801 = vmatmul.mubr.f32.gmra.mrb[0].mxu0 %v211
  %v1802 = vpop.f32.mrb[0].mxu0
  %v1803 = vadd.f32 0.0, %v1802
  %v1804 = vpop.f32.mrb[0].mxu0
  %1805 = vdwg.mxu0
  %v1806 = vadd.f32 %v1701, %v1788
  %v1807 = vadd.f32 %v1702, %v1793
  %v1808 = vadd.f32 %v1703, %v1798
  %v1809 = vadd.f32 %v1704, %v1803
  %v1811 = vlaneseq
  %v1812 = vshrl.u32 %v1811, 7
  %v1813 = vsub.s32 0, %v1812
  %v1814 = vrot.slane %v1603, %v1813
  %v1816 = vadd.f32 %v1806, %v1814
  %v1817 = vadd.f32 %v1807, %v1814
  %v1818 = vadd.f32 %v1808, %v1814
  %v1819 = vadd.f32 %v1809, %v1814
  %s1820 = scalar_lea.vmem %s9, 4
  %v1821 = vld [vmem:[%s1820] sm:$0x1]
  %s1822 = scalar_lea.vmem %s10, 4
  %v1823 = vld [vmem:[%s1822] sm:$0x1]
  %v1824 = vsel %vm200, %v1816, 0.0
  %v1825 = vsel %vm200, %v1817, 0.0
  %v1826 = vadd.f32 %v1824, %v1825
  %v1827 = vsel %vm200, %v1818, 0.0
  %v1828 = vadd.f32 %v1826, %v1827
  %v1829 = vsel %vm200, %v1819, 0.0
  %v1830 = vadd.f32 %v1828, %v1829
  %v1831 = vrot.slane %v1830, 4
  %v1832 = vadd.f32 %v1830, %v1831
  %v1833 = vrot.slane %v1832, 2
  %v1834 = vadd.f32 %v1832, %v1833
  %v1835 = vrot.slane %v1834, 1
  %v1836 = vadd.f32 %v1834, %v1835
  %v1837 = vmul.f32 %v1836, %v327
  %v1838 = vsub.f32 %v1816, %v1837
  %v1839 = vsub.f32 %v1817, %v1837
  %v1840 = vsub.f32 %v1818, %v1837
  %v1841 = vsub.f32 %v1819, %v1837
  %v1842 = vmul.f32 %v1838, %v1838
  %v1843 = vmul.f32 %v1839, %v1839
  %v1844 = vmul.f32 %v1840, %v1840
  %v1845 = vmul.f32 %v1841, %v1841
  %v1846 = vsel %vm200, %v1842, 0.0
  %v1847 = vsel %vm200, %v1843, 0.0
  %v1848 = vadd.f32 %v1846, %v1847
  %v1849 = vsel %vm200, %v1844, 0.0
  %v1850 = vadd.f32 %v1848, %v1849
  %v1851 = vsel %vm200, %v1845, 0.0
  %v1852 = vadd.f32 %v1850, %v1851
  %v1853 = vrot.slane %v1852, 4
  %v1854 = vadd.f32 %v1852, %v1853
  %v1855 = vrot.slane %v1854, 2
  %v1856 = vadd.f32 %v1854, %v1855
  %v1857 = vrot.slane %v1856, 1
  %v1858 = vadd.f32 %v1856, %v1857
  %v1859 = vmul.f32 %v1858, %v327
  %v1860 = vadd.f32 %v1859, 1e-05
  %v1861 = vrsqrt.pop %v1860
  %v1862 = vmul.f32 %v1838, %v1861
  %v1863 = vmul.f32 %v1839, %v1861
  %v1864 = vmul.f32 %v1840, %v1861
  %v1865 = vmul.f32 %v1841, %v1861
  %v1867 = vlaneseq
  %v1868 = vshrl.u32 %v1867, 7
  %v1869 = vsub.s32 0, %v1868
  %v1870 = vrot.slane %v1821, %v1869
  %v1872 = vmul.f32 %v1862, %v1870
  %v1873 = vmul.f32 %v1863, %v1870
  %v1874 = vmul.f32 %v1864, %v1870
  %v1875 = vmul.f32 %v1865, %v1870
  %v1877 = vlaneseq
  %v1878 = vshrl.u32 %v1877, 7
  %v1879 = vsub.s32 0, %v1878
  %v1880 = vrot.slane %v1823, %v1879
  %v1882 = vadd.f32 %v1872, %v1880
  %v1883 = vadd.f32 %v1873, %v1880
  %v1884 = vadd.f32 %v1874, %v1880
  %v1885 = vadd.f32 %v1875, %v1880
  %vm1886 = vcmp.gt.f32.partialorder %v1882, 0.0
  %vm1887 = vcmp.gt.f32.partialorder %v1883, 0.0
  %vm1888 = vcmp.gt.f32.partialorder %v1884, 0.0
  %vm1889 = vcmp.gt.f32.partialorder %v1885, 0.0
  %v1890 = vmul.f32 %v1882, 0.01
  %v1891 = vmul.f32 %v1883, 0.01
  %v1892 = vmul.f32 %v1884, 0.01
  %v1893 = vmul.f32 %v1885, 0.01
  %v1894 = vsel %vm1886, %v1882, %v1890
  %v1895 = vsel %vm1887, %v1883, %v1891
  %v1896 = vsel %vm1888, %v1884, %v1892
  %v1897 = vsel %vm1889, %v1885, %v1893
  %s1898 = scalar_lea.vmem %s7, 160
  %v1899 = vld [vmem:[%s1898] sm:$0xff]
  %v1900 = vld [vmem:[%s1898 + $0x8] sm:$0xff]
  %v1901 = vld [vmem:[%s1898 + $0x10] sm:$0xff]
  %v1902 = vld [vmem:[%s1898 + $0x18] sm:$0xff]
  %s1903 = scalar_lea.vmem %s8, 5
  %v1904 = vld [vmem:[%s1903] sm:$0x1]
  %v1906 = vsel %vm200, %v1894, 0
  %v1909 = vsel %vm200, %v1895, 0
  %v1912 = vsel %vm200, %v1896, 0
  %v1915 = vsel %vm200, %v1897, 0
  %1917 = vmatprep.subr.mxu0 0.0
  %1918 = vmatpush1.msra.mxu0 %v1899
  %1919 = vmatprep.subr.mxu0 0.0
  %1920 = vmatpush1.msra.mxu0 %v1900
  %1921 = vmatprep.subr.mxu0 0.0
  %1922 = vmatpush1.msra.mxu0 %v1901
  %1923 = vmatprep.subr.mxu0 0.0
  %1924 = vmatpush1.msra.mxu0 %v1902
  %1925 = vmatprep.subr.mxu0 0.0
  %1926 = vmatpush1.msra.mxu0 0.0
  %1927 = vmatprep.subr.mxu0 0.0
  %1928 = vmatpush1.msra.mxu0 0.0
  %1929 = vmatprep.subr.mxu0 0.0
  %1930 = vmatpush1.msra.mxu0 0.0
  %1931 = vmatprep.subr.mxu0 0.0
  %1932 = vmatpush1.msra.mxu0 0.0
  %1933 = vmatprep.subr.mxu0 0.0
  %1934 = vmatpush1.msra.mxu0 0.0
  %1935 = vmatprep.subr.mxu0 0.0
  %1936 = vmatpush1.msra.mxu0 0.0
  %1937 = vmatprep.subr.mxu0 0.0
  %1938 = vmatpush1.msra.mxu0 0.0
  %1939 = vmatprep.subr.mxu0 0.0
  %1940 = vmatpush1.msra.mxu0 0.0
  %1941 = vmatprep.subr.mxu0 0.0
  %1942 = vmatpush1.msra.mxu0 0.0
  %1943 = vmatprep.subr.mxu0 0.0
  %1944 = vmatpush1.msra.mxu0 0.0
  %1945 = vmatprep.subr.mxu0 0.0
  %1946 = vmatpush1.msra.mxu0 0.0
  %1947 = vmatprep.subr.mxu0 0.0
  %1948 = vmatpush1.msra.mxu0 0.0
  %1949 = vmatprep.subr.mxu0 0.0
  %1950 = vmatpush1.msra.mxu0 0.0
  %1951 = vmatprep.subr.mxu0 0.0
  %1952 = vmatpush1.msra.mxu0 0.0
  %1953 = vmatprep.subr.mxu0 0.0
  %1954 = vmatpush1.msra.mxu0 0.0
  %1955 = vmatprep.subr.mxu0 0.0
  %1956 = vmatpush1.msra.mxu0 0.0
  %1957 = vmatprep.subr.mxu0 0.0
  %1958 = vmatpush1.msra.mxu0 0.0
  %1959 = vmatprep.subr.mxu0 0.0
  %1960 = vmatpush1.msra.mxu0 0.0
  %1961 = vmatprep.subr.mxu0 0.0
  %1962 = vmatpush1.msra.mxu0 0.0
  %1963 = vmatprep.subr.mxu0 0.0
  %1964 = vmatpush1.msra.mxu0 0.0
  %1965 = vmatprep.subr.mxu0 0.0
  %1966 = vmatpush1.msra.mxu0 0.0
  %1967 = vmatprep.subr.mxu0 0.0
  %1968 = vmatpush1.msra.mxu0 0.0
  %1969 = vmatprep.subr.mxu0 0.0
  %1970 = vmatpush1.msra.mxu0 0.0
  %1971 = vmatprep.subr.mxu0 0.0
  %1972 = vmatpush1.msra.mxu0 0.0
  %1973 = vmatprep.subr.mxu0 0.0
  %1974 = vmatpush1.msra.mxu0 0.0
  %1975 = vmatprep.subr.mxu0 0.0
  %1976 = vmatpush1.msra.mxu0 0.0
  %1977 = vmatprep.subr.mxu0 0.0
  %1978 = vmatpush1.msra.mxu0 0.0
  %1979 = vmatprep.subr.mxu0 0.0
  %1980 = vmatpush1.msra.mxu0 0.0
  %1981 = vmatprep.mubr.f32.mxu0 0.0
  %1982 = vmatmul.mubr.f32.gmra.mrb[0].mxu0 %v1906
  %v1983 = vpop.f32.mrb[0].mxu0
  %v1984 = vadd.f32 0.0, %v1983
  %v1985 = vpop.f32.mrb[0].mxu0
  %1986 = vmatprep.mubr.f32.mxu0 0.0
  %1987 = vmatmul.mubr.f32.gmra.mrb[0].mxu0 %v1909
  %v1988 = vpop.f32.mrb[0].mxu0
  %v1989 = vadd.f32 0.0, %v1988
  %v1990 = vpop.f32.mrb[0].mxu0
  %1991 = vmatprep.mubr.f32.mxu0 0.0
  %1992 = vmatmul.mubr.f32.gmra.mrb[0].mxu0 %v1912
  %v1993 = vpop.f32.mrb[0].mxu0
  %v1994 = vadd.f32 0.0, %v1993
  %v1995 = vpop.f32.mrb[0].mxu0
  %1996 = vmatprep.mubr.f32.mxu0 0.0
  %1997 = vmatmul.mubr.f32.gmra.mrb[0].mxu0 %v1915
  %v1998 = vpop.f32.mrb[0].mxu0
  %v1999 = vadd.f32 0.0, %v1998
  %v2000 = vpop.f32.mrb[0].mxu0
  %2001 = vdwg.mxu0
  %v2002 = vmul.f32 %v163, %v1984
  %v2003 = vmul.f32 %v168, %v1989
  %v2004 = vmul.f32 %v173, %v1994
  %v2005 = vmul.f32 %v178, %v1999
  %2010 = vrot.lane.b32.xlu0 %v1984, 96
  %v2011 = vpop.permute.xlu0 %2010
  %2012 = vrot.lane.b32.xlu0 %v1989, 96
  %v2013 = vpop.permute.xlu0 %2012
  %2014 = vrot.lane.b32.xlu0 %v1994, 96
  %v2015 = vpop.permute.xlu0 %2014
  %2016 = vrot.lane.b32.xlu0 %v1999, 96
  %v2017 = vpop.permute.xlu0 %2016
  %2022 = vmatprep.subr.mxu0 0.0
  %2023 = vmatpush1.msra.mxu0 %v2011
  %2024 = vmatprep.subr.mxu0 0.0
  %2025 = vmatpush1.msra.mxu0 %v2013
  %2026 = vmatprep.subr.mxu0 0.0
  %2027 = vmatpush1.msra.mxu0 %v2015
  %2028 = vmatprep.subr.mxu0 0.0
  %2029 = vmatpush1.msra.mxu0 %v2017
  %2030 = vmatprep.subr.mxu0 0.0
  %2031 = vmatpush1.msra.mxu0 0.0
  %2032 = vmatprep.subr.mxu0 0.0
  %2033 = vmatpush1.msra.mxu0 0.0
  %2034 = vmatprep.subr.mxu0 0.0
  %2035 = vmatpush1.msra.mxu0 0.0
  %2036 = vmatprep.subr.mxu0 0.0
  %2037 = vmatpush1.msra.mxu0 0.0
  %2038 = vmatprep.subr.mxu0 0.0
  %2039 = vmatpush1.msra.mxu0 0.0
  %2040 = vmatprep.subr.mxu0 0.0
  %2041 = vmatpush1.msra.mxu0 0.0
  %2042 = vmatprep.subr.mxu0 0.0
  %2043 = vmatpush1.msra.mxu0 0.0
  %2044 = vmatprep.subr.mxu0 0.0
  %2045 = vmatpush1.msra.mxu0 0.0
  %2046 = vmatprep.subr.mxu0 0.0
  %2047 = vmatpush1.msra.mxu0 0.0
  %2048 = vmatprep.subr.mxu0 0.0
  %2049 = vmatpush1.msra.mxu0 0.0
  %2050 = vmatprep.subr.mxu0 0.0
  %2051 = vmatpush1.msra.mxu0 0.0
  %2052 = vmatprep.subr.mxu0 0.0
  %2053 = vmatpush1.msra.mxu0 0.0
  %2054 = vmatprep.subr.mxu0 0.0
  %2055 = vmatpush1.msra.mxu0 0.0
  %2056 = vmatprep.subr.mxu0 0.0
  %2057 = vmatpush1.msra.mxu0 0.0
  %2058 = vmatprep.subr.mxu0 0.0
  %2059 = vmatpush1.msra.mxu0 0.0
  %2060 = vmatprep.subr.mxu0 0.0
  %2061 = vmatpush1.msra.mxu0 0.0
  %2062 = vmatprep.subr.mxu0 0.0
  %2063 = vmatpush1.msra.mxu0 0.0
  %2064 = vmatprep.subr.mxu0 0.0
  %2065 = vmatpush1.msra.mxu0 0.0
  %2066 = vmatprep.subr.mxu0 0.0
  %2067 = vmatpush1.msra.mxu0 0.0
  %2068 = vmatprep.subr.mxu0 0.0
  %2069 = vmatpush1.msra.mxu0 0.0
  %2070 = vmatprep.subr.mxu0 0.0
  %2071 = vmatpush1.msra.mxu0 0.0
  %2072 = vmatprep.subr.mxu0 0.0
  %2073 = vmatpush1.msra.mxu0 0.0
  %2074 = vmatprep.subr.mxu0 0.0
  %2075 = vmatpush1.msra.mxu0 0.0
  %2076 = vmatprep.subr.mxu0 0.0
  %2077 = vmatpush1.msra.mxu0 0.0
  %2078 = vmatprep.subr.mxu0 0.0
  %2079 = vmatpush1.msra.mxu0 0.0
  %2080 = vmatprep.subr.mxu0 0.0
  %2081 = vmatpush1.msra.mxu0 0.0
  %2082 = vmatprep.subr.mxu0 0.0
  %2083 = vmatpush1.msra.mxu0 0.0
  %2084 = vmatprep.subr.mxu0 0.0
  %2085 = vmatpush1.msra.mxu0 0.0
  %2086 = vmatprep.mubr.f32.mxu0 0.0
  %2087 = vmatmul.mubr.f32.gmra.mrb[0].mxu0 %v202
  %v2088 = vpop.f32.mrb[0].mxu0
  %v2089 = vadd.f32 0.0, %v2088
  %v2090 = vpop.f32.mrb[0].mxu0
  %2091 = vmatprep.mubr.f32.mxu0 0.0
  %2092 = vmatmul.mubr.f32.gmra.mrb[0].mxu0 %v205
  %v2093 = vpop.f32.mrb[0].mxu0
  %v2094 = vadd.f32 0.0, %v2093
  %v2095 = vpop.f32.mrb[0].mxu0
  %2096 = vmatprep.mubr.f32.mxu0 0.0
  %2097 = vmatmul.mubr.f32.gmra.mrb[0].mxu0 %v208
  %v2098 = vpop.f32.mrb[0].mxu0
  %v2099 = vadd.f32 0.0, %v2098
  %v2100 = vpop.f32.mrb[0].mxu0
  %2101 = vmatprep.mubr.f32.mxu0 0.0
  %2102 = vmatmul.mubr.f32.gmra.mrb[0].mxu0 %v211
  %v2103 = vpop.f32.mrb[0].mxu0
  %v2104 = vadd.f32 0.0, %v2103
  %v2105 = vpop.f32.mrb[0].mxu0
  %2106 = vdwg.mxu0
  %v2107 = vadd.f32 %v2002, %v2089
  %v2108 = vadd.f32 %v2003, %v2094
  %v2109 = vadd.f32 %v2004, %v2099
  %v2110 = vadd.f32 %v2005, %v2104
  %v2112 = vlaneseq
  %v2113 = vshrl.u32 %v2112, 7
  %v2114 = vsub.s32 0, %v2113
  %v2115 = vrot.slane %v1904, %v2114
  %v2117 = vadd.f32 %v2107, %v2115
  %v2118 = vadd.f32 %v2108, %v2115
  %v2119 = vadd.f32 %v2109, %v2115
  %v2120 = vadd.f32 %v2110, %v2115
  %s2121 = scalar_lea.vmem %s9, 5
  %v2122 = vld [vmem:[%s2121] sm:$0x1]
  %s2123 = scalar_lea.vmem %s10, 5
  %v2124 = vld [vmem:[%s2123] sm:$0x1]
  %v2125 = vsel %vm200, %v2117, 0.0
  %v2126 = vsel %vm200, %v2118, 0.0
  %v2127 = vadd.f32 %v2125, %v2126
  %v2128 = vsel %vm200, %v2119, 0.0
  %v2129 = vadd.f32 %v2127, %v2128
  %v2130 = vsel %vm200, %v2120, 0.0
  %v2131 = vadd.f32 %v2129, %v2130
  %v2132 = vrot.slane %v2131, 4
  %v2133 = vadd.f32 %v2131, %v2132
  %v2134 = vrot.slane %v2133, 2
  %v2135 = vadd.f32 %v2133, %v2134
  %v2136 = vrot.slane %v2135, 1
  %v2137 = vadd.f32 %v2135, %v2136
  %v2138 = vmul.f32 %v2137, %v327
  %v2139 = vsub.f32 %v2117, %v2138
  %v2140 = vsub.f32 %v2118, %v2138
  %v2141 = vsub.f32 %v2119, %v2138
  %v2142 = vsub.f32 %v2120, %v2138
  %v2143 = vmul.f32 %v2139, %v2139
  %v2144 = vmul.f32 %v2140, %v2140
  %v2145 = vmul.f32 %v2141, %v2141
  %v2146 = vmul.f32 %v2142, %v2142
  %v2147 = vsel %vm200, %v2143, 0.0
  %v2148 = vsel %vm200, %v2144, 0.0
  %v2149 = vadd.f32 %v2147, %v2148
  %v2150 = vsel %vm200, %v2145, 0.0
  %v2151 = vadd.f32 %v2149, %v2150
  %v2152 = vsel %vm200, %v2146, 0.0
  %v2153 = vadd.f32 %v2151, %v2152
  %v2154 = vrot.slane %v2153, 4
  %v2155 = vadd.f32 %v2153, %v2154
  %v2156 = vrot.slane %v2155, 2
  %v2157 = vadd.f32 %v2155, %v2156
  %v2158 = vrot.slane %v2157, 1
  %v2159 = vadd.f32 %v2157, %v2158
  %v2160 = vmul.f32 %v2159, %v327
  %v2161 = vadd.f32 %v2160, 1e-05
  %v2162 = vrsqrt.pop %v2161
  %v2163 = vmul.f32 %v2139, %v2162
  %v2164 = vmul.f32 %v2140, %v2162
  %v2165 = vmul.f32 %v2141, %v2162
  %v2166 = vmul.f32 %v2142, %v2162
  %v2168 = vlaneseq
  %v2169 = vshrl.u32 %v2168, 7
  %v2170 = vsub.s32 0, %v2169
  %v2171 = vrot.slane %v2122, %v2170
  %v2173 = vmul.f32 %v2163, %v2171
  %v2174 = vmul.f32 %v2164, %v2171
  %v2175 = vmul.f32 %v2165, %v2171
  %v2176 = vmul.f32 %v2166, %v2171
  %v2178 = vlaneseq
  %v2179 = vshrl.u32 %v2178, 7
  %v2180 = vsub.s32 0, %v2179
  %v2181 = vrot.slane %v2124, %v2180
  %v2183 = vadd.f32 %v2173, %v2181
  %v2184 = vadd.f32 %v2174, %v2181
  %v2185 = vadd.f32 %v2175, %v2181
  %v2186 = vadd.f32 %v2176, %v2181
  %v2187 = vadd.f32 %v2183, %v1593
  %v2188 = vadd.f32 %v2184, %v1594
  %v2189 = vadd.f32 %v2185, %v1595
  %v2190 = vadd.f32 %v2186, %v1596
  %vm2191 = vcmp.gt.f32.partialorder %v2187, 0.0
  %vm2192 = vcmp.gt.f32.partialorder %v2188, 0.0
  %vm2193 = vcmp.gt.f32.partialorder %v2189, 0.0
  %vm2194 = vcmp.gt.f32.partialorder %v2190, 0.0
  %v2195 = vmul.f32 %v2187, 0.01
  %v2196 = vmul.f32 %v2188, 0.01
  %v2197 = vmul.f32 %v2189, 0.01
  %v2198 = vmul.f32 %v2190, 0.01
  %v2199 = vsel %vm2191, %v2187, %v2195
  %v2200 = vsel %vm2192, %v2188, %v2196
  %v2201 = vsel %vm2193, %v2189, %v2197
  %v2202 = vsel %vm2194, %v2190, %v2198
  %s2203 = scalar_lea.vmem %s7, 192
  %v2204 = vld [vmem:[%s2203] sm:$0xff]
  %v2205 = vld [vmem:[%s2203 + $0x8] sm:$0xff]
  %v2206 = vld [vmem:[%s2203 + $0x10] sm:$0xff]
  %v2207 = vld [vmem:[%s2203 + $0x18] sm:$0xff]
  %s2208 = scalar_lea.vmem %s8, 6
  %v2209 = vld [vmem:[%s2208] sm:$0x1]
  %v2211 = vsel %vm200, %v2199, 0
  %v2214 = vsel %vm200, %v2200, 0
  %v2217 = vsel %vm200, %v2201, 0
  %v2220 = vsel %vm200, %v2202, 0
  %2222 = vmatprep.subr.mxu0 0.0
  %2223 = vmatpush1.msra.mxu0 %v2204
  %2224 = vmatprep.subr.mxu0 0.0
  %2225 = vmatpush1.msra.mxu0 %v2205
  %2226 = vmatprep.subr.mxu0 0.0
  %2227 = vmatpush1.msra.mxu0 %v2206
  %2228 = vmatprep.subr.mxu0 0.0
  %2229 = vmatpush1.msra.mxu0 %v2207
  %2230 = vmatprep.subr.mxu0 0.0
  %2231 = vmatpush1.msra.mxu0 0.0
  %2232 = vmatprep.subr.mxu0 0.0
  %2233 = vmatpush1.msra.mxu0 0.0
  %2234 = vmatprep.subr.mxu0 0.0
  %2235 = vmatpush1.msra.mxu0 0.0
  %2236 = vmatprep.subr.mxu0 0.0
  %2237 = vmatpush1.msra.mxu0 0.0
  %2238 = vmatprep.subr.mxu0 0.0
  %2239 = vmatpush1.msra.mxu0 0.0
  %2240 = vmatprep.subr.mxu0 0.0
  %2241 = vmatpush1.msra.mxu0 0.0
  %2242 = vmatprep.subr.mxu0 0.0
  %2243 = vmatpush1.msra.mxu0 0.0
  %2244 = vmatprep.subr.mxu0 0.0
  %2245 = vmatpush1.msra.mxu0 0.0
  %2246 = vmatprep.subr.mxu0 0.0
  %2247 = vmatpush1.msra.mxu0 0.0
  %2248 = vmatprep.subr.mxu0 0.0
  %2249 = vmatpush1.msra.mxu0 0.0
  %2250 = vmatprep.subr.mxu0 0.0
  %2251 = vmatpush1.msra.mxu0 0.0
  %2252 = vmatprep.subr.mxu0 0.0
  %2253 = vmatpush1.msra.mxu0 0.0
  %2254 = vmatprep.subr.mxu0 0.0
  %2255 = vmatpush1.msra.mxu0 0.0
  %2256 = vmatprep.subr.mxu0 0.0
  %2257 = vmatpush1.msra.mxu0 0.0
  %2258 = vmatprep.subr.mxu0 0.0
  %2259 = vmatpush1.msra.mxu0 0.0
  %2260 = vmatprep.subr.mxu0 0.0
  %2261 = vmatpush1.msra.mxu0 0.0
  %2262 = vmatprep.subr.mxu0 0.0
  %2263 = vmatpush1.msra.mxu0 0.0
  %2264 = vmatprep.subr.mxu0 0.0
  %2265 = vmatpush1.msra.mxu0 0.0
  %2266 = vmatprep.subr.mxu0 0.0
  %2267 = vmatpush1.msra.mxu0 0.0
  %2268 = vmatprep.subr.mxu0 0.0
  %2269 = vmatpush1.msra.mxu0 0.0
  %2270 = vmatprep.subr.mxu0 0.0
  %2271 = vmatpush1.msra.mxu0 0.0
  %2272 = vmatprep.subr.mxu0 0.0
  %2273 = vmatpush1.msra.mxu0 0.0
  %2274 = vmatprep.subr.mxu0 0.0
  %2275 = vmatpush1.msra.mxu0 0.0
  %2276 = vmatprep.subr.mxu0 0.0
  %2277 = vmatpush1.msra.mxu0 0.0
  %2278 = vmatprep.subr.mxu0 0.0
  %2279 = vmatpush1.msra.mxu0 0.0
  %2280 = vmatprep.subr.mxu0 0.0
  %2281 = vmatpush1.msra.mxu0 0.0
  %2282 = vmatprep.subr.mxu0 0.0
  %2283 = vmatpush1.msra.mxu0 0.0
  %2284 = vmatprep.subr.mxu0 0.0
  %2285 = vmatpush1.msra.mxu0 0.0
  %2286 = vmatprep.mubr.f32.mxu0 0.0
  %2287 = vmatmul.mubr.f32.gmra.mrb[0].mxu0 %v2211
  %v2288 = vpop.f32.mrb[0].mxu0
  %v2289 = vadd.f32 0.0, %v2288
  %v2290 = vpop.f32.mrb[0].mxu0
  %2291 = vmatprep.mubr.f32.mxu0 0.0
  %2292 = vmatmul.mubr.f32.gmra.mrb[0].mxu0 %v2214
  %v2293 = vpop.f32.mrb[0].mxu0
  %v2294 = vadd.f32 0.0, %v2293
  %v2295 = vpop.f32.mrb[0].mxu0
  %2296 = vmatprep.mubr.f32.mxu0 0.0
  %2297 = vmatmul.mubr.f32.gmra.mrb[0].mxu0 %v2217
  %v2298 = vpop.f32.mrb[0].mxu0
  %v2299 = vadd.f32 0.0, %v2298
  %v2300 = vpop.f32.mrb[0].mxu0
  %2301 = vmatprep.mubr.f32.mxu0 0.0
  %2302 = vmatmul.mubr.f32.gmra.mrb[0].mxu0 %v2220
  %v2303 = vpop.f32.mrb[0].mxu0
  %v2304 = vadd.f32 0.0, %v2303
  %v2305 = vpop.f32.mrb[0].mxu0
  %2306 = vdwg.mxu0
  %v2307 = vmul.f32 %v163, %v2289
  %v2308 = vmul.f32 %v168, %v2294
  %v2309 = vmul.f32 %v173, %v2299
  %v2310 = vmul.f32 %v178, %v2304
  %2315 = vrot.lane.b32.xlu0 %v2289, 96
  %v2316 = vpop.permute.xlu0 %2315
  %2317 = vrot.lane.b32.xlu0 %v2294, 96
  %v2318 = vpop.permute.xlu0 %2317
  %2319 = vrot.lane.b32.xlu0 %v2299, 96
  %v2320 = vpop.permute.xlu0 %2319
  %2321 = vrot.lane.b32.xlu0 %v2304, 96
  %v2322 = vpop.permute.xlu0 %2321
  %2327 = vmatprep.subr.mxu0 0.0
  %2328 = vmatpush1.msra.mxu0 %v2316
  %2329 = vmatprep.subr.mxu0 0.0
  %2330 = vmatpush1.msra.mxu0 %v2318
  %2331 = vmatprep.subr.mxu0 0.0
  %2332 = vmatpush1.msra.mxu0 %v2320
  %2333 = vmatprep.subr.mxu0 0.0
  %2334 = vmatpush1.msra.mxu0 %v2322
  %2335 = vmatprep.subr.mxu0 0.0
  %2336 = vmatpush1.msra.mxu0 0.0
  %2337 = vmatprep.subr.mxu0 0.0
  %2338 = vmatpush1.msra.mxu0 0.0
  %2339 = vmatprep.subr.mxu0 0.0
  %2340 = vmatpush1.msra.mxu0 0.0
  %2341 = vmatprep.subr.mxu0 0.0
  %2342 = vmatpush1.msra.mxu0 0.0
  %2343 = vmatprep.subr.mxu0 0.0
  %2344 = vmatpush1.msra.mxu0 0.0
  %2345 = vmatprep.subr.mxu0 0.0
  %2346 = vmatpush1.msra.mxu0 0.0
  %2347 = vmatprep.subr.mxu0 0.0
  %2348 = vmatpush1.msra.mxu0 0.0
  %2349 = vmatprep.subr.mxu0 0.0
  %2350 = vmatpush1.msra.mxu0 0.0
  %2351 = vmatprep.subr.mxu0 0.0
  %2352 = vmatpush1.msra.mxu0 0.0
  %2353 = vmatprep.subr.mxu0 0.0
  %2354 = vmatpush1.msra.mxu0 0.0
  %2355 = vmatprep.subr.mxu0 0.0
  %2356 = vmatpush1.msra.mxu0 0.0
  %2357 = vmatprep.subr.mxu0 0.0
  %2358 = vmatpush1.msra.mxu0 0.0
  %2359 = vmatprep.subr.mxu0 0.0
  %2360 = vmatpush1.msra.mxu0 0.0
  %2361 = vmatprep.subr.mxu0 0.0
  %2362 = vmatpush1.msra.mxu0 0.0
  %2363 = vmatprep.subr.mxu0 0.0
  %2364 = vmatpush1.msra.mxu0 0.0
  %2365 = vmatprep.subr.mxu0 0.0
  %2366 = vmatpush1.msra.mxu0 0.0
  %2367 = vmatprep.subr.mxu0 0.0
  %2368 = vmatpush1.msra.mxu0 0.0
  %2369 = vmatprep.subr.mxu0 0.0
  %2370 = vmatpush1.msra.mxu0 0.0
  %2371 = vmatprep.subr.mxu0 0.0
  %2372 = vmatpush1.msra.mxu0 0.0
  %2373 = vmatprep.subr.mxu0 0.0
  %2374 = vmatpush1.msra.mxu0 0.0
  %2375 = vmatprep.subr.mxu0 0.0
  %2376 = vmatpush1.msra.mxu0 0.0
  %2377 = vmatprep.subr.mxu0 0.0
  %2378 = vmatpush1.msra.mxu0 0.0
  %2379 = vmatprep.subr.mxu0 0.0
  %2380 = vmatpush1.msra.mxu0 0.0
  %2381 = vmatprep.subr.mxu0 0.0
  %2382 = vmatpush1.msra.mxu0 0.0
  %2383 = vmatprep.subr.mxu0 0.0
  %2384 = vmatpush1.msra.mxu0 0.0
  %2385 = vmatprep.subr.mxu0 0.0
  %2386 = vmatpush1.msra.mxu0 0.0
  %2387 = vmatprep.subr.mxu0 0.0
  %2388 = vmatpush1.msra.mxu0 0.0
  %2389 = vmatprep.subr.mxu0 0.0
  %2390 = vmatpush1.msra.mxu0 0.0
  %2391 = vmatprep.mubr.f32.mxu0 0.0
  %2392 = vmatmul.mubr.f32.gmra.mrb[0].mxu0 %v202
  %v2393 = vpop.f32.mrb[0].mxu0
  %v2394 = vadd.f32 0.0, %v2393
  %v2395 = vpop.f32.mrb[0].mxu0
  %2396 = vmatprep.mubr.f32.mxu0 0.0
  %2397 = vmatmul.mubr.f32.gmra.mrb[0].mxu0 %v205
  %v2398 = vpop.f32.mrb[0].mxu0
  %v2399 = vadd.f32 0.0, %v2398
  %v2400 = vpop.f32.mrb[0].mxu0
  %2401 = vmatprep.mubr.f32.mxu0 0.0
  %2402 = vmatmul.mubr.f32.gmra.mrb[0].mxu0 %v208
  %v2403 = vpop.f32.mrb[0].mxu0
  %v2404 = vadd.f32 0.0, %v2403
  %v2405 = vpop.f32.mrb[0].mxu0
  %2406 = vmatprep.mubr.f32.mxu0 0.0
  %2407 = vmatmul.mubr.f32.gmra.mrb[0].mxu0 %v211
  %v2408 = vpop.f32.mrb[0].mxu0
  %v2409 = vadd.f32 0.0, %v2408
  %v2410 = vpop.f32.mrb[0].mxu0
  %2411 = vdwg.mxu0
  %v2412 = vadd.f32 %v2307, %v2394
  %v2413 = vadd.f32 %v2308, %v2399
  %v2414 = vadd.f32 %v2309, %v2404
  %v2415 = vadd.f32 %v2310, %v2409
  %v2417 = vlaneseq
  %v2418 = vshrl.u32 %v2417, 7
  %v2419 = vsub.s32 0, %v2418
  %v2420 = vrot.slane %v2209, %v2419
  %v2422 = vadd.f32 %v2412, %v2420
  %v2423 = vadd.f32 %v2413, %v2420
  %v2424 = vadd.f32 %v2414, %v2420
  %v2425 = vadd.f32 %v2415, %v2420
  %s2426 = scalar_lea.vmem %s9, 6
  %v2427 = vld [vmem:[%s2426] sm:$0x1]
  %s2428 = scalar_lea.vmem %s10, 6
  %v2429 = vld [vmem:[%s2428] sm:$0x1]
  %v2430 = vsel %vm200, %v2422, 0.0
  %v2431 = vsel %vm200, %v2423, 0.0
  %v2432 = vadd.f32 %v2430, %v2431
  %v2433 = vsel %vm200, %v2424, 0.0
  %v2434 = vadd.f32 %v2432, %v2433
  %v2435 = vsel %vm200, %v2425, 0.0
  %v2436 = vadd.f32 %v2434, %v2435
  %v2437 = vrot.slane %v2436, 4
  %v2438 = vadd.f32 %v2436, %v2437
  %v2439 = vrot.slane %v2438, 2
  %v2440 = vadd.f32 %v2438, %v2439
  %v2441 = vrot.slane %v2440, 1
  %v2442 = vadd.f32 %v2440, %v2441
  %v2443 = vmul.f32 %v2442, %v327
  %v2444 = vsub.f32 %v2422, %v2443
  %v2445 = vsub.f32 %v2423, %v2443
  %v2446 = vsub.f32 %v2424, %v2443
  %v2447 = vsub.f32 %v2425, %v2443
  %v2448 = vmul.f32 %v2444, %v2444
  %v2449 = vmul.f32 %v2445, %v2445
  %v2450 = vmul.f32 %v2446, %v2446
  %v2451 = vmul.f32 %v2447, %v2447
  %v2452 = vsel %vm200, %v2448, 0.0
  %v2453 = vsel %vm200, %v2449, 0.0
  %v2454 = vadd.f32 %v2452, %v2453
  %v2455 = vsel %vm200, %v2450, 0.0
  %v2456 = vadd.f32 %v2454, %v2455
  %v2457 = vsel %vm200, %v2451, 0.0
  %v2458 = vadd.f32 %v2456, %v2457
  %v2459 = vrot.slane %v2458, 4
  %v2460 = vadd.f32 %v2458, %v2459
  %v2461 = vrot.slane %v2460, 2
  %v2462 = vadd.f32 %v2460, %v2461
  %v2463 = vrot.slane %v2462, 1
  %v2464 = vadd.f32 %v2462, %v2463
  %v2465 = vmul.f32 %v2464, %v327
  %v2466 = vadd.f32 %v2465, 1e-05
  %v2467 = vrsqrt.pop %v2466
  %v2468 = vmul.f32 %v2444, %v2467
  %v2469 = vmul.f32 %v2445, %v2467
  %v2470 = vmul.f32 %v2446, %v2467
  %v2471 = vmul.f32 %v2447, %v2467
  %v2473 = vlaneseq
  %v2474 = vshrl.u32 %v2473, 7
  %v2475 = vsub.s32 0, %v2474
  %v2476 = vrot.slane %v2427, %v2475
  %v2478 = vmul.f32 %v2468, %v2476
  %v2479 = vmul.f32 %v2469, %v2476
  %v2480 = vmul.f32 %v2470, %v2476
  %v2481 = vmul.f32 %v2471, %v2476
  %v2483 = vlaneseq
  %v2484 = vshrl.u32 %v2483, 7
  %v2485 = vsub.s32 0, %v2484
  %v2486 = vrot.slane %v2429, %v2485
  %v2488 = vadd.f32 %v2478, %v2486
  %v2489 = vadd.f32 %v2479, %v2486
  %v2490 = vadd.f32 %v2480, %v2486
  %v2491 = vadd.f32 %v2481, %v2486
  %vm2492 = vcmp.gt.f32.partialorder %v2488, 0.0
  %vm2493 = vcmp.gt.f32.partialorder %v2489, 0.0
  %vm2494 = vcmp.gt.f32.partialorder %v2490, 0.0
  %vm2495 = vcmp.gt.f32.partialorder %v2491, 0.0
  %v2496 = vmul.f32 %v2488, 0.01
  %v2497 = vmul.f32 %v2489, 0.01
  %v2498 = vmul.f32 %v2490, 0.01
  %v2499 = vmul.f32 %v2491, 0.01
  %v2500 = vsel %vm2492, %v2488, %v2496
  %v2501 = vsel %vm2493, %v2489, %v2497
  %v2502 = vsel %vm2494, %v2490, %v2498
  %v2503 = vsel %vm2495, %v2491, %v2499
  %s2504 = scalar_lea.vmem %s7, 224
  %v2505 = vld [vmem:[%s2504] sm:$0xff]
  %v2506 = vld [vmem:[%s2504 + $0x8] sm:$0xff]
  %v2507 = vld [vmem:[%s2504 + $0x10] sm:$0xff]
  %v2508 = vld [vmem:[%s2504 + $0x18] sm:$0xff]
  %s2509 = scalar_lea.vmem %s8, 7
  %v2510 = vld [vmem:[%s2509] sm:$0x1]
  %v2512 = vsel %vm200, %v2500, 0
  %v2515 = vsel %vm200, %v2501, 0
  %v2518 = vsel %vm200, %v2502, 0
  %v2521 = vsel %vm200, %v2503, 0
  %2523 = vmatprep.subr.mxu0 0.0
  %2524 = vmatpush1.msra.mxu0 %v2505
  %2525 = vmatprep.subr.mxu0 0.0
  %2526 = vmatpush1.msra.mxu0 %v2506
  %2527 = vmatprep.subr.mxu0 0.0
  %2528 = vmatpush1.msra.mxu0 %v2507
  %2529 = vmatprep.subr.mxu0 0.0
  %2530 = vmatpush1.msra.mxu0 %v2508
  %2531 = vmatprep.subr.mxu0 0.0
  %2532 = vmatpush1.msra.mxu0 0.0
  %2533 = vmatprep.subr.mxu0 0.0
  %2534 = vmatpush1.msra.mxu0 0.0
  %2535 = vmatprep.subr.mxu0 0.0
  %2536 = vmatpush1.msra.mxu0 0.0
  %2537 = vmatprep.subr.mxu0 0.0
  %2538 = vmatpush1.msra.mxu0 0.0
  %2539 = vmatprep.subr.mxu0 0.0
  %2540 = vmatpush1.msra.mxu0 0.0
  %2541 = vmatprep.subr.mxu0 0.0
  %2542 = vmatpush1.msra.mxu0 0.0
  %2543 = vmatprep.subr.mxu0 0.0
  %2544 = vmatpush1.msra.mxu0 0.0
  %2545 = vmatprep.subr.mxu0 0.0
  %2546 = vmatpush1.msra.mxu0 0.0
  %2547 = vmatprep.subr.mxu0 0.0
  %2548 = vmatpush1.msra.mxu0 0.0
  %2549 = vmatprep.subr.mxu0 0.0
  %2550 = vmatpush1.msra.mxu0 0.0
  %2551 = vmatprep.subr.mxu0 0.0
  %2552 = vmatpush1.msra.mxu0 0.0
  %2553 = vmatprep.subr.mxu0 0.0
  %2554 = vmatpush1.msra.mxu0 0.0
  %2555 = vmatprep.subr.mxu0 0.0
  %2556 = vmatpush1.msra.mxu0 0.0
  %2557 = vmatprep.subr.mxu0 0.0
  %2558 = vmatpush1.msra.mxu0 0.0
  %2559 = vmatprep.subr.mxu0 0.0
  %2560 = vmatpush1.msra.mxu0 0.0
  %2561 = vmatprep.subr.mxu0 0.0
  %2562 = vmatpush1.msra.mxu0 0.0
  %2563 = vmatprep.subr.mxu0 0.0
  %2564 = vmatpush1.msra.mxu0 0.0
  %2565 = vmatprep.subr.mxu0 0.0
  %2566 = vmatpush1.msra.mxu0 0.0
  %2567 = vmatprep.subr.mxu0 0.0
  %2568 = vmatpush1.msra.mxu0 0.0
  %2569 = vmatprep.subr.mxu0 0.0
  %2570 = vmatpush1.msra.mxu0 0.0
  %2571 = vmatprep.subr.mxu0 0.0
  %2572 = vmatpush1.msra.mxu0 0.0
  %2573 = vmatprep.subr.mxu0 0.0
  %2574 = vmatpush1.msra.mxu0 0.0
  %2575 = vmatprep.subr.mxu0 0.0
  %2576 = vmatpush1.msra.mxu0 0.0
  %2577 = vmatprep.subr.mxu0 0.0
  %2578 = vmatpush1.msra.mxu0 0.0
  %2579 = vmatprep.subr.mxu0 0.0
  %2580 = vmatpush1.msra.mxu0 0.0
  %2581 = vmatprep.subr.mxu0 0.0
  %2582 = vmatpush1.msra.mxu0 0.0
  %2583 = vmatprep.subr.mxu0 0.0
  %2584 = vmatpush1.msra.mxu0 0.0
  %2585 = vmatprep.subr.mxu0 0.0
  %2586 = vmatpush1.msra.mxu0 0.0
  %2587 = vmatprep.mubr.f32.mxu0 0.0
  %2588 = vmatmul.mubr.f32.gmra.mrb[0].mxu0 %v2512
  %v2589 = vpop.f32.mrb[0].mxu0
  %v2590 = vadd.f32 0.0, %v2589
  %v2591 = vpop.f32.mrb[0].mxu0
  %2592 = vmatprep.mubr.f32.mxu0 0.0
  %2593 = vmatmul.mubr.f32.gmra.mrb[0].mxu0 %v2515
  %v2594 = vpop.f32.mrb[0].mxu0
  %v2595 = vadd.f32 0.0, %v2594
  %v2596 = vpop.f32.mrb[0].mxu0
  %2597 = vmatprep.mubr.f32.mxu0 0.0
  %2598 = vmatmul.mubr.f32.gmra.mrb[0].mxu0 %v2518
  %v2599 = vpop.f32.mrb[0].mxu0
  %v2600 = vadd.f32 0.0, %v2599
  %v2601 = vpop.f32.mrb[0].mxu0
  %2602 = vmatprep.mubr.f32.mxu0 0.0
  %2603 = vmatmul.mubr.f32.gmra.mrb[0].mxu0 %v2521
  %v2604 = vpop.f32.mrb[0].mxu0
  %v2605 = vadd.f32 0.0, %v2604
  %v2606 = vpop.f32.mrb[0].mxu0
  %2607 = vdwg.mxu0
  %v2608 = vmul.f32 %v163, %v2590
  %v2609 = vmul.f32 %v168, %v2595
  %v2610 = vmul.f32 %v173, %v2600
  %v2611 = vmul.f32 %v178, %v2605
  %2616 = vrot.lane.b32.xlu0 %v2590, 96
  %v2617 = vpop.permute.xlu0 %2616
  %2618 = vrot.lane.b32.xlu0 %v2595, 96
  %v2619 = vpop.permute.xlu0 %2618
  %2620 = vrot.lane.b32.xlu0 %v2600, 96
  %v2621 = vpop.permute.xlu0 %2620
  %2622 = vrot.lane.b32.xlu0 %v2605, 96
  %v2623 = vpop.permute.xlu0 %2622
  %2628 = vmatprep.subr.mxu0 0.0
  %2629 = vmatpush1.msra.mxu0 %v2617
  %2630 = vmatprep.subr.mxu0 0.0
  %2631 = vmatpush1.msra.mxu0 %v2619
  %2632 = vmatprep.subr.mxu0 0.0
  %2633 = vmatpush1.msra.mxu0 %v2621
  %2634 = vmatprep.subr.mxu0 0.0
  %2635 = vmatpush1.msra.mxu0 %v2623
  %2636 = vmatprep.subr.mxu0 0.0
  %2637 = vmatpush1.msra.mxu0 0.0
  %2638 = vmatprep.subr.mxu0 0.0
  %2639 = vmatpush1.msra.mxu0 0.0
  %2640 = vmatprep.subr.mxu0 0.0
  %2641 = vmatpush1.msra.mxu0 0.0
  %2642 = vmatprep.subr.mxu0 0.0
  %2643 = vmatpush1.msra.mxu0 0.0
  %2644 = vmatprep.subr.mxu0 0.0
  %2645 = vmatpush1.msra.mxu0 0.0
  %2646 = vmatprep.subr.mxu0 0.0
  %2647 = vmatpush1.msra.mxu0 0.0
  %2648 = vmatprep.subr.mxu0 0.0
  %2649 = vmatpush1.msra.mxu0 0.0
  %2650 = vmatprep.subr.mxu0 0.0
  %2651 = vmatpush1.msra.mxu0 0.0
  %2652 = vmatprep.subr.mxu0 0.0
  %2653 = vmatpush1.msra.mxu0 0.0
  %2654 = vmatprep.subr.mxu0 0.0
  %2655 = vmatpush1.msra.mxu0 0.0
  %2656 = vmatprep.subr.mxu0 0.0
  %2657 = vmatpush1.msra.mxu0 0.0
  %2658 = vmatprep.subr.mxu0 0.0
  %2659 = vmatpush1.msra.mxu0 0.0
  %2660 = vmatprep.subr.mxu0 0.0
  %2661 = vmatpush1.msra.mxu0 0.0
  %2662 = vmatprep.subr.mxu0 0.0
  %2663 = vmatpush1.msra.mxu0 0.0
  %2664 = vmatprep.subr.mxu0 0.0
  %2665 = vmatpush1.msra.mxu0 0.0
  %2666 = vmatprep.subr.mxu0 0.0
  %2667 = vmatpush1.msra.mxu0 0.0
  %2668 = vmatprep.subr.mxu0 0.0
  %2669 = vmatpush1.msra.mxu0 0.0
  %2670 = vmatprep.subr.mxu0 0.0
  %2671 = vmatpush1.msra.mxu0 0.0
  %2672 = vmatprep.subr.mxu0 0.0
  %2673 = vmatpush1.msra.mxu0 0.0
  %2674 = vmatprep.subr.mxu0 0.0
  %2675 = vmatpush1.msra.mxu0 0.0
  %2676 = vmatprep.subr.mxu0 0.0
  %2677 = vmatpush1.msra.mxu0 0.0
  %2678 = vmatprep.subr.mxu0 0.0
  %2679 = vmatpush1.msra.mxu0 0.0
  %2680 = vmatprep.subr.mxu0 0.0
  %2681 = vmatpush1.msra.mxu0 0.0
  %2682 = vmatprep.subr.mxu0 0.0
  %2683 = vmatpush1.msra.mxu0 0.0
  %2684 = vmatprep.subr.mxu0 0.0
  %2685 = vmatpush1.msra.mxu0 0.0
  %2686 = vmatprep.subr.mxu0 0.0
  %2687 = vmatpush1.msra.mxu0 0.0
  %2688 = vmatprep.subr.mxu0 0.0
  %2689 = vmatpush1.msra.mxu0 0.0
  %2690 = vmatprep.subr.mxu0 0.0
  %2691 = vmatpush1.msra.mxu0 0.0
  %2692 = vmatprep.mubr.f32.mxu0 0.0
  %2693 = vmatmul.mubr.f32.gmra.mrb[0].mxu0 %v202
  %v2694 = vpop.f32.mrb[0].mxu0
  %v2695 = vadd.f32 0.0, %v2694
  %v2696 = vpop.f32.mrb[0].mxu0
  %2697 = vmatprep.mubr.f32.mxu0 0.0
  %2698 = vmatmul.mubr.f32.gmra.mrb[0].mxu0 %v205
  %v2699 = vpop.f32.mrb[0].mxu0
  %v2700 = vadd.f32 0.0, %v2699
  %v2701 = vpop.f32.mrb[0].mxu0
  %2702 = vmatprep.mubr.f32.mxu0 0.0
  %2703 = vmatmul.mubr.f32.gmra.mrb[0].mxu0 %v208
  %v2704 = vpop.f32.mrb[0].mxu0
  %v2705 = vadd.f32 0.0, %v2704
  %v2706 = vpop.f32.mrb[0].mxu0
  %2707 = vmatprep.mubr.f32.mxu0 0.0
  %2708 = vmatmul.mubr.f32.gmra.mrb[0].mxu0 %v211
  %v2709 = vpop.f32.mrb[0].mxu0
  %v2710 = vadd.f32 0.0, %v2709
  %v2711 = vpop.f32.mrb[0].mxu0
  %2712 = vdwg.mxu0
  %v2713 = vadd.f32 %v2608, %v2695
  %v2714 = vadd.f32 %v2609, %v2700
  %v2715 = vadd.f32 %v2610, %v2705
  %v2716 = vadd.f32 %v2611, %v2710
  %v2718 = vlaneseq
  %v2719 = vshrl.u32 %v2718, 7
  %v2720 = vsub.s32 0, %v2719
  %v2721 = vrot.slane %v2510, %v2720
  %v2723 = vadd.f32 %v2713, %v2721
  %v2724 = vadd.f32 %v2714, %v2721
  %v2725 = vadd.f32 %v2715, %v2721
  %v2726 = vadd.f32 %v2716, %v2721
  %s2727 = scalar_lea.vmem %s9, 7
  %v2728 = vld [vmem:[%s2727] sm:$0x1]
  %s2729 = scalar_lea.vmem %s10, 7
  %v2730 = vld [vmem:[%s2729] sm:$0x1]
  %v2731 = vsel %vm200, %v2723, 0.0
  %v2732 = vsel %vm200, %v2724, 0.0
  %v2733 = vadd.f32 %v2731, %v2732
  %v2734 = vsel %vm200, %v2725, 0.0
  %v2735 = vadd.f32 %v2733, %v2734
  %v2736 = vsel %vm200, %v2726, 0.0
  %v2737 = vadd.f32 %v2735, %v2736
  %v2738 = vrot.slane %v2737, 4
  %v2739 = vadd.f32 %v2737, %v2738
  %v2740 = vrot.slane %v2739, 2
  %v2741 = vadd.f32 %v2739, %v2740
  %v2742 = vrot.slane %v2741, 1
  %v2743 = vadd.f32 %v2741, %v2742
  %v2744 = vmul.f32 %v2743, %v327
  %v2745 = vsub.f32 %v2723, %v2744
  %v2746 = vsub.f32 %v2724, %v2744
  %v2747 = vsub.f32 %v2725, %v2744
  %v2748 = vsub.f32 %v2726, %v2744
  %v2749 = vmul.f32 %v2745, %v2745
  %v2750 = vmul.f32 %v2746, %v2746
  %v2751 = vmul.f32 %v2747, %v2747
  %v2752 = vmul.f32 %v2748, %v2748
  %v2753 = vsel %vm200, %v2749, 0.0
  %v2754 = vsel %vm200, %v2750, 0.0
  %v2755 = vadd.f32 %v2753, %v2754
  %v2756 = vsel %vm200, %v2751, 0.0
  %v2757 = vadd.f32 %v2755, %v2756
  %v2758 = vsel %vm200, %v2752, 0.0
  %v2759 = vadd.f32 %v2757, %v2758
  %v2760 = vrot.slane %v2759, 4
  %v2761 = vadd.f32 %v2759, %v2760
  %v2762 = vrot.slane %v2761, 2
  %v2763 = vadd.f32 %v2761, %v2762
  %v2764 = vrot.slane %v2763, 1
  %v2765 = vadd.f32 %v2763, %v2764
  %v2766 = vmul.f32 %v2765, %v327
  %v2767 = vadd.f32 %v2766, 1e-05
  %v2768 = vrsqrt.pop %v2767
  %v2769 = vmul.f32 %v2745, %v2768
  %v2770 = vmul.f32 %v2746, %v2768
  %v2771 = vmul.f32 %v2747, %v2768
  %v2772 = vmul.f32 %v2748, %v2768
  %v2774 = vlaneseq
  %v2775 = vshrl.u32 %v2774, 7
  %v2776 = vsub.s32 0, %v2775
  %v2777 = vrot.slane %v2728, %v2776
  %v2779 = vmul.f32 %v2769, %v2777
  %v2780 = vmul.f32 %v2770, %v2777
  %v2781 = vmul.f32 %v2771, %v2777
  %v2782 = vmul.f32 %v2772, %v2777
  %v2784 = vlaneseq
  %v2785 = vshrl.u32 %v2784, 7
  %v2786 = vsub.s32 0, %v2785
  %v2787 = vrot.slane %v2730, %v2786
  %v2789 = vadd.f32 %v2779, %v2787
  %v2790 = vadd.f32 %v2780, %v2787
  %v2791 = vadd.f32 %v2781, %v2787
  %v2792 = vadd.f32 %v2782, %v2787
  %v2793 = vadd.f32 %v2789, %v2199
  %v2794 = vadd.f32 %v2790, %v2200
  %v2795 = vadd.f32 %v2791, %v2201
  %v2796 = vadd.f32 %v2792, %v2202
  %vm2797 = vcmp.gt.f32.partialorder %v2793, 0.0
  %vm2798 = vcmp.gt.f32.partialorder %v2794, 0.0
  %vm2799 = vcmp.gt.f32.partialorder %v2795, 0.0
  %vm2800 = vcmp.gt.f32.partialorder %v2796, 0.0
  %v2801 = vmul.f32 %v2793, 0.01
  %v2802 = vmul.f32 %v2794, 0.01
  %v2803 = vmul.f32 %v2795, 0.01
  %v2804 = vmul.f32 %v2796, 0.01
  %v2805 = vsel %vm2797, %v2793, %v2801
  %v2806 = vsel %vm2798, %v2794, %v2802
  %v2807 = vsel %vm2799, %v2795, %v2803
  %v2808 = vsel %vm2800, %v2796, %v2804
  %v2809 = vld [vmem:[%s11] sm:$0xff]
  %v2810 = vld [vmem:[%s11 + $0x8] sm:$0xff]
  %v2811 = vld [vmem:[%s11 + $0x10] sm:$0xff]
  %v2812 = vld [vmem:[%s11 + $0x18] sm:$0xff]
  %v2813 = vld [vmem:[%s12] sm:$0x1]
  %v2815 = vsel %vm200, %v2805, 0
  %v2818 = vsel %vm200, %v2806, 0
  %v2821 = vsel %vm200, %v2807, 0
  %v2824 = vsel %vm200, %v2808, 0
  %2826 = vmatprep.subr.mxu0 0.0
  %2827 = vmatpush1.msra.mxu0 %v2809
  %2828 = vmatprep.subr.mxu0 0.0
  %2829 = vmatpush1.msra.mxu0 %v2810
  %2830 = vmatprep.subr.mxu0 0.0
  %2831 = vmatpush1.msra.mxu0 %v2811
  %2832 = vmatprep.subr.mxu0 0.0
  %2833 = vmatpush1.msra.mxu0 %v2812
  %2834 = vmatprep.subr.mxu0 0.0
  %2835 = vmatpush1.msra.mxu0 0.0
  %2836 = vmatprep.subr.mxu0 0.0
  %2837 = vmatpush1.msra.mxu0 0.0
  %2838 = vmatprep.subr.mxu0 0.0
  %2839 = vmatpush1.msra.mxu0 0.0
  %2840 = vmatprep.subr.mxu0 0.0
  %2841 = vmatpush1.msra.mxu0 0.0
  %2842 = vmatprep.subr.mxu0 0.0
  %2843 = vmatpush1.msra.mxu0 0.0
  %2844 = vmatprep.subr.mxu0 0.0
  %2845 = vmatpush1.msra.mxu0 0.0
  %2846 = vmatprep.subr.mxu0 0.0
  %2847 = vmatpush1.msra.mxu0 0.0
  %2848 = vmatprep.subr.mxu0 0.0
  %2849 = vmatpush1.msra.mxu0 0.0
  %2850 = vmatprep.subr.mxu0 0.0
  %2851 = vmatpush1.msra.mxu0 0.0
  %2852 = vmatprep.subr.mxu0 0.0
  %2853 = vmatpush1.msra.mxu0 0.0
  %2854 = vmatprep.subr.mxu0 0.0
  %2855 = vmatpush1.msra.mxu0 0.0
  %2856 = vmatprep.subr.mxu0 0.0
  %2857 = vmatpush1.msra.mxu0 0.0
  %2858 = vmatprep.subr.mxu0 0.0
  %2859 = vmatpush1.msra.mxu0 0.0
  %2860 = vmatprep.subr.mxu0 0.0
  %2861 = vmatpush1.msra.mxu0 0.0
  %2862 = vmatprep.subr.mxu0 0.0
  %2863 = vmatpush1.msra.mxu0 0.0
  %2864 = vmatprep.subr.mxu0 0.0
  %2865 = vmatpush1.msra.mxu0 0.0
  %2866 = vmatprep.subr.mxu0 0.0
  %2867 = vmatpush1.msra.mxu0 0.0
  %2868 = vmatprep.subr.mxu0 0.0
  %2869 = vmatpush1.msra.mxu0 0.0
  %2870 = vmatprep.subr.mxu0 0.0
  %2871 = vmatpush1.msra.mxu0 0.0
  %2872 = vmatprep.subr.mxu0 0.0
  %2873 = vmatpush1.msra.mxu0 0.0
  %2874 = vmatprep.subr.mxu0 0.0
  %2875 = vmatpush1.msra.mxu0 0.0
  %2876 = vmatprep.subr.mxu0 0.0
  %2877 = vmatpush1.msra.mxu0 0.0
  %2878 = vmatprep.subr.mxu0 0.0
  %2879 = vmatpush1.msra.mxu0 0.0
  %2880 = vmatprep.subr.mxu0 0.0
  %2881 = vmatpush1.msra.mxu0 0.0
  %2882 = vmatprep.subr.mxu0 0.0
  %2883 = vmatpush1.msra.mxu0 0.0
  %2884 = vmatprep.subr.mxu0 0.0
  %2885 = vmatpush1.msra.mxu0 0.0
  %2886 = vmatprep.subr.mxu0 0.0
  %2887 = vmatpush1.msra.mxu0 0.0
  %2888 = vmatprep.subr.mxu0 0.0
  %2889 = vmatpush1.msra.mxu0 0.0
  %2890 = vmatprep.mubr.f32.mxu0 0.0
  %2891 = vmatmul.mubr.f32.gmra.mrb[0].mxu0 %v2815
  %v2892 = vpop.f32.mrb[0].mxu0
  %v2893 = vadd.f32 0.0, %v2892
  %v2894 = vpop.f32.mrb[0].mxu0
  %2895 = vmatprep.mubr.f32.mxu0 0.0
  %2896 = vmatmul.mubr.f32.gmra.mrb[0].mxu0 %v2818
  %v2897 = vpop.f32.mrb[0].mxu0
  %v2898 = vadd.f32 0.0, %v2897
  %v2899 = vpop.f32.mrb[0].mxu0
  %2900 = vmatprep.mubr.f32.mxu0 0.0
  %2901 = vmatmul.mubr.f32.gmra.mrb[0].mxu0 %v2821
  %v2902 = vpop.f32.mrb[0].mxu0
  %v2903 = vadd.f32 0.0, %v2902
  %v2904 = vpop.f32.mrb[0].mxu0
  %2905 = vmatprep.mubr.f32.mxu0 0.0
  %2906 = vmatmul.mubr.f32.gmra.mrb[0].mxu0 %v2824
  %v2907 = vpop.f32.mrb[0].mxu0
  %v2908 = vadd.f32 0.0, %v2907
  %v2909 = vpop.f32.mrb[0].mxu0
  %2910 = vdwg.mxu0
  %v2911 = vmul.f32 %v163, %v2893
  %v2912 = vmul.f32 %v168, %v2898
  %v2913 = vmul.f32 %v173, %v2903
  %v2914 = vmul.f32 %v178, %v2908
  %2919 = vrot.lane.b32.xlu0 %v2893, 124
  %v2920 = vpop.permute.xlu0 %2919
  %2921 = vrot.lane.b32.xlu0 %v2898, 124
  %v2922 = vpop.permute.xlu0 %2921
  %2923 = vrot.lane.b32.xlu0 %v2903, 124
  %v2924 = vpop.permute.xlu0 %2923
  %2925 = vrot.lane.b32.xlu0 %v2908, 124
  %v2926 = vpop.permute.xlu0 %2925
  %2931 = vmatprep.subr.mxu0 0.0
  %2932 = vmatpush1.msra.mxu0 %v2920
  %2933 = vmatprep.subr.mxu0 0.0
  %2934 = vmatpush1.msra.mxu0 %v2922
  %2935 = vmatprep.subr.mxu0 0.0
  %2936 = vmatpush1.msra.mxu0 %v2924
  %2937 = vmatprep.subr.mxu0 0.0
  %2938 = vmatpush1.msra.mxu0 %v2926
  %2939 = vmatprep.subr.mxu0 0.0
  %2940 = vmatpush1.msra.mxu0 0.0
  %2941 = vmatprep.subr.mxu0 0.0
  %2942 = vmatpush1.msra.mxu0 0.0
  %2943 = vmatprep.subr.mxu0 0.0
  %2944 = vmatpush1.msra.mxu0 0.0
  %2945 = vmatprep.subr.mxu0 0.0
  %2946 = vmatpush1.msra.mxu0 0.0
  %2947 = vmatprep.subr.mxu0 0.0
  %2948 = vmatpush1.msra.mxu0 0.0
  %2949 = vmatprep.subr.mxu0 0.0
  %2950 = vmatpush1.msra.mxu0 0.0
  %2951 = vmatprep.subr.mxu0 0.0
  %2952 = vmatpush1.msra.mxu0 0.0
  %2953 = vmatprep.subr.mxu0 0.0
  %2954 = vmatpush1.msra.mxu0 0.0
  %2955 = vmatprep.subr.mxu0 0.0
  %2956 = vmatpush1.msra.mxu0 0.0
  %2957 = vmatprep.subr.mxu0 0.0
  %2958 = vmatpush1.msra.mxu0 0.0
  %2959 = vmatprep.subr.mxu0 0.0
  %2960 = vmatpush1.msra.mxu0 0.0
  %2961 = vmatprep.subr.mxu0 0.0
  %2962 = vmatpush1.msra.mxu0 0.0
  %2963 = vmatprep.subr.mxu0 0.0
  %2964 = vmatpush1.msra.mxu0 0.0
  %2965 = vmatprep.subr.mxu0 0.0
  %2966 = vmatpush1.msra.mxu0 0.0
  %2967 = vmatprep.subr.mxu0 0.0
  %2968 = vmatpush1.msra.mxu0 0.0
  %2969 = vmatprep.subr.mxu0 0.0
  %2970 = vmatpush1.msra.mxu0 0.0
  %2971 = vmatprep.subr.mxu0 0.0
  %2972 = vmatpush1.msra.mxu0 0.0
  %2973 = vmatprep.subr.mxu0 0.0
  %2974 = vmatpush1.msra.mxu0 0.0
  %2975 = vmatprep.subr.mxu0 0.0
  %2976 = vmatpush1.msra.mxu0 0.0
  %2977 = vmatprep.subr.mxu0 0.0
  %2978 = vmatpush1.msra.mxu0 0.0
  %2979 = vmatprep.subr.mxu0 0.0
  %2980 = vmatpush1.msra.mxu0 0.0
  %2981 = vmatprep.subr.mxu0 0.0
  %2982 = vmatpush1.msra.mxu0 0.0
  %2983 = vmatprep.subr.mxu0 0.0
  %2984 = vmatpush1.msra.mxu0 0.0
  %2985 = vmatprep.subr.mxu0 0.0
  %2986 = vmatpush1.msra.mxu0 0.0
  %2987 = vmatprep.subr.mxu0 0.0
  %2988 = vmatpush1.msra.mxu0 0.0
  %2989 = vmatprep.subr.mxu0 0.0
  %2990 = vmatpush1.msra.mxu0 0.0
  %2991 = vmatprep.subr.mxu0 0.0
  %2992 = vmatpush1.msra.mxu0 0.0
  %2993 = vmatprep.subr.mxu0 0.0
  %2994 = vmatpush1.msra.mxu0 0.0
  %2995 = vmatprep.mubr.f32.mxu0 0.0
  %2996 = vmatmul.mubr.f32.gmra.mrb[0].mxu0 %v202
  %v2997 = vpop.f32.mrb[0].mxu0
  %v2998 = vadd.f32 0.0, %v2997
  %v2999 = vpop.f32.mrb[0].mxu0
  %3000 = vmatprep.mubr.f32.mxu0 0.0
  %3001 = vmatmul.mubr.f32.gmra.mrb[0].mxu0 %v205
  %v3002 = vpop.f32.mrb[0].mxu0
  %v3003 = vadd.f32 0.0, %v3002
  %v3004 = vpop.f32.mrb[0].mxu0
  %3005 = vmatprep.mubr.f32.mxu0 0.0
  %3006 = vmatmul.mubr.f32.gmra.mrb[0].mxu0 %v208
  %v3007 = vpop.f32.mrb[0].mxu0
  %v3008 = vadd.f32 0.0, %v3007
  %v3009 = vpop.f32.mrb[0].mxu0
  %3010 = vmatprep.mubr.f32.mxu0 0.0
  %3011 = vmatmul.mubr.f32.gmra.mrb[0].mxu0 %v211
  %v3012 = vpop.f32.mrb[0].mxu0
  %v3013 = vadd.f32 0.0, %v3012
  %v3014 = vpop.f32.mrb[0].mxu0
  %3015 = vdwg.mxu0
  %v3016 = vadd.f32 %v2911, %v2998
  %v3017 = vadd.f32 %v2912, %v3003
  %v3018 = vadd.f32 %v2913, %v3008
  %v3019 = vadd.f32 %v2914, %v3013
  %v3021 = vlaneseq
  %v3022 = vshrl.u32 %v3021, 7
  %v3023 = vsub.s32 0, %v3022
  %v3024 = vrot.slane %v2813, %v3023
  %v3026 = vadd.f32 %v3016, %v3024
  %v3027 = vadd.f32 %v3017, %v3024
  %v3028 = vadd.f32 %v3018, %v3024
  %v3029 = vadd.f32 %v3019, %v3024
  %3030 = vst.msk [vmem:[%s13] sm:$0xff] %vm58, %v3026
  %3031 = vst.msk [vmem:[%s13 + $0x8] sm:$0xff] %vm58, %v3027
  %3032 = vst.msk [vmem:[%s13 + $0x10] sm:$0xff] %vm58, %v3028
  %3033 = vst.msk [vmem:[%s13 + $0x18] sm:$0xff] %vm58, %v3029
  // Predicated region
  $region54: #{res_semantic_gcn_forward.1} parent=0 // pred_check
    _
  $region55: #{res_semantic_gcn_forward.1} parent=0 // pred_check_branch
    %3035 = sbr.rel (0) target = $region57
  $region56: #{res_semantic_gcn_forward.1} parent=0 // pred_region
    _
  $region57: #{res_semantic_gcn_forward.1} parent=0 // pred_fallthru
    _
  // Predicated region
  $region58: #{res_semantic_gcn_forward.1} parent=0 // pred_check
    _
  $region59: #{res_semantic_gcn_forward.1} parent=0 // pred_check_branch
    %3037 = sbr.rel (0) target = $region61
  $region60: #{res_semantic_gcn_forward.1} parent=0 // pred_region
    _
  $region61: #{res_semantic_gcn_forward.1} parent=0 // pred_fallthru
    _

</llo_original>
